<compile_context>
chip_gen: v7x
topology: tpu7x:2x2x1
jax: 0.10.0
libtpu: 0.0.40
codegen_flags: <defaults>
</compile_context>

<pallas_src>
import functools

import jax
import jax.numpy as jnp
from jax.experimental import pallas as pl
from jax.experimental.pallas import tpu as pltpu

LEAKY_SLOPE = 0.1

# ----- synthesized topology constants -----
H0 = W0 = 16          # input spatial
CIN = 4               # input channels
C1 = 8                # path1 conv out
CB1 = 16              # parallel1 conv out
CB2 = 4               # parallel2 1x1 conv out (x4 after reorg -> 16)
CCAT = 4 * CB2 + CB1  # 32 channels after torch.cat([out2, out1], dim=1)
C2 = 32               # path2 conv out
NUM_OUT = 25          # final detection channels
H1 = H0 // 2          # 8  (after first 2x2 pool)
H2 = H1 // 2          # 4  (after second pool / reorg)

# Set to jnp.bfloat16 on v6e/v7x for ~2x MXU throughput when scaling to real
# YOLO shapes (epilogue stays f32).  Kept f32 here so the self-check against the
# f32 lax.conv reference stays tight.
COMPUTE_DTYPE = jnp.float32


# ----------------------------------------------------------------------------
# In-kernel helpers (all operate on VMEM values / refs, no HBM traffic)
# ----------------------------------------------------------------------------
def _leaky(v):
    return jnp.where(v > 0, v, LEAKY_SLOPE * v)


def _mm_bias(p, w, b, leaky, compute_dtype):
    """(M, K) @ (K, N) on the MXU with f32 accumulation + fused bias / LeakyReLU."""
    acc = jnp.dot(p.astype(compute_dtype), w.astype(compute_dtype),
                  preferred_element_type=jnp.float32)
    acc = acc + b
    return _leaky(acc) if leaky else acc


def _patches_3x3(load_tap, h, w, cin):
    """Patch matrix (h*w, 9*cin) for a SAME 3x3 conv.

    Taps are sliced from a zero-padded VMEM buffer via
    `load_tap(di, dj) -> (h, w, cin)` and lane-concatenated (column order
    (di, dj, cin) matches the weight reshape in `_prep_conv`)."""
    taps = []
    for di in range(3):
        for dj in range(3):
            taps.append(load_tap(di, dj).reshape(h * w, cin))
    return jnp.concatenate(taps, axis=-1)


def _maxpool2x2(src_ref, h, w, c):
    """2x2 maxpool of the (h, w, c) map held in a VMEM ref.

    W pairs via sublane-strided ref loads, H pairs via an outer-dim split
    reshape (both layout-safe)."""
    ev = src_ref[:, pl.ds(0, w // 2, stride=2), :]
    od = src_ref[:, pl.ds(1, w // 2, stride=2), :]
    m = jnp.maximum(ev, od).reshape(h // 2, 2, w // 2, c)
    return jnp.maximum(m[:, 0], m[:, 1])                    # (h//2, w//2, c)


def _space_to_depth2(src_ref, h, w, c):
    """Reorg (h, w, c) -> (h//2, w//2, 4*c), channel order (a, b, c)."""
    cols = []
    for b in range(2):
        v = src_ref[:, pl.ds(b, w // 2, stride=2), :]        # (h, w//2, c)
        cols.append(v.reshape(h // 2, 2, w // 2, c))
    slabs = [cols[b][:, a] for a in range(2) for b in range(2)]
    return jnp.concatenate(slabs, axis=-1)                   # (h//2, w//2, 4c)


# ----------------------------------------------------------------------------
# Fused forward-pass kernel (one image per grid step)
# ----------------------------------------------------------------------------
def _yolo_fused_kernel(x_ref, w1_ref, b1_ref, wb1_ref, bb1_ref, wb2_ref, bb2_ref,
                       wp2_ref, bp2_ref, wf_ref, bf_ref, o_ref,
                       c1_s, p1_s, cb1_s, cb2_s, cat_s, *, compute_dtype):
    f32 = jnp.float32

    # ---- path1: 3x3 conv (CIN -> C1, SAME pad pre-applied), LeakyReLU, 2x2 maxpool
    p = _patches_3x3(lambda di, dj: x_ref[0, di:di + H0, dj:dj + W0, :],
                     H0, W0, CIN)                                       # (256, 36)
    y1 = _mm_bias(p, w1_ref[...], b1_ref[...], True, compute_dtype)     # (256, C1)
    c1_s[...] = y1.reshape(H0, W0, C1)
    pooled1 = _maxpool2x2(c1_s, H0, W0, C1)                             # (H1, H1, C1)

    # zero-padded copy of the pooled stem map (shared by both parallel branches)
    p1_s[...] = jnp.zeros((H1 + 2, H1 + 2, C1), f32)
    p1_s[1:1 + H1, 1:1 + H1, :] = pooled1

    # ---- parallel1: 3x3 conv (C1 -> CB1), LeakyReLU, 2x2 maxpool
    p = _patches_3x3(lambda di, dj: p1_s[di:di + H1, dj:dj + H1, :],
                     H1, H1, C1)                                        # (64, 72)
    yb1 = _mm_bias(p, wb1_ref[...], bb1_ref[...], True, compute_dtype)  # (64, CB1)
    cb1_s[...] = yb1.reshape(H1, H1, CB1)
    out1 = _maxpool2x2(cb1_s, H1, H1, CB1)                              # (H2, H2, CB1)

    # ---- parallel2: 1x1 conv (C1 -> CB2), LeakyReLU, space-to-depth reorg
    xin = p1_s[1:1 + H1, 1:1 + H1, :].reshape(H1 * H1, C1)              # (64, C1)
    yb2 = _mm_bias(xin, wb2_ref[...], bb2_ref[...], True, compute_dtype)  # (64, CB2)
    cb2_s[...] = yb2.reshape(H1, H1, CB2)
    out2 = _space_to_depth2(cb2_s, H1, H1, CB2)                         # (H2, H2, 4*CB2)

    # ---- torch.cat([out2, out1], dim=1): fused into one padded VMEM buffer
    cat_s[...] = jnp.zeros((H2 + 2, H2 + 2, CCAT), f32)
    cat_s[1:1 + H2, 1:1 + H2, :] = jnp.concatenate([out2, out1], axis=-1)

    # ---- path2 (3x3, CCAT -> C2, LeakyReLU) + final (1x1, C2 -> NUM_OUT, linear)
    # Tiny 4x4 tail: per-output-row patch rows keep every reshape layout-safe.
    wp2, bp2 = wp2_ref[...], bp2_ref[...]
    wf, bf = wf_ref[...], bf_ref[...]
    for h in range(H2):
        taps = [cat_s[h + di, dj:dj + H2, :] for di in range(3) for dj in range(3)]
        prow = jnp.concatenate(taps, axis=-1)                           # (H2, 9*CCAT)
        yrow = _mm_bias(prow, wp2, bp2, True, compute_dtype)            # (H2, C2)
        zrow = _mm_bias(yrow, wf, bf, False, compute_dtype)             # (H2, NUM_OUT)
        o_ref[0, h] = zrow.astype(o_ref.dtype)


# ----------------------------------------------------------------------------
# Wrapper: layout plumbing + the single pallas_call
# ----------------------------------------------------------------------------
def _prep_conv(w_oihw, b):
    """PyTorch-layout (Cout, Cin, Kh, Kw) -> ((Kh*Kw*Cin, Cout), (1, Cout))."""
    cout, cin, kh, kw = w_oihw.shape
    wm = jnp.transpose(w_oihw, (2, 3, 1, 0)).reshape(kh * kw * cin, cout)
    return wm, b.reshape(1, cout)


def yolo_v2_forward(x_nchw, params):
    n = x_nchw.shape[0]
    x = jnp.transpose(x_nchw, (0, 2, 3, 1))                 # NCHW -> NHWC
    x = jnp.pad(x, ((0, 0), (1, 1), (1, 1), (0, 0)))        # SAME pad for conv1

    w1, b1 = _prep_conv(*params["p1_conv"])
    wb1, bb1 = _prep_conv(*params["b1_conv"])
    wb2, bb2 = _prep_conv(*params["b2_conv"])
    wp2, bp2 = _prep_conv(*params["p2_conv"])
    wf, bf = _prep_conv(*params["final_conv"])

    def wspec(a):
        return pl.BlockSpec(a.shape, lambda i: (0,) * a.ndim)

    out = pl.pallas_call(
        functools.partial(_yolo_fused_kernel, compute_dtype=COMPUTE_DTYPE),
        out_shape=jax.ShapeDtypeStruct((n, H2, H2, NUM_OUT), jnp.float32),
        grid=(n,),
        in_specs=[
            pl.BlockSpec((1, H0 + 2, W0 + 2, CIN), lambda i: (i, 0, 0, 0)),
            wspec(w1), wspec(b1),
            wspec(wb1), wspec(bb1),
            wspec(wb2), wspec(bb2),
            wspec(wp2), wspec(bp2),
            wspec(wf), wspec(bf),
        ],
        out_specs=pl.BlockSpec((1, H2, H2, NUM_OUT), lambda i: (i, 0, 0, 0)),
        scratch_shapes=[
            pltpu.VMEM((H0, W0, C1), jnp.float32),            # conv1 out (pre-pool)
            pltpu.VMEM((H1 + 2, H1 + 2, C1), jnp.float32),    # padded pooled stem map
            pltpu.VMEM((H1, H1, CB1), jnp.float32),           # parallel1 conv out
            pltpu.VMEM((H1, H1, CB2), jnp.float32),           # parallel2 conv out
            pltpu.VMEM((H2 + 2, H2 + 2, CCAT), jnp.float32),  # padded concat map
        ],
        compiler_params=pltpu.CompilerParams(
            dimension_semantics=("parallel",)),
    )(x, w1, b1, wb1, bb1, wb2, bb2, wp2, bp2, wf, bf)

    return jnp.transpose(out, (0, 3, 1, 2))                  # NHWC -> NCHW


# ----------------------------------------------------------------------------
# Parameters (deterministic, synthetic)
# ----------------------------------------------------------------------------
def _conv_params(key, cout, cin, kh, kw):
    k1, k2 = jax.random.split(key)
    fan_in = cin * kh * kw
    w = jax.random.normal(k1, (cout, cin, kh, kw), jnp.float32) / jnp.sqrt(fan_in)
    b = 0.01 * jax.random.normal(k2, (cout,), jnp.float32)
    return w, b


def make_params(key, cin=CIN, num_out=NUM_OUT):
    ks = jax.random.split(key, 5)
    return {
        "p1_conv": _conv_params(ks[0], C1, cin, 3, 3),        # path1
        "b1_conv": _conv_params(ks[1], CB1, C1, 3, 3),        # parallel1
        "b2_conv": _conv_params(ks[2], CB2, C1, 1, 1),        # parallel2 (passthrough)
        "p2_conv": _conv_params(ks[3], C2, CCAT, 3, 3),       # path2
        "final_conv": _conv_params(ks[4], num_out, C2, 1, 1), # final detection conv
    }


# ----------------------------------------------------------------------------
# Pure-JAX reference (lax.conv) for correctness check
# ----------------------------------------------------------------------------
def _ref_conv(x_nhwc, w_oihw, b, stride, pad, leaky):
    y = jax.lax.conv_general_dilated(
        x_nhwc, jnp.transpose(w_oihw, (2, 3, 1, 0)),
        window_strides=(stride, stride),
        padding=((pad, pad), (pad, pad)),
        dimension_numbers=("NHWC", "HWIO", "NHWC"),
    ) + b
    return jnp.where(y > 0, y, LEAKY_SLOPE * y) if leaky else y


def _ref_maxpool(x):
    n, h, w, c = x.shape
    return x.reshape(n, h // 2, 2, w // 2, 2, c).max(axis=(2, 4))


def _ref_space_to_depth(x, block=2):
    n, h, w, c = x.shape
    x = x.reshape(n, h // block, block, w // block, block, c)
    x = jnp.transpose(x, (0, 1, 3, 2, 4, 5))
    return x.reshape(n, h // block, w // block, block * block * c)


def yolo_v2_ref(x_nchw, params):
    x = jnp.transpose(x_nchw, (0, 2, 3, 1))
    x = _ref_maxpool(_ref_conv(x, *params["p1_conv"], 1, 1, True))
    out1 = _ref_maxpool(_ref_conv(x, *params["b1_conv"], 1, 1, True))
    out2 = _ref_space_to_depth(_ref_conv(x, *params["b2_conv"], 1, 0, True), 2)
    cat = jnp.concatenate([out2, out1], axis=-1)
    y = _ref_conv(cat, *params["p2_conv"], 1, 1, True)
    y = _ref_conv(y, *params["final_conv"], 1, 0, False)
    return jnp.transpose(y, (0, 3, 1, 2))


# ----------------------------------------------------------------------------
if __name__ == "__main__":
    key = jax.random.PRNGKey(0)
    k_x, k_p = jax.random.split(key)

    x = jax.random.normal(k_x, (2, CIN, H0, W0), jnp.float32)  # NCHW input
    params = make_params(k_p)

    out = jax.jit(yolo_v2_forward)(x, params)
    out = jax.block_until_ready(out)

    ref = jax.block_until_ready(yolo_v2_ref(x, params))
    assert out.shape == (2, NUM_OUT, H2, H2), out.shape
    max_err = float(jnp.max(jnp.abs(out - ref)))
    if max_err > 1e-2:
        raise AssertionError(f"Pallas forward mismatch vs JAX reference: {max_err}")

    print("KERNEL_OK")
</pallas_src>

<mosaic_0001>
module attributes {stable_mosaic.version = 11 : i64} {
  func.func @_yolo_fused_kernel(%arg0: i32, %arg1: memref<1x18x18x4xf32, #tpu.memory_space<vmem>>, %arg2: memref<36x8xf32, #tpu.memory_space<vmem>>, %arg3: memref<1x8xf32, #tpu.memory_space<vmem>>, %arg4: memref<72x16xf32, #tpu.memory_space<vmem>>, %arg5: memref<1x16xf32, #tpu.memory_space<vmem>>, %arg6: memref<8x4xf32, #tpu.memory_space<vmem>>, %arg7: memref<1x4xf32, #tpu.memory_space<vmem>>, %arg8: memref<288x32xf32, #tpu.memory_space<vmem>>, %arg9: memref<1x32xf32, #tpu.memory_space<vmem>>, %arg10: memref<32x25xf32, #tpu.memory_space<vmem>>, %arg11: memref<1x25xf32, #tpu.memory_space<vmem>>, %arg12: memref<1x4x4x25xf32, #tpu.memory_space<vmem>>, %arg13: memref<16x16x8xf32, #tpu.memory_space<vmem>>, %arg14: memref<10x10x8xf32, #tpu.memory_space<vmem>>, %arg15: memref<8x8x16xf32, #tpu.memory_space<vmem>>, %arg16: memref<8x8x4xf32, #tpu.memory_space<vmem>>, %arg17: memref<6x6x32xf32, #tpu.memory_space<vmem>>) attributes {dimension_semantics = [#tpu.dimension_semantics<parallel>], iteration_bounds = array<i64: 2>, scalar_prefetch = 0 : i64, scratch_operands = 5 : i64, tpu.core_type = #tpu.core_type<tc>, window_params = [{transform_indices = @transform_0, window_bounds = array<i64: 1, 18, 18, 4>}, {pipeline_mode = #tpu.pipeline_mode<synchronous>, transform_indices = @transform_1, window_bounds = array<i64: 36, 8>}, {pipeline_mode = #tpu.pipeline_mode<synchronous>, transform_indices = @transform_2, window_bounds = array<i64: 1, 8>}, {pipeline_mode = #tpu.pipeline_mode<synchronous>, transform_indices = @transform_3, window_bounds = array<i64: 72, 16>}, {pipeline_mode = #tpu.pipeline_mode<synchronous>, transform_indices = @transform_4, window_bounds = array<i64: 1, 16>}, {pipeline_mode = #tpu.pipeline_mode<synchronous>, transform_indices = @transform_5, window_bounds = array<i64: 8, 4>}, {pipeline_mode = #tpu.pipeline_mode<synchronous>, transform_indices = @transform_6, window_bounds = array<i64: 1, 4>}, {pipeline_mode = #tpu.pipeline_mode<synchronous>, transform_indices = @transform_7, window_bounds = array<i64: 288, 32>}, {pipeline_mode = #tpu.pipeline_mode<synchronous>, transform_indices = @transform_8, window_bounds = array<i64: 1, 32>}, {pipeline_mode = #tpu.pipeline_mode<synchronous>, transform_indices = @transform_9, window_bounds = array<i64: 32, 25>}, {pipeline_mode = #tpu.pipeline_mode<synchronous>, transform_indices = @transform_10, window_bounds = array<i64: 1, 25>}, {transform_indices = @transform_11, window_bounds = array<i64: 1, 4, 4, 25>}]} {
    %c0 = arith.constant 0 : index
    %c0_0 = arith.constant 0 : index
    %c0_1 = arith.constant 0 : index
    %c0_2 = arith.constant 0 : index
    %0 = vector.load %arg1[%c0, %c0_0, %c0_1, %c0_2] : memref<1x18x18x4xf32, #tpu.memory_space<vmem>>, vector<1x16x16x4xf32>
    %1 = vector.shape_cast %0 : vector<1x16x16x4xf32> to vector<16x16x4xf32>
    %2 = vector.shape_cast %1 : vector<16x16x4xf32> to vector<256x4xf32>
    %c0_3 = arith.constant 0 : index
    %c0_4 = arith.constant 0 : index
    %c1 = arith.constant 1 : index
    %c0_5 = arith.constant 0 : index
    %3 = vector.load %arg1[%c0_3, %c0_4, %c1, %c0_5] : memref<1x18x18x4xf32, #tpu.memory_space<vmem>>, vector<1x16x16x4xf32>
    %4 = vector.shape_cast %3 : vector<1x16x16x4xf32> to vector<16x16x4xf32>
    %5 = vector.shape_cast %4 : vector<16x16x4xf32> to vector<256x4xf32>
    %c0_6 = arith.constant 0 : index
    %c0_7 = arith.constant 0 : index
    %c2 = arith.constant 2 : index
    %c0_8 = arith.constant 0 : index
    %6 = vector.load %arg1[%c0_6, %c0_7, %c2, %c0_8] : memref<1x18x18x4xf32, #tpu.memory_space<vmem>>, vector<1x16x16x4xf32>
    %7 = vector.shape_cast %6 : vector<1x16x16x4xf32> to vector<16x16x4xf32>
    %8 = vector.shape_cast %7 : vector<16x16x4xf32> to vector<256x4xf32>
    %c0_9 = arith.constant 0 : index
    %c1_10 = arith.constant 1 : index
    %c0_11 = arith.constant 0 : index
    %c0_12 = arith.constant 0 : index
    %9 = vector.load %arg1[%c0_9, %c1_10, %c0_11, %c0_12] : memref<1x18x18x4xf32, #tpu.memory_space<vmem>>, vector<1x16x16x4xf32>
    %10 = vector.shape_cast %9 : vector<1x16x16x4xf32> to vector<16x16x4xf32>
    %11 = vector.shape_cast %10 : vector<16x16x4xf32> to vector<256x4xf32>
    %c0_13 = arith.constant 0 : index
    %c1_14 = arith.constant 1 : index
    %c1_15 = arith.constant 1 : index
    %c0_16 = arith.constant 0 : index
    %12 = vector.load %arg1[%c0_13, %c1_14, %c1_15, %c0_16] : memref<1x18x18x4xf32, #tpu.memory_space<vmem>>, vector<1x16x16x4xf32>
    %13 = vector.shape_cast %12 : vector<1x16x16x4xf32> to vector<16x16x4xf32>
    %14 = vector.shape_cast %13 : vector<16x16x4xf32> to vector<256x4xf32>
    %c0_17 = arith.constant 0 : index
    %c1_18 = arith.constant 1 : index
    %c2_19 = arith.constant 2 : index
    %c0_20 = arith.constant 0 : index
    %15 = vector.load %arg1[%c0_17, %c1_18, %c2_19, %c0_20] : memref<1x18x18x4xf32, #tpu.memory_space<vmem>>, vector<1x16x16x4xf32>
    %16 = vector.shape_cast %15 : vector<1x16x16x4xf32> to vector<16x16x4xf32>
    %17 = vector.shape_cast %16 : vector<16x16x4xf32> to vector<256x4xf32>
    %c0_21 = arith.constant 0 : index
    %c2_22 = arith.constant 2 : index
    %c0_23 = arith.constant 0 : index
    %c0_24 = arith.constant 0 : index
    %18 = vector.load %arg1[%c0_21, %c2_22, %c0_23, %c0_24] : memref<1x18x18x4xf32, #tpu.memory_space<vmem>>, vector<1x16x16x4xf32>
    %19 = vector.shape_cast %18 : vector<1x16x16x4xf32> to vector<16x16x4xf32>
    %20 = vector.shape_cast %19 : vector<16x16x4xf32> to vector<256x4xf32>
    %c0_25 = arith.constant 0 : index
    %c2_26 = arith.constant 2 : index
    %c1_27 = arith.constant 1 : index
    %c0_28 = arith.constant 0 : index
    %21 = vector.load %arg1[%c0_25, %c2_26, %c1_27, %c0_28] : memref<1x18x18x4xf32, #tpu.memory_space<vmem>>, vector<1x16x16x4xf32>
    %22 = vector.shape_cast %21 : vector<1x16x16x4xf32> to vector<16x16x4xf32>
    %23 = vector.shape_cast %22 : vector<16x16x4xf32> to vector<256x4xf32>
    %c0_29 = arith.constant 0 : index
    %c2_30 = arith.constant 2 : index
    %c2_31 = arith.constant 2 : index
    %c0_32 = arith.constant 0 : index
    %24 = vector.load %arg1[%c0_29, %c2_30, %c2_31, %c0_32] : memref<1x18x18x4xf32, #tpu.memory_space<vmem>>, vector<1x16x16x4xf32>
    %25 = vector.shape_cast %24 : vector<1x16x16x4xf32> to vector<16x16x4xf32>
    %26 = vector.shape_cast %25 : vector<16x16x4xf32> to vector<256x4xf32>
    %27 = tpu.concatenate %2, %5, %8, %11, %14, %17, %20, %23, %26 in 1 : vector<256x4xf32>, vector<256x4xf32>, vector<256x4xf32>, vector<256x4xf32>, vector<256x4xf32>, vector<256x4xf32>, vector<256x4xf32>, vector<256x4xf32>, vector<256x4xf32> -> vector<256x36xf32>
    %c0_33 = arith.constant 0 : index
    %c0_34 = arith.constant 0 : index
    %28 = vector.load %arg2[%c0_33, %c0_34] : memref<36x8xf32, #tpu.memory_space<vmem>>, vector<36x8xf32>
    %c0_35 = arith.constant 0 : index
    %c0_36 = arith.constant 0 : index
    %29 = vector.load %arg3[%c0_35, %c0_36] : memref<1x8xf32, #tpu.memory_space<vmem>>, vector<1x8xf32>
    %cst = arith.constant dense<0.000000e+00> : vector<256x8xf32>
    %30 = tpu.matmul %27, %28, %cst {dimension_numbers = #tpu.dot_dimension_numbers<[1], [0], [0], [1], [0, 0, 1, 1], [], []>} : vector<256x36xf32>, vector<36x8xf32>, vector<256x8xf32> -> vector<256x8xf32>
    %31 = vector.broadcast %29 : vector<1x8xf32> to vector<256x8xf32>
    %32 = arith.addf %30, %31 : vector<256x8xf32>
    %cst_37 = arith.constant 0.000000e+00 : f32
    %33 = vector.broadcast %cst_37 : f32 to vector<256x8xf32>
    %34 = arith.cmpf ogt, %32, %33 : vector<256x8xf32>
    %cst_38 = arith.constant 1.000000e-01 : f32
    %35 = vector.broadcast %cst_38 : f32 to vector<256x8xf32>
    %36 = arith.mulf %35, %32 : vector<256x8xf32>
    %37 = arith.select %34, %32, %36 : vector<256x8xi1>, vector<256x8xf32>
    %38 = vector.shape_cast %37 : vector<256x8xf32> to vector<16x16x8xf32>
    %c0_39 = arith.constant 0 : index
    %c0_40 = arith.constant 0 : index
    %c0_41 = arith.constant 0 : index
    %39 = vector.load %arg13[%c0_39, %c0_40, %c0_41] : memref<16x16x8xf32, #tpu.memory_space<vmem>>, vector<16x16x8xf32>
    tpu.vector_store %arg13[%c0_39, %c0_40, %c0_41], %38 {strides = array<i32>} : memref<16x16x8xf32, #tpu.memory_space<vmem>>, vector<16x16x8xf32>,
    %c0_42 = arith.constant 0 : index
    %c0_43 = arith.constant 0 : index
    %c0_44 = arith.constant 0 : index
    %40 = tpu.strided_load %arg13[%c0_42, %c0_43, %c0_44] {strides = array<i32: 1, 2, 1>} : memref<16x16x8xf32, #tpu.memory_space<vmem>>, vector<16x8x8xf32>
    %c0_45 = arith.constant 0 : index
    %c1_46 = arith.constant 1 : index
    %c0_47 = arith.constant 0 : index
    %41 = tpu.strided_load %arg13[%c0_45, %c1_46, %c0_47] {strides = array<i32: 1, 2, 1>} : memref<16x16x8xf32, #tpu.memory_space<vmem>>, vector<16x8x8xf32>
    %42 = arith.maximumf %40, %41 : vector<16x8x8xf32>
    %43 = vector.shape_cast %42 : vector<16x8x8xf32> to vector<8x2x8x8xf32>
    %44 = vector.extract_strided_slice %43 {offsets = [0, 0, 0, 0], sizes = [8, 1, 8, 8], strides = [1, 1, 1, 1]} : vector<8x2x8x8xf32> to vector<8x1x8x8xf32>
    %45 = vector.shape_cast %44 : vector<8x1x8x8xf32> to vector<8x8x8xf32>
    %46 = vector.extract_strided_slice %43 {offsets = [0, 1, 0, 0], sizes = [8, 1, 8, 8], strides = [1, 1, 1, 1]} : vector<8x2x8x8xf32> to vector<8x1x8x8xf32>
    %47 = vector.shape_cast %46 : vector<8x1x8x8xf32> to vector<8x8x8xf32>
    %48 = arith.maximumf %45, %47 : vector<8x8x8xf32>
    %cst_48 = arith.constant 0.000000e+00 : f32
    %49 = vector.broadcast %cst_48 : f32 to vector<10x10x8xf32>
    %c0_49 = arith.constant 0 : index
    %c0_50 = arith.constant 0 : index
    %c0_51 = arith.constant 0 : index
    %50 = vector.load %arg14[%c0_49, %c0_50, %c0_51] : memref<10x10x8xf32, #tpu.memory_space<vmem>>, vector<10x10x8xf32>
    tpu.vector_store %arg14[%c0_49, %c0_50, %c0_51], %49 {strides = array<i32>} : memref<10x10x8xf32, #tpu.memory_space<vmem>>, vector<10x10x8xf32>,
    %c1_52 = arith.constant 1 : index
    %c1_53 = arith.constant 1 : index
    %c0_54 = arith.constant 0 : index
    %51 = vector.load %arg14[%c1_52, %c1_53, %c0_54] : memref<10x10x8xf32, #tpu.memory_space<vmem>>, vector<8x8x8xf32>
    tpu.vector_store %arg14[%c1_52, %c1_53, %c0_54], %48 {strides = array<i32>} : memref<10x10x8xf32, #tpu.memory_space<vmem>>, vector<8x8x8xf32>,
    %c0_55 = arith.constant 0 : index
    %c0_56 = arith.constant 0 : index
    %c0_57 = arith.constant 0 : index
    %52 = vector.load %arg14[%c0_55, %c0_56, %c0_57] : memref<10x10x8xf32, #tpu.memory_space<vmem>>, vector<8x8x8xf32>
    %53 = vector.shape_cast %52 : vector<8x8x8xf32> to vector<64x8xf32>
    %c0_58 = arith.constant 0 : index
    %c1_59 = arith.constant 1 : index
    %c0_60 = arith.constant 0 : index
    %54 = vector.load %arg14[%c0_58, %c1_59, %c0_60] : memref<10x10x8xf32, #tpu.memory_space<vmem>>, vector<8x8x8xf32>
    %55 = vector.shape_cast %54 : vector<8x8x8xf32> to vector<64x8xf32>
    %c0_61 = arith.constant 0 : index
    %c2_62 = arith.constant 2 : index
    %c0_63 = arith.constant 0 : index
    %56 = vector.load %arg14[%c0_61, %c2_62, %c0_63] : memref<10x10x8xf32, #tpu.memory_space<vmem>>, vector<8x8x8xf32>
    %57 = vector.shape_cast %56 : vector<8x8x8xf32> to vector<64x8xf32>
    %c1_64 = arith.constant 1 : index
    %c0_65 = arith.constant 0 : index
    %c0_66 = arith.constant 0 : index
    %58 = vector.load %arg14[%c1_64, %c0_65, %c0_66] : memref<10x10x8xf32, #tpu.memory_space<vmem>>, vector<8x8x8xf32>
    %59 = vector.shape_cast %58 : vector<8x8x8xf32> to vector<64x8xf32>
    %c1_67 = arith.constant 1 : index
    %c1_68 = arith.constant 1 : index
    %c0_69 = arith.constant 0 : index
    %60 = vector.load %arg14[%c1_67, %c1_68, %c0_69] : memref<10x10x8xf32, #tpu.memory_space<vmem>>, vector<8x8x8xf32>
    %61 = vector.shape_cast %60 : vector<8x8x8xf32> to vector<64x8xf32>
    %c1_70 = arith.constant 1 : index
    %c2_71 = arith.constant 2 : index
    %c0_72 = arith.constant 0 : index
    %62 = vector.load %arg14[%c1_70, %c2_71, %c0_72] : memref<10x10x8xf32, #tpu.memory_space<vmem>>, vector<8x8x8xf32>
    %63 = vector.shape_cast %62 : vector<8x8x8xf32> to vector<64x8xf32>
    %c2_73 = arith.constant 2 : index
    %c0_74 = arith.constant 0 : index
    %c0_75 = arith.constant 0 : index
    %64 = vector.load %arg14[%c2_73, %c0_74, %c0_75] : memref<10x10x8xf32, #tpu.memory_space<vmem>>, vector<8x8x8xf32>
    %65 = vector.shape_cast %64 : vector<8x8x8xf32> to vector<64x8xf32>
    %c2_76 = arith.constant 2 : index
    %c1_77 = arith.constant 1 : index
    %c0_78 = arith.constant 0 : index
    %66 = vector.load %arg14[%c2_76, %c1_77, %c0_78] : memref<10x10x8xf32, #tpu.memory_space<vmem>>, vector<8x8x8xf32>
    %67 = vector.shape_cast %66 : vector<8x8x8xf32> to vector<64x8xf32>
    %c2_79 = arith.constant 2 : index
    %c2_80 = arith.constant 2 : index
    %c0_81 = arith.constant 0 : index
    %68 = vector.load %arg14[%c2_79, %c2_80, %c0_81] : memref<10x10x8xf32, #tpu.memory_space<vmem>>, vector<8x8x8xf32>
    %69 = vector.shape_cast %68 : vector<8x8x8xf32> to vector<64x8xf32>
    %70 = tpu.concatenate %53, %55, %57, %59, %61, %63, %65, %67, %69 in 1 : vector<64x8xf32>, vector<64x8xf32>, vector<64x8xf32>, vector<64x8xf32>, vector<64x8xf32>, vector<64x8xf32>, vector<64x8xf32>, vector<64x8xf32>, vector<64x8xf32> -> vector<64x72xf32>
    %c0_82 = arith.constant 0 : index
    %c0_83 = arith.constant 0 : index
    %71 = vector.load %arg4[%c0_82, %c0_83] : memref<72x16xf32, #tpu.memory_space<vmem>>, vector<72x16xf32>
    %c0_84 = arith.constant 0 : index
    %c0_85 = arith.constant 0 : index
    %72 = vector.load %arg5[%c0_84, %c0_85] : memref<1x16xf32, #tpu.memory_space<vmem>>, vector<1x16xf32>
    %cst_86 = arith.constant dense<0.000000e+00> : vector<64x16xf32>
    %73 = tpu.matmul %70, %71, %cst_86 {dimension_numbers = #tpu.dot_dimension_numbers<[1], [0], [0], [1], [0, 0, 1, 1], [], []>} : vector<64x72xf32>, vector<72x16xf32>, vector<64x16xf32> -> vector<64x16xf32>
    %74 = vector.broadcast %72 : vector<1x16xf32> to vector<64x16xf32>
    %75 = arith.addf %73, %74 : vector<64x16xf32>
    %cst_87 = arith.constant 0.000000e+00 : f32
    %76 = vector.broadcast %cst_87 : f32 to vector<64x16xf32>
    %77 = arith.cmpf ogt, %75, %76 : vector<64x16xf32>
    %cst_88 = arith.constant 1.000000e-01 : f32
    %78 = vector.broadcast %cst_88 : f32 to vector<64x16xf32>
    %79 = arith.mulf %78, %75 : vector<64x16xf32>
    %80 = arith.select %77, %75, %79 : vector<64x16xi1>, vector<64x16xf32>
    %81 = vector.shape_cast %80 : vector<64x16xf32> to vector<8x8x16xf32>
    %c0_89 = arith.constant 0 : index
    %c0_90 = arith.constant 0 : index
    %c0_91 = arith.constant 0 : index
    %82 = vector.load %arg15[%c0_89, %c0_90, %c0_91] : memref<8x8x16xf32, #tpu.memory_space<vmem>>, vector<8x8x16xf32>
    tpu.vector_store %arg15[%c0_89, %c0_90, %c0_91], %81 {strides = array<i32>} : memref<8x8x16xf32, #tpu.memory_space<vmem>>, vector<8x8x16xf32>,
    %c0_92 = arith.constant 0 : index
    %c0_93 = arith.constant 0 : index
    %c0_94 = arith.constant 0 : index
    %83 = tpu.strided_load %arg15[%c0_92, %c0_93, %c0_94] {strides = array<i32: 1, 2, 1>} : memref<8x8x16xf32, #tpu.memory_space<vmem>>, vector<8x4x16xf32>
    %c0_95 = arith.constant 0 : index
    %c1_96 = arith.constant 1 : index
    %c0_97 = arith.constant 0 : index
    %84 = tpu.strided_load %arg15[%c0_95, %c1_96, %c0_97] {strides = array<i32: 1, 2, 1>} : memref<8x8x16xf32, #tpu.memory_space<vmem>>, vector<8x4x16xf32>
    %85 = arith.maximumf %83, %84 : vector<8x4x16xf32>
    %86 = vector.shape_cast %85 : vector<8x4x16xf32> to vector<4x2x4x16xf32>
    %87 = vector.extract_strided_slice %86 {offsets = [0, 0, 0, 0], sizes = [4, 1, 4, 16], strides = [1, 1, 1, 1]} : vector<4x2x4x16xf32> to vector<4x1x4x16xf32>
    %88 = vector.shape_cast %87 : vector<4x1x4x16xf32> to vector<4x4x16xf32>
    %89 = vector.extract_strided_slice %86 {offsets = [0, 1, 0, 0], sizes = [4, 1, 4, 16], strides = [1, 1, 1, 1]} : vector<4x2x4x16xf32> to vector<4x1x4x16xf32>
    %90 = vector.shape_cast %89 : vector<4x1x4x16xf32> to vector<4x4x16xf32>
    %91 = arith.maximumf %88, %90 : vector<4x4x16xf32>
    %c1_98 = arith.constant 1 : index
    %c1_99 = arith.constant 1 : index
    %c0_100 = arith.constant 0 : index
    %92 = vector.load %arg14[%c1_98, %c1_99, %c0_100] : memref<10x10x8xf32, #tpu.memory_space<vmem>>, vector<8x8x8xf32>
    %93 = vector.shape_cast %92 : vector<8x8x8xf32> to vector<64x8xf32>
    %c0_101 = arith.constant 0 : index
    %c0_102 = arith.constant 0 : index
    %94 = vector.load %arg6[%c0_101, %c0_102] : memref<8x4xf32, #tpu.memory_space<vmem>>, vector<8x4xf32>
    %c0_103 = arith.constant 0 : index
    %c0_104 = arith.constant 0 : index
    %95 = vector.load %arg7[%c0_103, %c0_104] : memref<1x4xf32, #tpu.memory_space<vmem>>, vector<1x4xf32>
    %cst_105 = arith.constant dense<0.000000e+00> : vector<64x4xf32>
    %96 = tpu.matmul %93, %94, %cst_105 {dimension_numbers = #tpu.dot_dimension_numbers<[1], [0], [0], [1], [0, 0, 1, 1], [], []>} : vector<64x8xf32>, vector<8x4xf32>, vector<64x4xf32> -> vector<64x4xf32>
    %97 = vector.broadcast %95 : vector<1x4xf32> to vector<64x4xf32>
    %98 = arith.addf %96, %97 : vector<64x4xf32>
    %cst_106 = arith.constant 0.000000e+00 : f32
    %99 = vector.broadcast %cst_106 : f32 to vector<64x4xf32>
    %100 = arith.cmpf ogt, %98, %99 : vector<64x4xf32>
    %cst_107 = arith.constant 1.000000e-01 : f32
    %101 = vector.broadcast %cst_107 : f32 to vector<64x4xf32>
    %102 = arith.mulf %101, %98 : vector<64x4xf32>
    %103 = arith.select %100, %98, %102 : vector<64x4xi1>, vector<64x4xf32>
    %104 = vector.shape_cast %103 : vector<64x4xf32> to vector<8x8x4xf32>
    %c0_108 = arith.constant 0 : index
    %c0_109 = arith.constant 0 : index
    %c0_110 = arith.constant 0 : index
    %105 = vector.load %arg16[%c0_108, %c0_109, %c0_110] : memref<8x8x4xf32, #tpu.memory_space<vmem>>, vector<8x8x4xf32>
    tpu.vector_store %arg16[%c0_108, %c0_109, %c0_110], %104 {strides = array<i32>} : memref<8x8x4xf32, #tpu.memory_space<vmem>>, vector<8x8x4xf32>,
    %c0_111 = arith.constant 0 : index
    %c0_112 = arith.constant 0 : index
    %c0_113 = arith.constant 0 : index
    %106 = tpu.strided_load %arg16[%c0_111, %c0_112, %c0_113] {strides = array<i32: 1, 2, 1>} : memref<8x8x4xf32, #tpu.memory_space<vmem>>, vector<8x4x4xf32>
    %107 = vector.shape_cast %106 : vector<8x4x4xf32> to vector<4x2x4x4xf32>
    %c0_114 = arith.constant 0 : index
    %c1_115 = arith.constant 1 : index
    %c0_116 = arith.constant 0 : index
    %108 = tpu.strided_load %arg16[%c0_114, %c1_115, %c0_116] {strides = array<i32: 1, 2, 1>} : memref<8x8x4xf32, #tpu.memory_space<vmem>>, vector<8x4x4xf32>
    %109 = vector.shape_cast %108 : vector<8x4x4xf32> to vector<4x2x4x4xf32>
    %110 = vector.extract_strided_slice %107 {offsets = [0, 0, 0, 0], sizes = [4, 1, 4, 4], strides = [1, 1, 1, 1]} : vector<4x2x4x4xf32> to vector<4x1x4x4xf32>
    %111 = vector.shape_cast %110 : vector<4x1x4x4xf32> to vector<4x4x4xf32>
    %112 = vector.extract_strided_slice %109 {offsets = [0, 0, 0, 0], sizes = [4, 1, 4, 4], strides = [1, 1, 1, 1]} : vector<4x2x4x4xf32> to vector<4x1x4x4xf32>
    %113 = vector.shape_cast %112 : vector<4x1x4x4xf32> to vector<4x4x4xf32>
    %114 = vector.extract_strided_slice %107 {offsets = [0, 1, 0, 0], sizes = [4, 1, 4, 4], strides = [1, 1, 1, 1]} : vector<4x2x4x4xf32> to vector<4x1x4x4xf32>
    %115 = vector.shape_cast %114 : vector<4x1x4x4xf32> to vector<4x4x4xf32>
    %116 = vector.extract_strided_slice %109 {offsets = [0, 1, 0, 0], sizes = [4, 1, 4, 4], strides = [1, 1, 1, 1]} : vector<4x2x4x4xf32> to vector<4x1x4x4xf32>
    %117 = vector.shape_cast %116 : vector<4x1x4x4xf32> to vector<4x4x4xf32>
    %118 = tpu.concatenate %111, %113, %115, %117 in 2 : vector<4x4x4xf32>, vector<4x4x4xf32>, vector<4x4x4xf32>, vector<4x4x4xf32> -> vector<4x4x16xf32>
    %cst_117 = arith.constant 0.000000e+00 : f32
    %119 = vector.broadcast %cst_117 : f32 to vector<6x6x32xf32>
    %c0_118 = arith.constant 0 : index
    %c0_119 = arith.constant 0 : index
    %c0_120 = arith.constant 0 : index
    %120 = vector.load %arg17[%c0_118, %c0_119, %c0_120] : memref<6x6x32xf32, #tpu.memory_space<vmem>>, vector<6x6x32xf32>
    tpu.vector_store %arg17[%c0_118, %c0_119, %c0_120], %119 {strides = array<i32>} : memref<6x6x32xf32, #tpu.memory_space<vmem>>, vector<6x6x32xf32>,
    %121 = tpu.concatenate %118, %91 in 2 : vector<4x4x16xf32>, vector<4x4x16xf32> -> vector<4x4x32xf32>
    %c1_121 = arith.constant 1 : index
    %c1_122 = arith.constant 1 : index
    %c0_123 = arith.constant 0 : index
    %122 = vector.load %arg17[%c1_121, %c1_122, %c0_123] : memref<6x6x32xf32, #tpu.memory_space<vmem>>, vector<4x4x32xf32>
    tpu.vector_store %arg17[%c1_121, %c1_122, %c0_123], %121 {strides = array<i32>} : memref<6x6x32xf32, #tpu.memory_space<vmem>>, vector<4x4x32xf32>,
    %c0_124 = arith.constant 0 : index
    %c0_125 = arith.constant 0 : index
    %123 = vector.load %arg8[%c0_124, %c0_125] : memref<288x32xf32, #tpu.memory_space<vmem>>, vector<288x32xf32>
    %c0_126 = arith.constant 0 : index
    %c0_127 = arith.constant 0 : index
    %124 = vector.load %arg9[%c0_126, %c0_127] : memref<1x32xf32, #tpu.memory_space<vmem>>, vector<1x32xf32>
    %c0_128 = arith.constant 0 : index
    %c0_129 = arith.constant 0 : index
    %125 = vector.load %arg10[%c0_128, %c0_129] : memref<32x25xf32, #tpu.memory_space<vmem>>, vector<32x25xf32>
    %c0_130 = arith.constant 0 : index
    %c0_131 = arith.constant 0 : index
    %126 = vector.load %arg11[%c0_130, %c0_131] : memref<1x25xf32, #tpu.memory_space<vmem>>, vector<1x25xf32>
    %c0_132 = arith.constant 0 : index
    %c0_133 = arith.constant 0 : index
    %c0_134 = arith.constant 0 : index
    %127 = vector.load %arg17[%c0_132, %c0_133, %c0_134] : memref<6x6x32xf32, #tpu.memory_space<vmem>>, vector<1x4x32xf32>
    %128 = vector.shape_cast %127 : vector<1x4x32xf32> to vector<4x32xf32>
    %c0_135 = arith.constant 0 : index
    %c1_136 = arith.constant 1 : index
    %c0_137 = arith.constant 0 : index
    %129 = vector.load %arg17[%c0_135, %c1_136, %c0_137] : memref<6x6x32xf32, #tpu.memory_space<vmem>>, vector<1x4x32xf32>
    %130 = vector.shape_cast %129 : vector<1x4x32xf32> to vector<4x32xf32>
    %c0_138 = arith.constant 0 : index
    %c2_139 = arith.constant 2 : index
    %c0_140 = arith.constant 0 : index
    %131 = vector.load %arg17[%c0_138, %c2_139, %c0_140] : memref<6x6x32xf32, #tpu.memory_space<vmem>>, vector<1x4x32xf32>
    %132 = vector.shape_cast %131 : vector<1x4x32xf32> to vector<4x32xf32>
    %c1_141 = arith.constant 1 : index
    %c0_142 = arith.constant 0 : index
    %c0_143 = arith.constant 0 : index
    %133 = vector.load %arg17[%c1_141, %c0_142, %c0_143] : memref<6x6x32xf32, #tpu.memory_space<vmem>>, vector<1x4x32xf32>
    %134 = vector.shape_cast %133 : vector<1x4x32xf32> to vector<4x32xf32>
    %c1_144 = arith.constant 1 : index
    %c1_145 = arith.constant 1 : index
    %c0_146 = arith.constant 0 : index
    %135 = vector.load %arg17[%c1_144, %c1_145, %c0_146] : memref<6x6x32xf32, #tpu.memory_space<vmem>>, vector<1x4x32xf32>
    %136 = vector.shape_cast %135 : vector<1x4x32xf32> to vector<4x32xf32>
    %c1_147 = arith.constant 1 : index
    %c2_148 = arith.constant 2 : index
    %c0_149 = arith.constant 0 : index
    %137 = vector.load %arg17[%c1_147, %c2_148, %c0_149] : memref<6x6x32xf32, #tpu.memory_space<vmem>>, vector<1x4x32xf32>
    %138 = vector.shape_cast %137 : vector<1x4x32xf32> to vector<4x32xf32>
    %c2_150 = arith.constant 2 : index
    %c0_151 = arith.constant 0 : index
    %c0_152 = arith.constant 0 : index
    %139 = vector.load %arg17[%c2_150, %c0_151, %c0_152] : memref<6x6x32xf32, #tpu.memory_space<vmem>>, vector<1x4x32xf32>
    %140 = vector.shape_cast %139 : vector<1x4x32xf32> to vector<4x32xf32>
    %c2_153 = arith.constant 2 : index
    %c1_154 = arith.constant 1 : index
    %c0_155 = arith.constant 0 : index
    %141 = vector.load %arg17[%c2_153, %c1_154, %c0_155] : memref<6x6x32xf32, #tpu.memory_space<vmem>>, vector<1x4x32xf32>
    %142 = vector.shape_cast %141 : vector<1x4x32xf32> to vector<4x32xf32>
    %c2_156 = arith.constant 2 : index
    %c2_157 = arith.constant 2 : index
    %c0_158 = arith.constant 0 : index
    %143 = vector.load %arg17[%c2_156, %c2_157, %c0_158] : memref<6x6x32xf32, #tpu.memory_space<vmem>>, vector<1x4x32xf32>
    %144 = vector.shape_cast %143 : vector<1x4x32xf32> to vector<4x32xf32>
    %145 = tpu.concatenate %128, %130, %132, %134, %136, %138, %140, %142, %144 in 1 : vector<4x32xf32>, vector<4x32xf32>, vector<4x32xf32>, vector<4x32xf32>, vector<4x32xf32>, vector<4x32xf32>, vector<4x32xf32>, vector<4x32xf32>, vector<4x32xf32> -> vector<4x288xf32>
    %cst_159 = arith.constant dense<0.000000e+00> : vector<4x32xf32>
    %146 = tpu.matmul %145, %123, %cst_159 {dimension_numbers = #tpu.dot_dimension_numbers<[1], [0], [0], [1], [0, 0, 1, 1], [], []>} : vector<4x288xf32>, vector<288x32xf32>, vector<4x32xf32> -> vector<4x32xf32>
    %147 = vector.broadcast %124 : vector<1x32xf32> to vector<4x32xf32>
    %148 = arith.addf %146, %147 : vector<4x32xf32>
    %cst_160 = arith.constant 0.000000e+00 : f32
    %149 = vector.broadcast %cst_160 : f32 to vector<4x32xf32>
    %150 = arith.cmpf ogt, %148, %149 : vector<4x32xf32>
    %cst_161 = arith.constant 1.000000e-01 : f32
    %151 = vector.broadcast %cst_161 : f32 to vector<4x32xf32>
    %152 = arith.mulf %151, %148 : vector<4x32xf32>
    %153 = arith.select %150, %148, %152 : vector<4x32xi1>, vector<4x32xf32>
    %cst_162 = arith.constant dense<0.000000e+00> : vector<4x25xf32>
    %154 = tpu.matmul %153, %125, %cst_162 {dimension_numbers = #tpu.dot_dimension_numbers<[1], [0], [0], [1], [0, 0, 1, 1], [], []>} : vector<4x32xf32>, vector<32x25xf32>, vector<4x25xf32> -> vector<4x25xf32>
    %155 = vector.broadcast %126 : vector<1x25xf32> to vector<4x25xf32>
    %156 = arith.addf %154, %155 : vector<4x25xf32>
    %c0_163 = arith.constant 0 : index
    %c0_164 = arith.constant 0 : index
    %c0_165 = arith.constant 0 : index
    %c0_166 = arith.constant 0 : index
    %157 = vector.load %arg12[%c0_163, %c0_164, %c0_165, %c0_166] : memref<1x4x4x25xf32, #tpu.memory_space<vmem>>, vector<1x1x4x25xf32>
    %158 = vector.shape_cast %157 : vector<1x1x4x25xf32> to vector<4x25xf32>
    %159 = vector.shape_cast %156 : vector<4x25xf32> to vector<1x1x4x25xf32>
    tpu.vector_store %arg12[%c0_163, %c0_164, %c0_165, %c0_166], %159 {strides = array<i32>} : memref<1x4x4x25xf32, #tpu.memory_space<vmem>>, vector<1x1x4x25xf32>,
    %c1_167 = arith.constant 1 : index
    %c0_168 = arith.constant 0 : index
    %c0_169 = arith.constant 0 : index
    %160 = vector.load %arg17[%c1_167, %c0_168, %c0_169] : memref<6x6x32xf32, #tpu.memory_space<vmem>>, vector<1x4x32xf32>
    %161 = vector.shape_cast %160 : vector<1x4x32xf32> to vector<4x32xf32>
    %c1_170 = arith.constant 1 : index
    %c1_171 = arith.constant 1 : index
    %c0_172 = arith.constant 0 : index
    %162 = vector.load %arg17[%c1_170, %c1_171, %c0_172] : memref<6x6x32xf32, #tpu.memory_space<vmem>>, vector<1x4x32xf32>
    %163 = vector.shape_cast %162 : vector<1x4x32xf32> to vector<4x32xf32>
    %c1_173 = arith.constant 1 : index
    %c2_174 = arith.constant 2 : index
    %c0_175 = arith.constant 0 : index
    %164 = vector.load %arg17[%c1_173, %c2_174, %c0_175] : memref<6x6x32xf32, #tpu.memory_space<vmem>>, vector<1x4x32xf32>
    %165 = vector.shape_cast %164 : vector<1x4x32xf32> to vector<4x32xf32>
    %c2_176 = arith.constant 2 : index
    %c0_177 = arith.constant 0 : index
    %c0_178 = arith.constant 0 : index
    %166 = vector.load %arg17[%c2_176, %c0_177, %c0_178] : memref<6x6x32xf32, #tpu.memory_space<vmem>>, vector<1x4x32xf32>
    %167 = vector.shape_cast %166 : vector<1x4x32xf32> to vector<4x32xf32>
    %c2_179 = arith.constant 2 : index
    %c1_180 = arith.constant 1 : index
    %c0_181 = arith.constant 0 : index
    %168 = vector.load %arg17[%c2_179, %c1_180, %c0_181] : memref<6x6x32xf32, #tpu.memory_space<vmem>>, vector<1x4x32xf32>
    %169 = vector.shape_cast %168 : vector<1x4x32xf32> to vector<4x32xf32>
    %c2_182 = arith.constant 2 : index
    %c2_183 = arith.constant 2 : index
    %c0_184 = arith.constant 0 : index
    %170 = vector.load %arg17[%c2_182, %c2_183, %c0_184] : memref<6x6x32xf32, #tpu.memory_space<vmem>>, vector<1x4x32xf32>
    %171 = vector.shape_cast %170 : vector<1x4x32xf32> to vector<4x32xf32>
    %c3 = arith.constant 3 : index
    %c0_185 = arith.constant 0 : index
    %c0_186 = arith.constant 0 : index
    %172 = vector.load %arg17[%c3, %c0_185, %c0_186] : memref<6x6x32xf32, #tpu.memory_space<vmem>>, vector<1x4x32xf32>
    %173 = vector.shape_cast %172 : vector<1x4x32xf32> to vector<4x32xf32>
    %c3_187 = arith.constant 3 : index
    %c1_188 = arith.constant 1 : index
    %c0_189 = arith.constant 0 : index
    %174 = vector.load %arg17[%c3_187, %c1_188, %c0_189] : memref<6x6x32xf32, #tpu.memory_space<vmem>>, vector<1x4x32xf32>
    %175 = vector.shape_cast %174 : vector<1x4x32xf32> to vector<4x32xf32>
    %c3_190 = arith.constant 3 : index
    %c2_191 = arith.constant 2 : index
    %c0_192 = arith.constant 0 : index
    %176 = vector.load %arg17[%c3_190, %c2_191, %c0_192] : memref<6x6x32xf32, #tpu.memory_space<vmem>>, vector<1x4x32xf32>
    %177 = vector.shape_cast %176 : vector<1x4x32xf32> to vector<4x32xf32>
    %178 = tpu.concatenate %161, %163, %165, %167, %169, %171, %173, %175, %177 in 1 : vector<4x32xf32>, vector<4x32xf32>, vector<4x32xf32>, vector<4x32xf32>, vector<4x32xf32>, vector<4x32xf32>, vector<4x32xf32>, vector<4x32xf32>, vector<4x32xf32> -> vector<4x288xf32>
    %cst_193 = arith.constant dense<0.000000e+00> : vector<4x32xf32>
    %179 = tpu.matmul %178, %123, %cst_193 {dimension_numbers = #tpu.dot_dimension_numbers<[1], [0], [0], [1], [0, 0, 1, 1], [], []>} : vector<4x288xf32>, vector<288x32xf32>, vector<4x32xf32> -> vector<4x32xf32>
    %180 = vector.broadcast %124 : vector<1x32xf32> to vector<4x32xf32>
    %181 = arith.addf %179, %180 : vector<4x32xf32>
    %cst_194 = arith.constant 0.000000e+00 : f32
    %182 = vector.broadcast %cst_194 : f32 to vector<4x32xf32>
    %183 = arith.cmpf ogt, %181, %182 : vector<4x32xf32>
    %cst_195 = arith.constant 1.000000e-01 : f32
    %184 = vector.broadcast %cst_195 : f32 to vector<4x32xf32>
    %185 = arith.mulf %184, %181 : vector<4x32xf32>
    %186 = arith.select %183, %181, %185 : vector<4x32xi1>, vector<4x32xf32>
    %cst_196 = arith.constant dense<0.000000e+00> : vector<4x25xf32>
    %187 = tpu.matmul %186, %125, %cst_196 {dimension_numbers = #tpu.dot_dimension_numbers<[1], [0], [0], [1], [0, 0, 1, 1], [], []>} : vector<4x32xf32>, vector<32x25xf32>, vector<4x25xf32> -> vector<4x25xf32>
    %188 = vector.broadcast %126 : vector<1x25xf32> to vector<4x25xf32>
    %189 = arith.addf %187, %188 : vector<4x25xf32>
    %c0_197 = arith.constant 0 : index
    %c1_198 = arith.constant 1 : index
    %c0_199 = arith.constant 0 : index
    %c0_200 = arith.constant 0 : index
    %190 = vector.load %arg12[%c0_197, %c1_198, %c0_199, %c0_200] : memref<1x4x4x25xf32, #tpu.memory_space<vmem>>, vector<1x1x4x25xf32>
    %191 = vector.shape_cast %190 : vector<1x1x4x25xf32> to vector<4x25xf32>
    %192 = vector.shape_cast %189 : vector<4x25xf32> to vector<1x1x4x25xf32>
    tpu.vector_store %arg12[%c0_197, %c1_198, %c0_199, %c0_200], %192 {strides = array<i32>} : memref<1x4x4x25xf32, #tpu.memory_space<vmem>>, vector<1x1x4x25xf32>,
    %c2_201 = arith.constant 2 : index
    %c0_202 = arith.constant 0 : index
    %c0_203 = arith.constant 0 : index
    %193 = vector.load %arg17[%c2_201, %c0_202, %c0_203] : memref<6x6x32xf32, #tpu.memory_space<vmem>>, vector<1x4x32xf32>
    %194 = vector.shape_cast %193 : vector<1x4x32xf32> to vector<4x32xf32>
    %c2_204 = arith.constant 2 : index
    %c1_205 = arith.constant 1 : index
    %c0_206 = arith.constant 0 : index
    %195 = vector.load %arg17[%c2_204, %c1_205, %c0_206] : memref<6x6x32xf32, #tpu.memory_space<vmem>>, vector<1x4x32xf32>
    %196 = vector.shape_cast %195 : vector<1x4x32xf32> to vector<4x32xf32>
    %c2_207 = arith.constant 2 : index
    %c2_208 = arith.constant 2 : index
    %c0_209 = arith.constant 0 : index
    %197 = vector.load %arg17[%c2_207, %c2_208, %c0_209] : memref<6x6x32xf32, #tpu.memory_space<vmem>>, vector<1x4x32xf32>
    %198 = vector.shape_cast %197 : vector<1x4x32xf32> to vector<4x32xf32>
    %c3_210 = arith.constant 3 : index
    %c0_211 = arith.constant 0 : index
    %c0_212 = arith.constant 0 : index
    %199 = vector.load %arg17[%c3_210, %c0_211, %c0_212] : memref<6x6x32xf32, #tpu.memory_space<vmem>>, vector<1x4x32xf32>
    %200 = vector.shape_cast %199 : vector<1x4x32xf32> to vector<4x32xf32>
    %c3_213 = arith.constant 3 : index
    %c1_214 = arith.constant 1 : index
    %c0_215 = arith.constant 0 : index
    %201 = vector.load %arg17[%c3_213, %c1_214, %c0_215] : memref<6x6x32xf32, #tpu.memory_space<vmem>>, vector<1x4x32xf32>
    %202 = vector.shape_cast %201 : vector<1x4x32xf32> to vector<4x32xf32>
    %c3_216 = arith.constant 3 : index
    %c2_217 = arith.constant 2 : index
    %c0_218 = arith.constant 0 : index
    %203 = vector.load %arg17[%c3_216, %c2_217, %c0_218] : memref<6x6x32xf32, #tpu.memory_space<vmem>>, vector<1x4x32xf32>
    %204 = vector.shape_cast %203 : vector<1x4x32xf32> to vector<4x32xf32>
    %c4 = arith.constant 4 : index
    %c0_219 = arith.constant 0 : index
    %c0_220 = arith.constant 0 : index
    %205 = vector.load %arg17[%c4, %c0_219, %c0_220] : memref<6x6x32xf32, #tpu.memory_space<vmem>>, vector<1x4x32xf32>
    %206 = vector.shape_cast %205 : vector<1x4x32xf32> to vector<4x32xf32>
    %c4_221 = arith.constant 4 : index
    %c1_222 = arith.constant 1 : index
    %c0_223 = arith.constant 0 : index
    %207 = vector.load %arg17[%c4_221, %c1_222, %c0_223] : memref<6x6x32xf32, #tpu.memory_space<vmem>>, vector<1x4x32xf32>
    %208 = vector.shape_cast %207 : vector<1x4x32xf32> to vector<4x32xf32>
    %c4_224 = arith.constant 4 : index
    %c2_225 = arith.constant 2 : index
    %c0_226 = arith.constant 0 : index
    %209 = vector.load %arg17[%c4_224, %c2_225, %c0_226] : memref<6x6x32xf32, #tpu.memory_space<vmem>>, vector<1x4x32xf32>
    %210 = vector.shape_cast %209 : vector<1x4x32xf32> to vector<4x32xf32>
    %211 = tpu.concatenate %194, %196, %198, %200, %202, %204, %206, %208, %210 in 1 : vector<4x32xf32>, vector<4x32xf32>, vector<4x32xf32>, vector<4x32xf32>, vector<4x32xf32>, vector<4x32xf32>, vector<4x32xf32>, vector<4x32xf32>, vector<4x32xf32> -> vector<4x288xf32>
    %cst_227 = arith.constant dense<0.000000e+00> : vector<4x32xf32>
    %212 = tpu.matmul %211, %123, %cst_227 {dimension_numbers = #tpu.dot_dimension_numbers<[1], [0], [0], [1], [0, 0, 1, 1], [], []>} : vector<4x288xf32>, vector<288x32xf32>, vector<4x32xf32> -> vector<4x32xf32>
    %213 = vector.broadcast %124 : vector<1x32xf32> to vector<4x32xf32>
    %214 = arith.addf %212, %213 : vector<4x32xf32>
    %cst_228 = arith.constant 0.000000e+00 : f32
    %215 = vector.broadcast %cst_228 : f32 to vector<4x32xf32>
    %216 = arith.cmpf ogt, %214, %215 : vector<4x32xf32>
    %cst_229 = arith.constant 1.000000e-01 : f32
    %217 = vector.broadcast %cst_229 : f32 to vector<4x32xf32>
    %218 = arith.mulf %217, %214 : vector<4x32xf32>
    %219 = arith.select %216, %214, %218 : vector<4x32xi1>, vector<4x32xf32>
    %cst_230 = arith.constant dense<0.000000e+00> : vector<4x25xf32>
    %220 = tpu.matmul %219, %125, %cst_230 {dimension_numbers = #tpu.dot_dimension_numbers<[1], [0], [0], [1], [0, 0, 1, 1], [], []>} : vector<4x32xf32>, vector<32x25xf32>, vector<4x25xf32> -> vector<4x25xf32>
    %221 = vector.broadcast %126 : vector<1x25xf32> to vector<4x25xf32>
    %222 = arith.addf %220, %221 : vector<4x25xf32>
    %c0_231 = arith.constant 0 : index
    %c2_232 = arith.constant 2 : index
    %c0_233 = arith.constant 0 : index
    %c0_234 = arith.constant 0 : index
    %223 = vector.load %arg12[%c0_231, %c2_232, %c0_233, %c0_234] : memref<1x4x4x25xf32, #tpu.memory_space<vmem>>, vector<1x1x4x25xf32>
    %224 = vector.shape_cast %223 : vector<1x1x4x25xf32> to vector<4x25xf32>
    %225 = vector.shape_cast %222 : vector<4x25xf32> to vector<1x1x4x25xf32>
    tpu.vector_store %arg12[%c0_231, %c2_232, %c0_233, %c0_234], %225 {strides = array<i32>} : memref<1x4x4x25xf32, #tpu.memory_space<vmem>>, vector<1x1x4x25xf32>,
    %c3_235 = arith.constant 3 : index
    %c0_236 = arith.constant 0 : index
    %c0_237 = arith.constant 0 : index
    %226 = vector.load %arg17[%c3_235, %c0_236, %c0_237] : memref<6x6x32xf32, #tpu.memory_space<vmem>>, vector<1x4x32xf32>
    %227 = vector.shape_cast %226 : vector<1x4x32xf32> to vector<4x32xf32>
    %c3_238 = arith.constant 3 : index
    %c1_239 = arith.constant 1 : index
    %c0_240 = arith.constant 0 : index
    %228 = vector.load %arg17[%c3_238, %c1_239, %c0_240] : memref<6x6x32xf32, #tpu.memory_space<vmem>>, vector<1x4x32xf32>
    %229 = vector.shape_cast %228 : vector<1x4x32xf32> to vector<4x32xf32>
    %c3_241 = arith.constant 3 : index
    %c2_242 = arith.constant 2 : index
    %c0_243 = arith.constant 0 : index
    %230 = vector.load %arg17[%c3_241, %c2_242, %c0_243] : memref<6x6x32xf32, #tpu.memory_space<vmem>>, vector<1x4x32xf32>
    %231 = vector.shape_cast %230 : vector<1x4x32xf32> to vector<4x32xf32>
    %c4_244 = arith.constant 4 : index
    %c0_245 = arith.constant 0 : index
    %c0_246 = arith.constant 0 : index
    %232 = vector.load %arg17[%c4_244, %c0_245, %c0_246] : memref<6x6x32xf32, #tpu.memory_space<vmem>>, vector<1x4x32xf32>
    %233 = vector.shape_cast %232 : vector<1x4x32xf32> to vector<4x32xf32>
    %c4_247 = arith.constant 4 : index
    %c1_248 = arith.constant 1 : index
    %c0_249 = arith.constant 0 : index
    %234 = vector.load %arg17[%c4_247, %c1_248, %c0_249] : memref<6x6x32xf32, #tpu.memory_space<vmem>>, vector<1x4x32xf32>
    %235 = vector.shape_cast %234 : vector<1x4x32xf32> to vector<4x32xf32>
    %c4_250 = arith.constant 4 : index
    %c2_251 = arith.constant 2 : index
    %c0_252 = arith.constant 0 : index
    %236 = vector.load %arg17[%c4_250, %c2_251, %c0_252] : memref<6x6x32xf32, #tpu.memory_space<vmem>>, vector<1x4x32xf32>
    %237 = vector.shape_cast %236 : vector<1x4x32xf32> to vector<4x32xf32>
    %c5 = arith.constant 5 : index
    %c0_253 = arith.constant 0 : index
    %c0_254 = arith.constant 0 : index
    %238 = vector.load %arg17[%c5, %c0_253, %c0_254] : memref<6x6x32xf32, #tpu.memory_space<vmem>>, vector<1x4x32xf32>
    %239 = vector.shape_cast %238 : vector<1x4x32xf32> to vector<4x32xf32>
    %c5_255 = arith.constant 5 : index
    %c1_256 = arith.constant 1 : index
    %c0_257 = arith.constant 0 : index
    %240 = vector.load %arg17[%c5_255, %c1_256, %c0_257] : memref<6x6x32xf32, #tpu.memory_space<vmem>>, vector<1x4x32xf32>
    %241 = vector.shape_cast %240 : vector<1x4x32xf32> to vector<4x32xf32>
    %c5_258 = arith.constant 5 : index
    %c2_259 = arith.constant 2 : index
    %c0_260 = arith.constant 0 : index
    %242 = vector.load %arg17[%c5_258, %c2_259, %c0_260] : memref<6x6x32xf32, #tpu.memory_space<vmem>>, vector<1x4x32xf32>
    %243 = vector.shape_cast %242 : vector<1x4x32xf32> to vector<4x32xf32>
    %244 = tpu.concatenate %227, %229, %231, %233, %235, %237, %239, %241, %243 in 1 : vector<4x32xf32>, vector<4x32xf32>, vector<4x32xf32>, vector<4x32xf32>, vector<4x32xf32>, vector<4x32xf32>, vector<4x32xf32>, vector<4x32xf32>, vector<4x32xf32> -> vector<4x288xf32>
    %cst_261 = arith.constant dense<0.000000e+00> : vector<4x32xf32>
    %245 = tpu.matmul %244, %123, %cst_261 {dimension_numbers = #tpu.dot_dimension_numbers<[1], [0], [0], [1], [0, 0, 1, 1], [], []>} : vector<4x288xf32>, vector<288x32xf32>, vector<4x32xf32> -> vector<4x32xf32>
    %246 = vector.broadcast %124 : vector<1x32xf32> to vector<4x32xf32>
    %247 = arith.addf %245, %246 : vector<4x32xf32>
    %cst_262 = arith.constant 0.000000e+00 : f32
    %248 = vector.broadcast %cst_262 : f32 to vector<4x32xf32>
    %249 = arith.cmpf ogt, %247, %248 : vector<4x32xf32>
    %cst_263 = arith.constant 1.000000e-01 : f32
    %250 = vector.broadcast %cst_263 : f32 to vector<4x32xf32>
    %251 = arith.mulf %250, %247 : vector<4x32xf32>
    %252 = arith.select %249, %247, %251 : vector<4x32xi1>, vector<4x32xf32>
    %cst_264 = arith.constant dense<0.000000e+00> : vector<4x25xf32>
    %253 = tpu.matmul %252, %125, %cst_264 {dimension_numbers = #tpu.dot_dimension_numbers<[1], [0], [0], [1], [0, 0, 1, 1], [], []>} : vector<4x32xf32>, vector<32x25xf32>, vector<4x25xf32> -> vector<4x25xf32>
    %254 = vector.broadcast %126 : vector<1x25xf32> to vector<4x25xf32>
    %255 = arith.addf %253, %254 : vector<4x25xf32>
    %c0_265 = arith.constant 0 : index
    %c3_266 = arith.constant 3 : index
    %c0_267 = arith.constant 0 : index
    %c0_268 = arith.constant 0 : index
    %256 = vector.load %arg12[%c0_265, %c3_266, %c0_267, %c0_268] : memref<1x4x4x25xf32, #tpu.memory_space<vmem>>, vector<1x1x4x25xf32>
    %257 = vector.shape_cast %256 : vector<1x1x4x25xf32> to vector<4x25xf32>
    %258 = vector.shape_cast %255 : vector<4x25xf32> to vector<1x1x4x25xf32>
    tpu.vector_store %arg12[%c0_265, %c3_266, %c0_267, %c0_268], %258 {strides = array<i32>} : memref<1x4x4x25xf32, #tpu.memory_space<vmem>>, vector<1x1x4x25xf32>,
    return
  }
  func.func @transform_0(%arg0: i32) -> (i32, i32, i32, i32) {
    %c0_i32 = arith.constant 0 : i32
    %c0_i32_0 = arith.constant 0 : i32
    %c0_i32_1 = arith.constant 0 : i32
    %c0_i32_2 = arith.constant 0 : i32
    return %arg0, %c0_i32, %c0_i32_0, %c0_i32_1 : i32, i32, i32, i32
  }
  func.func @transform_1(%arg0: i32) -> (i32, i32) {
    %c0_i32 = arith.constant 0 : i32
    %c0_i32_0 = arith.constant 0 : i32
    %c0_i32_1 = arith.constant 0 : i32
    return %c0_i32, %c0_i32_0 : i32, i32
  }
  func.func @transform_2(%arg0: i32) -> (i32, i32) {
    %c0_i32 = arith.constant 0 : i32
    %c0_i32_0 = arith.constant 0 : i32
    %c0_i32_1 = arith.constant 0 : i32
    return %c0_i32, %c0_i32_0 : i32, i32
  }
  func.func @transform_3(%arg0: i32) -> (i32, i32) {
    %c0_i32 = arith.constant 0 : i32
    %c0_i32_0 = arith.constant 0 : i32
    %c0_i32_1 = arith.constant 0 : i32
    return %c0_i32, %c0_i32_0 : i32, i32
  }
  func.func @transform_4(%arg0: i32) -> (i32, i32) {
    %c0_i32 = arith.constant 0 : i32
    %c0_i32_0 = arith.constant 0 : i32
    %c0_i32_1 = arith.constant 0 : i32
    return %c0_i32, %c0_i32_0 : i32, i32
  }
  func.func @transform_5(%arg0: i32) -> (i32, i32) {
    %c0_i32 = arith.constant 0 : i32
    %c0_i32_0 = arith.constant 0 : i32
    %c0_i32_1 = arith.constant 0 : i32
    return %c0_i32, %c0_i32_0 : i32, i32
  }
  func.func @transform_6(%arg0: i32) -> (i32, i32) {
    %c0_i32 = arith.constant 0 : i32
    %c0_i32_0 = arith.constant 0 : i32
    %c0_i32_1 = arith.constant 0 : i32
    return %c0_i32, %c0_i32_0 : i32, i32
  }
  func.func @transform_7(%arg0: i32) -> (i32, i32) {
    %c0_i32 = arith.constant 0 : i32
    %c0_i32_0 = arith.constant 0 : i32
    %c0_i32_1 = arith.constant 0 : i32
    return %c0_i32, %c0_i32_0 : i32, i32
  }
  func.func @transform_8(%arg0: i32) -> (i32, i32) {
    %c0_i32 = arith.constant 0 : i32
    %c0_i32_0 = arith.constant 0 : i32
    %c0_i32_1 = arith.constant 0 : i32
    return %c0_i32, %c0_i32_0 : i32, i32
  }
  func.func @transform_9(%arg0: i32) -> (i32, i32) {
    %c0_i32 = arith.constant 0 : i32
    %c0_i32_0 = arith.constant 0 : i32
    %c0_i32_1 = arith.constant 0 : i32
    return %c0_i32, %c0_i32_0 : i32, i32
  }
  func.func @transform_10(%arg0: i32) -> (i32, i32) {
    %c0_i32 = arith.constant 0 : i32
    %c0_i32_0 = arith.constant 0 : i32
    %c0_i32_1 = arith.constant 0 : i32
    return %c0_i32, %c0_i32_0 : i32, i32
  }
  func.func @transform_11(%arg0: i32) -> (i32, i32, i32, i32) {
    %c0_i32 = arith.constant 0 : i32
    %c0_i32_0 = arith.constant 0 : i32
    %c0_i32_1 = arith.constant 0 : i32
    %c0_i32_2 = arith.constant 0 : i32
    return %arg0, %c0_i32, %c0_i32_0, %c0_i32_1 : i32, i32, i32, i32
  }
}

</mosaic_0001>

<llo_original>
// kernel: yolo_v2_forward.1
$region0: #{yolo_v2_forward.1}
  #allocation0 [shape = 'u32[]', space=smem, size = 0x4, offset = 0x4, fixed_abs, tag = 'smem constant byte address 0x4 - core index']
  #allocation1 [shape = 'u32[144,128]{1,0:T(1,128)}', space=vmem, size = 0x12000, scoped, tag = 'internal scratch']
  #allocation2 [shape = 'f32[16,16,8]{2,1,0:T(8,128)}', space=vmem, size = 0x20000, scoped, tag = 'scratch operand']
  #allocation3 [shape = 'f32[10,10,8]{2,1,0:T(8,128)}', space=vmem, size = 0x14000, scoped, tag = 'scratch operand']
  #allocation4 [shape = 'f32[8,8,16]{2,1,0:T(8,128)}', space=vmem, size = 0x8000, scoped, tag = 'scratch operand']
  #allocation5 [shape = 'f32[8,8,4]{2,1,0:T(8,128)}', space=vmem, size = 0x8000, scoped, tag = 'scratch operand']
  #allocation6 [shape = 'f32[6,6,32]{2,1,0:T(8,128)}', space=vmem, size = 0x6000, scoped, tag = 'scratch operand']
  %s0 = inlined_call_operand.vmem [shape: f32[2,18,18,4], index: 0, kind: input, shape index: {}]
  %s1 = inlined_call_operand.vmem [shape: f32[36,8], index: 1, kind: input, shape index: {}]
  %s2 = inlined_call_operand.vmem [shape: f32[1,8], index: 2, kind: input, shape index: {}]
  %s3 = inlined_call_operand.vmem [shape: f32[72,16], index: 3, kind: input, shape index: {}]
  %s4 = inlined_call_operand.vmem [shape: f32[1,16], index: 4, kind: input, shape index: {}]
  %s5 = inlined_call_operand.vmem [shape: f32[8,4], index: 5, kind: input, shape index: {}]
  %s6 = inlined_call_operand.vmem [shape: f32[1,4], index: 6, kind: input, shape index: {}]
  %s7 = inlined_call_operand.vmem [shape: f32[288,32], index: 7, kind: input, shape index: {}]
  %s8 = inlined_call_operand.vmem [shape: f32[1,32], index: 8, kind: input, shape index: {}]
  %s9 = inlined_call_operand.vmem [shape: f32[32,25], index: 9, kind: input, shape index: {}]
  %s10 = inlined_call_operand.vmem [shape: f32[1,25], index: 10, kind: input, shape index: {}]
  %s11 = inlined_call_operand.hbm [shape: f32[2,4,4,25], index: 11, kind: output, shape index: {}]
  %s12 = sld [smem:[#allocation0]]
  $region77: #{yolo_v2_forward.1} parent=0
    _
  %s14 = ssub.s32 1, %s12
  %s15 = scalar_select 0, %s14, %s12
  $region1: #{yolo_v2_forward.1} parent=0
    #allocation7 [shape = 'u8[16384]{0}', space=vmem, size = 0x4000, scoped, tag = 'output window, operand 0']
    #allocation8 [shape = 's32[2]{0}', space=sflag, size = 0x8, scoped, tag = 'scoped memory for yolo_v2_forward.1']
    %16 = vsyncpa [#allocation8], 0
    %s17 = scalar_lea.sflag [#allocation8], 1
    %18 = vsyncpa %s17, 0
    loop: start=0, step=1, limit=4
    $region2: #{yolo_v2_forward.1} parent=1 // loop_pre_header
      _
    $region3: #{yolo_v2_forward.1} parent=1 // loop_header
      %s20 = sphi 0, %s24
      %p21 = scmp.ge.s32.totalorder %s20, 4
      %s30 = sphi 0, %s32
      %s33 = sphi 0, %s30
      %s34 = sphi 0, %s33
      %s50 = sphi 0, %s34
      %s54 = sphi 0, %s54
      %s56 = sphi 0, %s54
      %s57 = sphi 0, %s56
      %s71 = sphi 0, %s57
      %s75 = sphi 0, %s75
      %s77 = sphi 0, %s75
      %s78 = sphi 0, %s77
      %s92 = sphi 0, %s78
      %s96 = sphi 0, %s96
      %s98 = sphi 0, %s96
      %s99 = sphi 0, %s98
      %s113 = sphi 0, %s99
      %s117 = sphi 0, %s117
      %s119 = sphi 0, %s117
      %s120 = sphi 0, %s119
      %s134 = sphi 0, %s120
      %s138 = sphi 0, %s138
      %s140 = sphi 0, %s138
      %s141 = sphi 0, %s140
      %s155 = sphi 0, %s141
      %s159 = sphi 0, %s159
      %s161 = sphi 0, %s159
      %s162 = sphi 0, %s161
      %s176 = sphi 0, %s162
      %s180 = sphi 0, %s180
      %s182 = sphi 0, %s180
      %s183 = sphi 0, %s182
      %s197 = sphi 0, %s183
      %s201 = sphi 0, %s201
      %s203 = sphi 0, %s201
      %s204 = sphi 0, %s203
      %s218 = sphi 0, %s204
      %s222 = sphi 0, %s222
      %s224 = sphi 0, %s222
      %s225 = sphi 0, %s224
      %s239 = sphi 0, %s225
      %s243 = sphi 0, %s243
      %s245 = sphi 0, %s243
      %s246 = sphi 0, %s245
      %s260 = sphi 0, %s246
      %s266 = sphi 0, %s268
      %s269 = sphi 0, %s266
      %s270 = sphi 0, %s269
      %s286 = sphi 0, %s270
    $region4: #{yolo_v2_forward.1} parent=1 // loop_header_branch
      %23 = sbr.rel (%p21) target = $region8
    $region5: #{yolo_v2_forward.1} parent=1 // loop_body
      %s25 = ssub.s32 %s20, 1
      %s26 = ssub.s32 %s20, 2
      %s27 = sadd.s32 %s20, 1
      %s28 = ssub.s32 %s20, %s27
      %p29 = scmp.eq.s32.totalorder %s28, 0
      %s31 = sadd.s32 %s30, 1
      %s32 = scalar_select %p29, %s30, %s31
      %p35 = pneg %p29
      %p36 = scmp.eq.s32.totalorder %s20, 1
      %p37 = por %p35, %p36
      %p38 = scmp.ne.s32.totalorder %s30, %s33
      %p39 = scmp.eq.s32.totalorder %s20, 0
      %p40 = por %p38, %p39
      %p41 = scmp.ne.s32.totalorder %s30, %s33
      %p42 = scmp.eq.s32.totalorder %s25, 1
      %p43 = por %p41, %p42
      %p44 = scmp.ne.s32.totalorder %s33, %s34
      %p45 = scmp.eq.s32.totalorder %s25, 0
      %p46 = por %p44, %p45
      %p47 = scmp.ne.s32.totalorder %s33, %s34
      %p48 = scmp.eq.s32.totalorder %s26, 1
      %p49 = por %p47, %p48
      %p51 = scmp.ne.s32.totalorder %s34, %s50
      %p52 = scmp.eq.s32.totalorder %s26, 0
      %p53 = por %p51, %p52
      %s55 = sadd.s32 %s54, 1
      %p58 = scmp.eq.s32.totalorder %s20, 1
      %p59 = scmp.ne.s32.totalorder %s54, %s56
      %p60 = scmp.eq.s32.totalorder %s20, 0
      %p61 = por %p59, %p60
      %p62 = scmp.ne.s32.totalorder %s54, %s56
      %p63 = scmp.eq.s32.totalorder %s25, 1
      %p64 = por %p62, %p63
      %p65 = scmp.ne.s32.totalorder %s56, %s57
      %p66 = scmp.eq.s32.totalorder %s25, 0
      %p67 = por %p65, %p66
      %p68 = scmp.ne.s32.totalorder %s56, %s57
      %p69 = scmp.eq.s32.totalorder %s26, 1
      %p70 = por %p68, %p69
      %p72 = scmp.ne.s32.totalorder %s57, %s71
      %p73 = scmp.eq.s32.totalorder %s26, 0
      %p74 = por %p72, %p73
      %s76 = sadd.s32 %s75, 1
      %p79 = scmp.eq.s32.totalorder %s20, 1
      %p80 = scmp.ne.s32.totalorder %s75, %s77
      %p81 = scmp.eq.s32.totalorder %s20, 0
      %p82 = por %p80, %p81
      %p83 = scmp.ne.s32.totalorder %s75, %s77
      %p84 = scmp.eq.s32.totalorder %s25, 1
      %p85 = por %p83, %p84
      %p86 = scmp.ne.s32.totalorder %s77, %s78
      %p87 = scmp.eq.s32.totalorder %s25, 0
      %p88 = por %p86, %p87
      %p89 = scmp.ne.s32.totalorder %s77, %s78
      %p90 = scmp.eq.s32.totalorder %s26, 1
      %p91 = por %p89, %p90
      %p93 = scmp.ne.s32.totalorder %s78, %s92
      %p94 = scmp.eq.s32.totalorder %s26, 0
      %p95 = por %p93, %p94
      %s97 = sadd.s32 %s96, 1
      %p100 = scmp.eq.s32.totalorder %s20, 1
      %p101 = scmp.ne.s32.totalorder %s96, %s98
      %p102 = scmp.eq.s32.totalorder %s20, 0
      %p103 = por %p101, %p102
      %p104 = scmp.ne.s32.totalorder %s96, %s98
      %p105 = scmp.eq.s32.totalorder %s25, 1
      %p106 = por %p104, %p105
      %p107 = scmp.ne.s32.totalorder %s98, %s99
      %p108 = scmp.eq.s32.totalorder %s25, 0
      %p109 = por %p107, %p108
      %p110 = scmp.ne.s32.totalorder %s98, %s99
      %p111 = scmp.eq.s32.totalorder %s26, 1
      %p112 = por %p110, %p111
      %p114 = scmp.ne.s32.totalorder %s99, %s113
      %p115 = scmp.eq.s32.totalorder %s26, 0
      %p116 = por %p114, %p115
      %s118 = sadd.s32 %s117, 1
      %p121 = scmp.eq.s32.totalorder %s20, 1
      %p122 = scmp.ne.s32.totalorder %s117, %s119
      %p123 = scmp.eq.s32.totalorder %s20, 0
      %p124 = por %p122, %p123
      %p125 = scmp.ne.s32.totalorder %s117, %s119
      %p126 = scmp.eq.s32.totalorder %s25, 1
      %p127 = por %p125, %p126
      %p128 = scmp.ne.s32.totalorder %s119, %s120
      %p129 = scmp.eq.s32.totalorder %s25, 0
      %p130 = por %p128, %p129
      %p131 = scmp.ne.s32.totalorder %s119, %s120
      %p132 = scmp.eq.s32.totalorder %s26, 1
      %p133 = por %p131, %p132
      %p135 = scmp.ne.s32.totalorder %s120, %s134
      %p136 = scmp.eq.s32.totalorder %s26, 0
      %p137 = por %p135, %p136
      %s139 = sadd.s32 %s138, 1
      %p142 = scmp.eq.s32.totalorder %s20, 1
      %p143 = scmp.ne.s32.totalorder %s138, %s140
      %p144 = scmp.eq.s32.totalorder %s20, 0
      %p145 = por %p143, %p144
      %p146 = scmp.ne.s32.totalorder %s138, %s140
      %p147 = scmp.eq.s32.totalorder %s25, 1
      %p148 = por %p146, %p147
      %p149 = scmp.ne.s32.totalorder %s140, %s141
      %p150 = scmp.eq.s32.totalorder %s25, 0
      %p151 = por %p149, %p150
      %p152 = scmp.ne.s32.totalorder %s140, %s141
      %p153 = scmp.eq.s32.totalorder %s26, 1
      %p154 = por %p152, %p153
      %p156 = scmp.ne.s32.totalorder %s141, %s155
      %p157 = scmp.eq.s32.totalorder %s26, 0
      %p158 = por %p156, %p157
      %s160 = sadd.s32 %s159, 1
      %p163 = scmp.eq.s32.totalorder %s20, 1
      %p164 = scmp.ne.s32.totalorder %s159, %s161
      %p165 = scmp.eq.s32.totalorder %s20, 0
      %p166 = por %p164, %p165
      %p167 = scmp.ne.s32.totalorder %s159, %s161
      %p168 = scmp.eq.s32.totalorder %s25, 1
      %p169 = por %p167, %p168
      %p170 = scmp.ne.s32.totalorder %s161, %s162
      %p171 = scmp.eq.s32.totalorder %s25, 0
      %p172 = por %p170, %p171
      %p173 = scmp.ne.s32.totalorder %s161, %s162
      %p174 = scmp.eq.s32.totalorder %s26, 1
      %p175 = por %p173, %p174
      %p177 = scmp.ne.s32.totalorder %s162, %s176
      %p178 = scmp.eq.s32.totalorder %s26, 0
      %p179 = por %p177, %p178
      %s181 = sadd.s32 %s180, 1
      %p184 = scmp.eq.s32.totalorder %s20, 1
      %p185 = scmp.ne.s32.totalorder %s180, %s182
      %p186 = scmp.eq.s32.totalorder %s20, 0
      %p187 = por %p185, %p186
      %p188 = scmp.ne.s32.totalorder %s180, %s182
      %p189 = scmp.eq.s32.totalorder %s25, 1
      %p190 = por %p188, %p189
      %p191 = scmp.ne.s32.totalorder %s182, %s183
      %p192 = scmp.eq.s32.totalorder %s25, 0
      %p193 = por %p191, %p192
      %p194 = scmp.ne.s32.totalorder %s182, %s183
      %p195 = scmp.eq.s32.totalorder %s26, 1
      %p196 = por %p194, %p195
      %p198 = scmp.ne.s32.totalorder %s183, %s197
      %p199 = scmp.eq.s32.totalorder %s26, 0
      %p200 = por %p198, %p199
      %s202 = sadd.s32 %s201, 1
      %p205 = scmp.eq.s32.totalorder %s20, 1
      %p206 = scmp.ne.s32.totalorder %s201, %s203
      %p207 = scmp.eq.s32.totalorder %s20, 0
      %p208 = por %p206, %p207
      %p209 = scmp.ne.s32.totalorder %s201, %s203
      %p210 = scmp.eq.s32.totalorder %s25, 1
      %p211 = por %p209, %p210
      %p212 = scmp.ne.s32.totalorder %s203, %s204
      %p213 = scmp.eq.s32.totalorder %s25, 0
      %p214 = por %p212, %p213
      %p215 = scmp.ne.s32.totalorder %s203, %s204
      %p216 = scmp.eq.s32.totalorder %s26, 1
      %p217 = por %p215, %p216
      %p219 = scmp.ne.s32.totalorder %s204, %s218
      %p220 = scmp.eq.s32.totalorder %s26, 0
      %p221 = por %p219, %p220
      %s223 = sadd.s32 %s222, 1
      %p226 = scmp.eq.s32.totalorder %s20, 1
      %p227 = scmp.ne.s32.totalorder %s222, %s224
      %p228 = scmp.eq.s32.totalorder %s20, 0
      %p229 = por %p227, %p228
      %p230 = scmp.ne.s32.totalorder %s222, %s224
      %p231 = scmp.eq.s32.totalorder %s25, 1
      %p232 = por %p230, %p231
      %p233 = scmp.ne.s32.totalorder %s224, %s225
      %p234 = scmp.eq.s32.totalorder %s25, 0
      %p235 = por %p233, %p234
      %p236 = scmp.ne.s32.totalorder %s224, %s225
      %p237 = scmp.eq.s32.totalorder %s26, 1
      %p238 = por %p236, %p237
      %p240 = scmp.ne.s32.totalorder %s225, %s239
      %p241 = scmp.eq.s32.totalorder %s26, 0
      %p242 = por %p240, %p241
      %s244 = sadd.s32 %s243, 1
      %p247 = scmp.eq.s32.totalorder %s20, 1
      %p248 = scmp.ne.s32.totalorder %s243, %s245
      %p249 = scmp.eq.s32.totalorder %s20, 0
      %p250 = por %p248, %p249
      %p251 = scmp.ne.s32.totalorder %s243, %s245
      %p252 = scmp.eq.s32.totalorder %s25, 1
      %p253 = por %p251, %p252
      %p254 = scmp.ne.s32.totalorder %s245, %s246
      %p255 = scmp.eq.s32.totalorder %s25, 0
      %p256 = por %p254, %p255
      %p257 = scmp.ne.s32.totalorder %s245, %s246
      %p258 = scmp.eq.s32.totalorder %s26, 1
      %p259 = por %p257, %p258
      %p261 = scmp.ne.s32.totalorder %s246, %s260
      %p262 = scmp.eq.s32.totalorder %s26, 0
      %p263 = por %p261, %p262
      %s264 = ssub.s32 %s20, %s27
      %p265 = scmp.eq.s32.totalorder %s264, 0
      %s267 = sadd.s32 %s266, 1
      %s268 = scalar_select %p265, %s266, %s267
      %p271 = pneg %p265
      %p272 = scmp.eq.s32.totalorder %s20, 1
      %p273 = por %p271, %p272
      %p274 = scmp.ne.s32.totalorder %s266, %s269
      %p275 = scmp.eq.s32.totalorder %s20, 0
      %p276 = por %p274, %p275
      %p277 = scmp.ne.s32.totalorder %s266, %s269
      %p278 = scmp.eq.s32.totalorder %s25, 1
      %p279 = por %p277, %p278
      %p280 = scmp.ne.s32.totalorder %s269, %s270
      %p281 = scmp.eq.s32.totalorder %s25, 0
      %p282 = por %p280, %p281
      %p283 = scmp.ne.s32.totalorder %s269, %s270
      %p284 = scmp.eq.s32.totalorder %s26, 1
      %p285 = por %p283, %p284
      %p287 = scmp.ne.s32.totalorder %s270, %s286
      %p288 = scmp.eq.s32.totalorder %s26, 0
      %p289 = por %p287, %p288
      %p290 = scmp.le.s32.totalorder 1, %s20
      %p291 = scmp.lt.s32.totalorder %s20, 3
      %p292 = pnand %p290, %p291
      %p293 = pneg %p292
      // Predicated region
      $region9: #{yolo_v2_forward.1} parent=5 // pred_check
        _
      $region10: #{yolo_v2_forward.1} parent=5 // pred_check_branch
        %295 = sbr.rel (%p292) target = $region12
      $region11: #{yolo_v2_forward.1} parent=5 // pred_region
        %s296 = ssub.s32 %s20, 1
        // Predicated region
        $region13: #{yolo_v2_forward.1} parent=11 // pred_check
          %p297 = pneg %p67
        $region14: #{yolo_v2_forward.1} parent=11 // pred_check_branch
          %299 = sbr.rel (%p297) target = $region16
        $region15: #{yolo_v2_forward.1} parent=11 // pred_region
          _
        $region16: #{yolo_v2_forward.1} parent=11 // pred_fallthru
          _
        // Predicated region
        $region17: #{yolo_v2_forward.1} parent=11 // pred_check
          %p300 = pneg %p88
        $region18: #{yolo_v2_forward.1} parent=11 // pred_check_branch
          %302 = sbr.rel (%p300) target = $region20
        $region19: #{yolo_v2_forward.1} parent=11 // pred_region
          _
        $region20: #{yolo_v2_forward.1} parent=11 // pred_fallthru
          _
        // Predicated region
        $region21: #{yolo_v2_forward.1} parent=11 // pred_check
          %p303 = pneg %p109
        $region22: #{yolo_v2_forward.1} parent=11 // pred_check_branch
          %305 = sbr.rel (%p303) target = $region24
        $region23: #{yolo_v2_forward.1} parent=11 // pred_region
          _
        $region24: #{yolo_v2_forward.1} parent=11 // pred_fallthru
          _
        // Predicated region
        $region25: #{yolo_v2_forward.1} parent=11 // pred_check
          %p306 = pneg %p130
        $region26: #{yolo_v2_forward.1} parent=11 // pred_check_branch
          %308 = sbr.rel (%p306) target = $region28
        $region27: #{yolo_v2_forward.1} parent=11 // pred_region
          _
        $region28: #{yolo_v2_forward.1} parent=11 // pred_fallthru
          _
        // Predicated region
        $region29: #{yolo_v2_forward.1} parent=11 // pred_check
          %p309 = pneg %p151
        $region30: #{yolo_v2_forward.1} parent=11 // pred_check_branch
          %311 = sbr.rel (%p309) target = $region32
        $region31: #{yolo_v2_forward.1} parent=11 // pred_region
          _
        $region32: #{yolo_v2_forward.1} parent=11 // pred_fallthru
          _
        // Predicated region
        $region33: #{yolo_v2_forward.1} parent=11 // pred_check
          %p312 = pneg %p172
        $region34: #{yolo_v2_forward.1} parent=11 // pred_check_branch
          %314 = sbr.rel (%p312) target = $region36
        $region35: #{yolo_v2_forward.1} parent=11 // pred_region
          _
        $region36: #{yolo_v2_forward.1} parent=11 // pred_fallthru
          _
        // Predicated region
        $region37: #{yolo_v2_forward.1} parent=11 // pred_check
          %p315 = pneg %p193
        $region38: #{yolo_v2_forward.1} parent=11 // pred_check_branch
          %317 = sbr.rel (%p315) target = $region40
        $region39: #{yolo_v2_forward.1} parent=11 // pred_region
          _
        $region40: #{yolo_v2_forward.1} parent=11 // pred_fallthru
          _
        // Predicated region
        $region41: #{yolo_v2_forward.1} parent=11 // pred_check
          %p318 = pneg %p214
        $region42: #{yolo_v2_forward.1} parent=11 // pred_check_branch
          %320 = sbr.rel (%p318) target = $region44
        $region43: #{yolo_v2_forward.1} parent=11 // pred_region
          _
        $region44: #{yolo_v2_forward.1} parent=11 // pred_fallthru
          _
        // Predicated region
        $region45: #{yolo_v2_forward.1} parent=11 // pred_check
          %p321 = pneg %p235
        $region46: #{yolo_v2_forward.1} parent=11 // pred_check_branch
          %323 = sbr.rel (%p321) target = $region48
        $region47: #{yolo_v2_forward.1} parent=11 // pred_region
          _
        $region48: #{yolo_v2_forward.1} parent=11 // pred_fallthru
          _
        // Predicated region
        $region49: #{yolo_v2_forward.1} parent=11 // pred_check
          %p324 = pneg %p256
        $region50: #{yolo_v2_forward.1} parent=11 // pred_check_branch
          %326 = sbr.rel (%p324) target = $region52
        $region51: #{yolo_v2_forward.1} parent=11 // pred_region
          _
        $region52: #{yolo_v2_forward.1} parent=11 // pred_fallthru
          _
      $region12: #{yolo_v2_forward.1} parent=5 // pred_fallthru
        _
      %p327 = scmp.lt.s32.totalorder %s20, 2
      // Predicated region
      $region53: #{yolo_v2_forward.1} parent=5 // pred_check
        %p328 = pneg %p327
      $region54: #{yolo_v2_forward.1} parent=5 // pred_check_branch
        %330 = sbr.rel (%p328) target = $region56
      $region55: #{yolo_v2_forward.1} parent=5 // pred_region
        // Predicated region
        $region57: #{yolo_v2_forward.1} parent=55 // pred_check
          %p331 = pneg %p40
        $region58: #{yolo_v2_forward.1} parent=55 // pred_check_branch
          %333 = sbr.rel (%p331) target = $region60
        $region59: #{yolo_v2_forward.1} parent=55 // pred_region
          %p334 = scmp.lt.s32.totalorder %s20, 1
          %s335 = scalar_select %p334, %s20, 1
          %s336 = smul.addr %s335, 54
          %s337 = smul.addr %s336, 8
          %s338 = scalar_lea.vmem %s0, %s337
        $region60: #{yolo_v2_forward.1} parent=55 // pred_fallthru
          _
      $region56: #{yolo_v2_forward.1} parent=5 // pred_fallthru
        _
      %p339 = scmp.le.s32.totalorder 1, %s20
      %p340 = scmp.lt.s32.totalorder %s20, 3
      %p341 = pnand %p339, %p340
      %p342 = pneg %p341
      // Predicated region
      $region61: #{yolo_v2_forward.1} parent=5 // pred_check
        _
      $region62: #{yolo_v2_forward.1} parent=5 // pred_check_branch
        %344 = sbr.rel (%p341) target = $region64
      $region63: #{yolo_v2_forward.1} parent=5 // pred_region
        %s345 = ssub.s32 %s20, 1
        %p346 = scmp.lt.s32.totalorder %s25, 1
        %s347 = scalar_select %p346, %s25, 1
        %s348 = smul.addr %s347, 54
        %s349 = smul.addr %s348, 8
        %s350 = scalar_lea.vmem %s0, %s349
        %p351 = pneg %p46
        %p352 = pneg %p43
        %p353 = pneg %p67
        %p354 = pneg %p64
        %p355 = pneg %p88
        %p356 = pneg %p85
        %p357 = pneg %p109
        %p358 = pneg %p106
        %p359 = pneg %p130
        %p360 = pneg %p127
        %p361 = pneg %p151
        %p362 = pneg %p148
        %p363 = pneg %p172
        %p364 = pneg %p169
        %p365 = pneg %p193
        %p366 = pneg %p190
        %p367 = pneg %p214
        %p368 = pneg %p211
        %p369 = pneg %p235
        %p370 = pneg %p232
        %p371 = pneg %p256
        %p372 = pneg %p253
        %p373 = pneg %p282
        %p374 = pneg %p279
        %s375 = sand.u32 %s269, 1
        %s376 = scalar_lea.sflag [#allocation8], %s375
        %s377 = sand.u32 %s269, 1
        %s378 = smul.addr %s377, 16
        %s379 = scalar_lea.vmem [#allocation7], %s378
        %p380 = scmp.lt.s32.totalorder %s25, 1
        %s381 = scalar_select %p380, %s25, 1
        %s382 = smul.addr %s381, 54
        %s383 = smul.addr %s382, 8
        %s384 = scalar_lea.vmem %s0, %s383
        %v385 = vld [vmem:[%s384] sm:$0xff]
        %v386 = vld [vmem:[%s384 + $0x8] sm:$0xff]
        %v387 = vld [vmem:[%s384 + $0x18] sm:$0xff]
        %v388 = vld [vmem:[%s384 + $0x20] sm:$0xff]
        %v389 = vld [vmem:[%s384 + $0x30] sm:$0xff]
        %v390 = vld [vmem:[%s384 + $0x38] sm:$0xff]
        %v391 = vld [vmem:[%s384 + $0x48] sm:$0xff]
        %v392 = vld [vmem:[%s384 + $0x50] sm:$0xff]
        %v393 = vld [vmem:[%s384 + $0x60] sm:$0xff]
        %v394 = vld [vmem:[%s384 + $0x68] sm:$0xff]
        %v395 = vld [vmem:[%s384 + $0x78] sm:$0xff]
        %v396 = vld [vmem:[%s384 + $0x80] sm:$0xff]
        %v397 = vld [vmem:[%s384 + $0x90] sm:$0xff]
        %v398 = vld [vmem:[%s384 + $0x98] sm:$0xff]
        %v399 = vld [vmem:[%s384 + $0xa8] sm:$0xff]
        %v400 = vld [vmem:[%s384 + $0xb0] sm:$0xff]
        %v401 = vld [vmem:[%s384 + $0xc0] sm:$0xff]
        %v402 = vld [vmem:[%s384 + $0xc8] sm:$0xff]
        %v403 = vld [vmem:[%s384 + $0xd8] sm:$0xff]
        %v404 = vld [vmem:[%s384 + $0xe0] sm:$0xff]
        %v405 = vld [vmem:[%s384 + $0xf0] sm:$0xff]
        %v406 = vld [vmem:[%s384 + $0xf8] sm:$0xff]
        %v407 = vld [vmem:[%s384 + $0x108] sm:$0xff]
        %v408 = vld [vmem:[%s384 + $0x110] sm:$0xff]
        %v409 = vld [vmem:[%s384 + $0x120] sm:$0xff]
        %v410 = vld [vmem:[%s384 + $0x128] sm:$0xff]
        %v411 = vld [vmem:[%s384 + $0x138] sm:$0xff]
        %v412 = vld [vmem:[%s384 + $0x140] sm:$0xff]
        %v413 = vld [vmem:[%s384 + $0x150] sm:$0xff]
        %v414 = vld [vmem:[%s384 + $0x158] sm:$0xff]
        %v415 = vld [vmem:[%s384 + $0x168] sm:$0xff]
        %v416 = vld [vmem:[%s384 + $0x170] sm:$0xff]
        %v417 = vld [vmem:[%s384 + $0x1] sm:$0xff]
        %v418 = vld [vmem:[%s384 + $0x9] sm:$0xff]
        %v419 = vld [vmem:[%s384 + $0x19] sm:$0xff]
        %v420 = vld [vmem:[%s384 + $0x21] sm:$0xff]
        %v421 = vld [vmem:[%s384 + $0x31] sm:$0xff]
        %v422 = vld [vmem:[%s384 + $0x39] sm:$0xff]
        %v423 = vld [vmem:[%s384 + $0x49] sm:$0xff]
        %v424 = vld [vmem:[%s384 + $0x51] sm:$0xff]
        %v425 = vld [vmem:[%s384 + $0x61] sm:$0xff]
        %v426 = vld [vmem:[%s384 + $0x69] sm:$0xff]
        %v427 = vld [vmem:[%s384 + $0x79] sm:$0xff]
        %v428 = vld [vmem:[%s384 + $0x81] sm:$0xff]
        %v429 = vld [vmem:[%s384 + $0x91] sm:$0xff]
        %v430 = vld [vmem:[%s384 + $0x99] sm:$0xff]
        %v431 = vld [vmem:[%s384 + $0xa9] sm:$0xff]
        %v432 = vld [vmem:[%s384 + $0xb1] sm:$0xff]
        %v433 = vld [vmem:[%s384 + $0xc1] sm:$0xff]
        %v434 = vld [vmem:[%s384 + $0xc9] sm:$0xff]
        %v435 = vld [vmem:[%s384 + $0xd9] sm:$0xff]
        %v436 = vld [vmem:[%s384 + $0xe1] sm:$0xff]
        %v437 = vld [vmem:[%s384 + $0xf1] sm:$0xff]
        %v438 = vld [vmem:[%s384 + $0xf9] sm:$0xff]
        %v439 = vld [vmem:[%s384 + $0x109] sm:$0xff]
        %v440 = vld [vmem:[%s384 + $0x111] sm:$0xff]
        %v441 = vld [vmem:[%s384 + $0x121] sm:$0xff]
        %v442 = vld [vmem:[%s384 + $0x129] sm:$0xff]
        %v443 = vld [vmem:[%s384 + $0x139] sm:$0xff]
        %v444 = vld [vmem:[%s384 + $0x141] sm:$0xff]
        %v445 = vld [vmem:[%s384 + $0x151] sm:$0xff]
        %v446 = vld [vmem:[%s384 + $0x159] sm:$0xff]
        %v447 = vld [vmem:[%s384 + $0x169] sm:$0xff]
        %v448 = vld [vmem:[%s384 + $0x171] sm:$0xff]
        %v449 = vld [vmem:[%s384 + $0x2] sm:$0xff]
        %v450 = vld [vmem:[%s384 + $0xa] sm:$0xff]
        %v451 = vld [vmem:[%s384 + $0x1a] sm:$0xff]
        %v452 = vld [vmem:[%s384 + $0x22] sm:$0xff]
        %v453 = vld [vmem:[%s384 + $0x32] sm:$0xff]
        %v454 = vld [vmem:[%s384 + $0x3a] sm:$0xff]
        %v455 = vld [vmem:[%s384 + $0x4a] sm:$0xff]
        %v456 = vld [vmem:[%s384 + $0x52] sm:$0xff]
        %v457 = vld [vmem:[%s384 + $0x62] sm:$0xff]
        %v458 = vld [vmem:[%s384 + $0x6a] sm:$0xff]
        %v459 = vld [vmem:[%s384 + $0x7a] sm:$0xff]
        %v460 = vld [vmem:[%s384 + $0x82] sm:$0xff]
        %v461 = vld [vmem:[%s384 + $0x92] sm:$0xff]
        %v462 = vld [vmem:[%s384 + $0x9a] sm:$0xff]
        %v463 = vld [vmem:[%s384 + $0xaa] sm:$0xff]
        %v464 = vld [vmem:[%s384 + $0xb2] sm:$0xff]
        %v465 = vld [vmem:[%s384 + $0xc2] sm:$0xff]
        %v466 = vld [vmem:[%s384 + $0xca] sm:$0xff]
        %v467 = vld [vmem:[%s384 + $0xda] sm:$0xff]
        %v468 = vld [vmem:[%s384 + $0xe2] sm:$0xff]
        %v469 = vld [vmem:[%s384 + $0xf2] sm:$0xff]
        %v470 = vld [vmem:[%s384 + $0xfa] sm:$0xff]
        %v471 = vld [vmem:[%s384 + $0x10a] sm:$0xff]
        %v472 = vld [vmem:[%s384 + $0x112] sm:$0xff]
        %v473 = vld [vmem:[%s384 + $0x122] sm:$0xff]
        %v474 = vld [vmem:[%s384 + $0x12a] sm:$0xff]
        %v475 = vld [vmem:[%s384 + $0x13a] sm:$0xff]
        %v476 = vld [vmem:[%s384 + $0x142] sm:$0xff]
        %v477 = vld [vmem:[%s384 + $0x152] sm:$0xff]
        %v478 = vld [vmem:[%s384 + $0x15a] sm:$0xff]
        %v479 = vld [vmem:[%s384 + $0x16a] sm:$0xff]
        %v480 = vld [vmem:[%s384 + $0x172] sm:$0xff]
        %s481 = scalar_lea.vmem %s384, 24
        %v482 = vld [vmem:[%s481] sm:$0xff]
        %v483 = vld [vmem:[%s481 + $0x8] sm:$0xff]
        %v484 = vld [vmem:[%s481 + $0x18] sm:$0xff]
        %v485 = vld [vmem:[%s481 + $0x20] sm:$0xff]
        %v486 = vld [vmem:[%s481 + $0x30] sm:$0xff]
        %v487 = vld [vmem:[%s481 + $0x38] sm:$0xff]
        %v488 = vld [vmem:[%s481 + $0x48] sm:$0xff]
        %v489 = vld [vmem:[%s481 + $0x50] sm:$0xff]
        %v490 = vld [vmem:[%s481 + $0x60] sm:$0xff]
        %v491 = vld [vmem:[%s481 + $0x68] sm:$0xff]
        %v492 = vld [vmem:[%s481 + $0x78] sm:$0xff]
        %v493 = vld [vmem:[%s481 + $0x80] sm:$0xff]
        %v494 = vld [vmem:[%s481 + $0x90] sm:$0xff]
        %v495 = vld [vmem:[%s481 + $0x98] sm:$0xff]
        %v496 = vld [vmem:[%s481 + $0xa8] sm:$0xff]
        %v497 = vld [vmem:[%s481 + $0xb0] sm:$0xff]
        %v498 = vld [vmem:[%s481 + $0xc0] sm:$0xff]
        %v499 = vld [vmem:[%s481 + $0xc8] sm:$0xff]
        %v500 = vld [vmem:[%s481 + $0xd8] sm:$0xff]
        %v501 = vld [vmem:[%s481 + $0xe0] sm:$0xff]
        %v502 = vld [vmem:[%s481 + $0xf0] sm:$0xff]
        %v503 = vld [vmem:[%s481 + $0xf8] sm:$0xff]
        %v504 = vld [vmem:[%s481 + $0x108] sm:$0xff]
        %v505 = vld [vmem:[%s481 + $0x110] sm:$0xff]
        %v506 = vld [vmem:[%s481 + $0x120] sm:$0xff]
        %v507 = vld [vmem:[%s481 + $0x128] sm:$0xff]
        %v508 = vld [vmem:[%s481 + $0x138] sm:$0xff]
        %v509 = vld [vmem:[%s481 + $0x140] sm:$0xff]
        %v510 = vld [vmem:[%s481 + $0x150] sm:$0xff]
        %v511 = vld [vmem:[%s481 + $0x158] sm:$0xff]
        %v512 = vld [vmem:[%s481 + $0x168] sm:$0xff]
        %v513 = vld [vmem:[%s481 + $0x170] sm:$0xff]
        %v514 = vld [vmem:[%s481 + $0x1] sm:$0xff]
        %v515 = vld [vmem:[%s481 + $0x9] sm:$0xff]
        %v516 = vld [vmem:[%s481 + $0x19] sm:$0xff]
        %v517 = vld [vmem:[%s481 + $0x21] sm:$0xff]
        %v518 = vld [vmem:[%s481 + $0x31] sm:$0xff]
        %v519 = vld [vmem:[%s481 + $0x39] sm:$0xff]
        %v520 = vld [vmem:[%s481 + $0x49] sm:$0xff]
        %v521 = vld [vmem:[%s481 + $0x51] sm:$0xff]
        %v522 = vld [vmem:[%s481 + $0x61] sm:$0xff]
        %v523 = vld [vmem:[%s481 + $0x69] sm:$0xff]
        %v524 = vld [vmem:[%s481 + $0x79] sm:$0xff]
        %v525 = vld [vmem:[%s481 + $0x81] sm:$0xff]
        %v526 = vld [vmem:[%s481 + $0x91] sm:$0xff]
        %v527 = vld [vmem:[%s481 + $0x99] sm:$0xff]
        %v528 = vld [vmem:[%s481 + $0xa9] sm:$0xff]
        %v529 = vld [vmem:[%s481 + $0xb1] sm:$0xff]
        %v530 = vld [vmem:[%s481 + $0xc1] sm:$0xff]
        %v531 = vld [vmem:[%s481 + $0xc9] sm:$0xff]
        %v532 = vld [vmem:[%s481 + $0xd9] sm:$0xff]
        %v533 = vld [vmem:[%s481 + $0xe1] sm:$0xff]
        %v534 = vld [vmem:[%s481 + $0xf1] sm:$0xff]
        %v535 = vld [vmem:[%s481 + $0xf9] sm:$0xff]
        %v536 = vld [vmem:[%s481 + $0x109] sm:$0xff]
        %v537 = vld [vmem:[%s481 + $0x111] sm:$0xff]
        %v538 = vld [vmem:[%s481 + $0x121] sm:$0xff]
        %v539 = vld [vmem:[%s481 + $0x129] sm:$0xff]
        %v540 = vld [vmem:[%s481 + $0x139] sm:$0xff]
        %v541 = vld [vmem:[%s481 + $0x141] sm:$0xff]
        %v542 = vld [vmem:[%s481 + $0x151] sm:$0xff]
        %v543 = vld [vmem:[%s481 + $0x159] sm:$0xff]
        %v544 = vld [vmem:[%s481 + $0x169] sm:$0xff]
        %v545 = vld [vmem:[%s481 + $0x171] sm:$0xff]
        %v546 = vld [vmem:[%s481 + $0x2] sm:$0xff]
        %v547 = vld [vmem:[%s481 + $0xa] sm:$0xff]
        %v548 = vld [vmem:[%s481 + $0x1a] sm:$0xff]
        %v549 = vld [vmem:[%s481 + $0x22] sm:$0xff]
        %v550 = vld [vmem:[%s481 + $0x32] sm:$0xff]
        %v551 = vld [vmem:[%s481 + $0x3a] sm:$0xff]
        %v552 = vld [vmem:[%s481 + $0x4a] sm:$0xff]
        %v553 = vld [vmem:[%s481 + $0x52] sm:$0xff]
        %v554 = vld [vmem:[%s481 + $0x62] sm:$0xff]
        %v555 = vld [vmem:[%s481 + $0x6a] sm:$0xff]
        %v556 = vld [vmem:[%s481 + $0x7a] sm:$0xff]
        %v557 = vld [vmem:[%s481 + $0x82] sm:$0xff]
        %v558 = vld [vmem:[%s481 + $0x92] sm:$0xff]
        %v559 = vld [vmem:[%s481 + $0x9a] sm:$0xff]
        %v560 = vld [vmem:[%s481 + $0xaa] sm:$0xff]
        %v561 = vld [vmem:[%s481 + $0xb2] sm:$0xff]
        %v562 = vld [vmem:[%s481 + $0xc2] sm:$0xff]
        %v563 = vld [vmem:[%s481 + $0xca] sm:$0xff]
        %v564 = vld [vmem:[%s481 + $0xda] sm:$0xff]
        %v565 = vld [vmem:[%s481 + $0xe2] sm:$0xff]
        %v566 = vld [vmem:[%s481 + $0xf2] sm:$0xff]
        %v567 = vld [vmem:[%s481 + $0xfa] sm:$0xff]
        %v568 = vld [vmem:[%s481 + $0x10a] sm:$0xff]
        %v569 = vld [vmem:[%s481 + $0x112] sm:$0xff]
        %v570 = vld [vmem:[%s481 + $0x122] sm:$0xff]
        %v571 = vld [vmem:[%s481 + $0x12a] sm:$0xff]
        %v572 = vld [vmem:[%s481 + $0x13a] sm:$0xff]
        %v573 = vld [vmem:[%s481 + $0x142] sm:$0xff]
        %v574 = vld [vmem:[%s481 + $0x152] sm:$0xff]
        %v575 = vld [vmem:[%s481 + $0x15a] sm:$0xff]
        %v576 = vld [vmem:[%s481 + $0x16a] sm:$0xff]
        %v577 = vld [vmem:[%s481 + $0x172] sm:$0xff]
        %s578 = scalar_lea.vmem %s384, 48
        %v579 = vld [vmem:[%s578] sm:$0xff]
        %v580 = vld [vmem:[%s578 + $0x8] sm:$0xff]
        %v581 = vld [vmem:[%s578 + $0x18] sm:$0xff]
        %v582 = vld [vmem:[%s578 + $0x20] sm:$0xff]
        %v583 = vld [vmem:[%s578 + $0x30] sm:$0xff]
        %v584 = vld [vmem:[%s578 + $0x38] sm:$0xff]
        %v585 = vld [vmem:[%s578 + $0x48] sm:$0xff]
        %v586 = vld [vmem:[%s578 + $0x50] sm:$0xff]
        %v587 = vld [vmem:[%s578 + $0x60] sm:$0xff]
        %v588 = vld [vmem:[%s578 + $0x68] sm:$0xff]
        %v589 = vld [vmem:[%s578 + $0x78] sm:$0xff]
        %v590 = vld [vmem:[%s578 + $0x80] sm:$0xff]
        %v591 = vld [vmem:[%s578 + $0x90] sm:$0xff]
        %v592 = vld [vmem:[%s578 + $0x98] sm:$0xff]
        %v593 = vld [vmem:[%s578 + $0xa8] sm:$0xff]
        %v594 = vld [vmem:[%s578 + $0xb0] sm:$0xff]
        %v595 = vld [vmem:[%s578 + $0xc0] sm:$0xff]
        %v596 = vld [vmem:[%s578 + $0xc8] sm:$0xff]
        %v597 = vld [vmem:[%s578 + $0xd8] sm:$0xff]
        %v598 = vld [vmem:[%s578 + $0xe0] sm:$0xff]
        %v599 = vld [vmem:[%s578 + $0xf0] sm:$0xff]
        %v600 = vld [vmem:[%s578 + $0xf8] sm:$0xff]
        %v601 = vld [vmem:[%s578 + $0x108] sm:$0xff]
        %v602 = vld [vmem:[%s578 + $0x110] sm:$0xff]
        %v603 = vld [vmem:[%s578 + $0x120] sm:$0xff]
        %v604 = vld [vmem:[%s578 + $0x128] sm:$0xff]
        %v605 = vld [vmem:[%s578 + $0x138] sm:$0xff]
        %v606 = vld [vmem:[%s578 + $0x140] sm:$0xff]
        %v607 = vld [vmem:[%s578 + $0x150] sm:$0xff]
        %v608 = vld [vmem:[%s578 + $0x158] sm:$0xff]
        %v609 = vld [vmem:[%s578 + $0x168] sm:$0xff]
        %v610 = vld [vmem:[%s578 + $0x170] sm:$0xff]
        %v611 = vld [vmem:[%s578 + $0x1] sm:$0xff]
        %v612 = vld [vmem:[%s578 + $0x9] sm:$0xff]
        %v613 = vld [vmem:[%s578 + $0x19] sm:$0xff]
        %v614 = vld [vmem:[%s578 + $0x21] sm:$0xff]
        %v615 = vld [vmem:[%s578 + $0x31] sm:$0xff]
        %v616 = vld [vmem:[%s578 + $0x39] sm:$0xff]
        %v617 = vld [vmem:[%s578 + $0x49] sm:$0xff]
        %v618 = vld [vmem:[%s578 + $0x51] sm:$0xff]
        %v619 = vld [vmem:[%s578 + $0x61] sm:$0xff]
        %v620 = vld [vmem:[%s578 + $0x69] sm:$0xff]
        %v621 = vld [vmem:[%s578 + $0x79] sm:$0xff]
        %v622 = vld [vmem:[%s578 + $0x81] sm:$0xff]
        %v623 = vld [vmem:[%s578 + $0x91] sm:$0xff]
        %v624 = vld [vmem:[%s578 + $0x99] sm:$0xff]
        %v625 = vld [vmem:[%s578 + $0xa9] sm:$0xff]
        %v626 = vld [vmem:[%s578 + $0xb1] sm:$0xff]
        %v627 = vld [vmem:[%s578 + $0xc1] sm:$0xff]
        %v628 = vld [vmem:[%s578 + $0xc9] sm:$0xff]
        %v629 = vld [vmem:[%s578 + $0xd9] sm:$0xff]
        %v630 = vld [vmem:[%s578 + $0xe1] sm:$0xff]
        %v631 = vld [vmem:[%s578 + $0xf1] sm:$0xff]
        %v632 = vld [vmem:[%s578 + $0xf9] sm:$0xff]
        %v633 = vld [vmem:[%s578 + $0x109] sm:$0xff]
        %v634 = vld [vmem:[%s578 + $0x111] sm:$0xff]
        %v635 = vld [vmem:[%s578 + $0x121] sm:$0xff]
        %v636 = vld [vmem:[%s578 + $0x129] sm:$0xff]
        %v637 = vld [vmem:[%s578 + $0x139] sm:$0xff]
        %v638 = vld [vmem:[%s578 + $0x141] sm:$0xff]
        %v639 = vld [vmem:[%s578 + $0x151] sm:$0xff]
        %v640 = vld [vmem:[%s578 + $0x159] sm:$0xff]
        %v641 = vld [vmem:[%s578 + $0x169] sm:$0xff]
        %v642 = vld [vmem:[%s578 + $0x171] sm:$0xff]
        %v643 = vld [vmem:[%s578 + $0x2] sm:$0xff]
        %v644 = vld [vmem:[%s578 + $0xa] sm:$0xff]
        %v645 = vld [vmem:[%s578 + $0x1a] sm:$0xff]
        %v646 = vld [vmem:[%s578 + $0x22] sm:$0xff]
        %v647 = vld [vmem:[%s578 + $0x32] sm:$0xff]
        %v648 = vld [vmem:[%s578 + $0x3a] sm:$0xff]
        %v649 = vld [vmem:[%s578 + $0x4a] sm:$0xff]
        %v650 = vld [vmem:[%s578 + $0x52] sm:$0xff]
        %v651 = vld [vmem:[%s578 + $0x62] sm:$0xff]
        %v652 = vld [vmem:[%s578 + $0x6a] sm:$0xff]
        %v653 = vld [vmem:[%s578 + $0x7a] sm:$0xff]
        %v654 = vld [vmem:[%s578 + $0x82] sm:$0xff]
        %v655 = vld [vmem:[%s578 + $0x92] sm:$0xff]
        %v656 = vld [vmem:[%s578 + $0x9a] sm:$0xff]
        %v657 = vld [vmem:[%s578 + $0xaa] sm:$0xff]
        %v658 = vld [vmem:[%s578 + $0xb2] sm:$0xff]
        %v659 = vld [vmem:[%s578 + $0xc2] sm:$0xff]
        %v660 = vld [vmem:[%s578 + $0xca] sm:$0xff]
        %v661 = vld [vmem:[%s578 + $0xda] sm:$0xff]
        %v662 = vld [vmem:[%s578 + $0xe2] sm:$0xff]
        %v663 = vld [vmem:[%s578 + $0xf2] sm:$0xff]
        %v664 = vld [vmem:[%s578 + $0xfa] sm:$0xff]
        %v665 = vld [vmem:[%s578 + $0x10a] sm:$0xff]
        %v666 = vld [vmem:[%s578 + $0x112] sm:$0xff]
        %v667 = vld [vmem:[%s578 + $0x122] sm:$0xff]
        %v668 = vld [vmem:[%s578 + $0x12a] sm:$0xff]
        %v669 = vld [vmem:[%s578 + $0x13a] sm:$0xff]
        %v670 = vld [vmem:[%s578 + $0x142] sm:$0xff]
        %v671 = vld [vmem:[%s578 + $0x152] sm:$0xff]
        %v672 = vld [vmem:[%s578 + $0x15a] sm:$0xff]
        %v673 = vld [vmem:[%s578 + $0x16a] sm:$0xff]
        %v674 = vld [vmem:[%s578 + $0x172] sm:$0xff]
        %707 = vrot.lane.b32.xlu0 %v417, 4
        %v708 = vpop.permute.xlu0 %707
        %709 = vrot.lane.b32.xlu0 %v418, 4
        %v710 = vpop.permute.xlu0 %709
        %711 = vrot.lane.b32.xlu0 %v419, 4
        %v712 = vpop.permute.xlu0 %711
        %713 = vrot.lane.b32.xlu0 %v420, 4
        %v714 = vpop.permute.xlu0 %713
        %715 = vrot.lane.b32.xlu0 %v421, 4
        %v716 = vpop.permute.xlu0 %715
        %717 = vrot.lane.b32.xlu0 %v422, 4
        %v718 = vpop.permute.xlu0 %717
        %719 = vrot.lane.b32.xlu0 %v423, 4
        %v720 = vpop.permute.xlu0 %719
        %721 = vrot.lane.b32.xlu0 %v424, 4
        %v722 = vpop.permute.xlu0 %721
        %723 = vrot.lane.b32.xlu0 %v425, 4
        %v724 = vpop.permute.xlu0 %723
        %725 = vrot.lane.b32.xlu0 %v426, 4
        %v726 = vpop.permute.xlu0 %725
        %727 = vrot.lane.b32.xlu0 %v427, 4
        %v728 = vpop.permute.xlu0 %727
        %729 = vrot.lane.b32.xlu0 %v428, 4
        %v730 = vpop.permute.xlu0 %729
        %731 = vrot.lane.b32.xlu0 %v429, 4
        %v732 = vpop.permute.xlu0 %731
        %733 = vrot.lane.b32.xlu0 %v430, 4
        %v734 = vpop.permute.xlu0 %733
        %735 = vrot.lane.b32.xlu0 %v431, 4
        %v736 = vpop.permute.xlu0 %735
        %737 = vrot.lane.b32.xlu0 %v432, 4
        %v738 = vpop.permute.xlu0 %737
        %739 = vrot.lane.b32.xlu0 %v433, 4
        %v740 = vpop.permute.xlu0 %739
        %741 = vrot.lane.b32.xlu0 %v434, 4
        %v742 = vpop.permute.xlu0 %741
        %743 = vrot.lane.b32.xlu0 %v435, 4
        %v744 = vpop.permute.xlu0 %743
        %745 = vrot.lane.b32.xlu0 %v436, 4
        %v746 = vpop.permute.xlu0 %745
        %747 = vrot.lane.b32.xlu0 %v437, 4
        %v748 = vpop.permute.xlu0 %747
        %749 = vrot.lane.b32.xlu0 %v438, 4
        %v750 = vpop.permute.xlu0 %749
        %751 = vrot.lane.b32.xlu0 %v439, 4
        %v752 = vpop.permute.xlu0 %751
        %753 = vrot.lane.b32.xlu0 %v440, 4
        %v754 = vpop.permute.xlu0 %753
        %755 = vrot.lane.b32.xlu0 %v441, 4
        %v756 = vpop.permute.xlu0 %755
        %757 = vrot.lane.b32.xlu0 %v442, 4
        %v758 = vpop.permute.xlu0 %757
        %759 = vrot.lane.b32.xlu0 %v443, 4
        %v760 = vpop.permute.xlu0 %759
        %761 = vrot.lane.b32.xlu0 %v444, 4
        %v762 = vpop.permute.xlu0 %761
        %763 = vrot.lane.b32.xlu0 %v445, 4
        %v764 = vpop.permute.xlu0 %763
        %765 = vrot.lane.b32.xlu0 %v446, 4
        %v766 = vpop.permute.xlu0 %765
        %767 = vrot.lane.b32.xlu0 %v447, 4
        %v768 = vpop.permute.xlu0 %767
        %769 = vrot.lane.b32.xlu0 %v448, 4
        %v770 = vpop.permute.xlu0 %769
        %835 = vrot.lane.b32.xlu0 %v449, 8
        %v836 = vpop.permute.xlu0 %835
        %837 = vrot.lane.b32.xlu0 %v450, 8
        %v838 = vpop.permute.xlu0 %837
        %839 = vrot.lane.b32.xlu0 %v451, 8
        %v840 = vpop.permute.xlu0 %839
        %841 = vrot.lane.b32.xlu0 %v452, 8
        %v842 = vpop.permute.xlu0 %841
        %843 = vrot.lane.b32.xlu0 %v453, 8
        %v844 = vpop.permute.xlu0 %843
        %845 = vrot.lane.b32.xlu0 %v454, 8
        %v846 = vpop.permute.xlu0 %845
        %847 = vrot.lane.b32.xlu0 %v455, 8
        %v848 = vpop.permute.xlu0 %847
        %849 = vrot.lane.b32.xlu0 %v456, 8
        %v850 = vpop.permute.xlu0 %849
        %851 = vrot.lane.b32.xlu0 %v457, 8
        %v852 = vpop.permute.xlu0 %851
        %853 = vrot.lane.b32.xlu0 %v458, 8
        %v854 = vpop.permute.xlu0 %853
        %855 = vrot.lane.b32.xlu0 %v459, 8
        %v856 = vpop.permute.xlu0 %855
        %857 = vrot.lane.b32.xlu0 %v460, 8
        %v858 = vpop.permute.xlu0 %857
        %859 = vrot.lane.b32.xlu0 %v461, 8
        %v860 = vpop.permute.xlu0 %859
        %861 = vrot.lane.b32.xlu0 %v462, 8
        %v862 = vpop.permute.xlu0 %861
        %863 = vrot.lane.b32.xlu0 %v463, 8
        %v864 = vpop.permute.xlu0 %863
        %865 = vrot.lane.b32.xlu0 %v464, 8
        %v866 = vpop.permute.xlu0 %865
        %867 = vrot.lane.b32.xlu0 %v465, 8
        %v868 = vpop.permute.xlu0 %867
        %869 = vrot.lane.b32.xlu0 %v466, 8
        %v870 = vpop.permute.xlu0 %869
        %871 = vrot.lane.b32.xlu0 %v467, 8
        %v872 = vpop.permute.xlu0 %871
        %873 = vrot.lane.b32.xlu0 %v468, 8
        %v874 = vpop.permute.xlu0 %873
        %875 = vrot.lane.b32.xlu0 %v469, 8
        %v876 = vpop.permute.xlu0 %875
        %877 = vrot.lane.b32.xlu0 %v470, 8
        %v878 = vpop.permute.xlu0 %877
        %879 = vrot.lane.b32.xlu0 %v471, 8
        %v880 = vpop.permute.xlu0 %879
        %881 = vrot.lane.b32.xlu0 %v472, 8
        %v882 = vpop.permute.xlu0 %881
        %883 = vrot.lane.b32.xlu0 %v473, 8
        %v884 = vpop.permute.xlu0 %883
        %885 = vrot.lane.b32.xlu0 %v474, 8
        %v886 = vpop.permute.xlu0 %885
        %887 = vrot.lane.b32.xlu0 %v475, 8
        %v888 = vpop.permute.xlu0 %887
        %889 = vrot.lane.b32.xlu0 %v476, 8
        %v890 = vpop.permute.xlu0 %889
        %891 = vrot.lane.b32.xlu0 %v477, 8
        %v892 = vpop.permute.xlu0 %891
        %893 = vrot.lane.b32.xlu0 %v478, 8
        %v894 = vpop.permute.xlu0 %893
        %895 = vrot.lane.b32.xlu0 %v479, 8
        %v896 = vpop.permute.xlu0 %895
        %897 = vrot.lane.b32.xlu0 %v480, 8
        %v898 = vpop.permute.xlu0 %897
        %963 = vrot.lane.b32.xlu0 %v482, 12
        %v964 = vpop.permute.xlu0 %963
        %965 = vrot.lane.b32.xlu0 %v483, 12
        %v966 = vpop.permute.xlu0 %965
        %967 = vrot.lane.b32.xlu0 %v484, 12
        %v968 = vpop.permute.xlu0 %967
        %969 = vrot.lane.b32.xlu0 %v485, 12
        %v970 = vpop.permute.xlu0 %969
        %971 = vrot.lane.b32.xlu0 %v486, 12
        %v972 = vpop.permute.xlu0 %971
        %973 = vrot.lane.b32.xlu0 %v487, 12
        %v974 = vpop.permute.xlu0 %973
        %975 = vrot.lane.b32.xlu0 %v488, 12
        %v976 = vpop.permute.xlu0 %975
        %977 = vrot.lane.b32.xlu0 %v489, 12
        %v978 = vpop.permute.xlu0 %977
        %979 = vrot.lane.b32.xlu0 %v490, 12
        %v980 = vpop.permute.xlu0 %979
        %981 = vrot.lane.b32.xlu0 %v491, 12
        %v982 = vpop.permute.xlu0 %981
        %983 = vrot.lane.b32.xlu0 %v492, 12
        %v984 = vpop.permute.xlu0 %983
        %985 = vrot.lane.b32.xlu0 %v493, 12
        %v986 = vpop.permute.xlu0 %985
        %987 = vrot.lane.b32.xlu0 %v494, 12
        %v988 = vpop.permute.xlu0 %987
        %989 = vrot.lane.b32.xlu0 %v495, 12
        %v990 = vpop.permute.xlu0 %989
        %991 = vrot.lane.b32.xlu0 %v496, 12
        %v992 = vpop.permute.xlu0 %991
        %993 = vrot.lane.b32.xlu0 %v497, 12
        %v994 = vpop.permute.xlu0 %993
        %995 = vrot.lane.b32.xlu0 %v498, 12
        %v996 = vpop.permute.xlu0 %995
        %997 = vrot.lane.b32.xlu0 %v499, 12
        %v998 = vpop.permute.xlu0 %997
        %999 = vrot.lane.b32.xlu0 %v500, 12
        %v1000 = vpop.permute.xlu0 %999
        %1001 = vrot.lane.b32.xlu0 %v501, 12
        %v1002 = vpop.permute.xlu0 %1001
        %1003 = vrot.lane.b32.xlu0 %v502, 12
        %v1004 = vpop.permute.xlu0 %1003
        %1005 = vrot.lane.b32.xlu0 %v503, 12
        %v1006 = vpop.permute.xlu0 %1005
        %1007 = vrot.lane.b32.xlu0 %v504, 12
        %v1008 = vpop.permute.xlu0 %1007
        %1009 = vrot.lane.b32.xlu0 %v505, 12
        %v1010 = vpop.permute.xlu0 %1009
        %1011 = vrot.lane.b32.xlu0 %v506, 12
        %v1012 = vpop.permute.xlu0 %1011
        %1013 = vrot.lane.b32.xlu0 %v507, 12
        %v1014 = vpop.permute.xlu0 %1013
        %1015 = vrot.lane.b32.xlu0 %v508, 12
        %v1016 = vpop.permute.xlu0 %1015
        %1017 = vrot.lane.b32.xlu0 %v509, 12
        %v1018 = vpop.permute.xlu0 %1017
        %1019 = vrot.lane.b32.xlu0 %v510, 12
        %v1020 = vpop.permute.xlu0 %1019
        %1021 = vrot.lane.b32.xlu0 %v511, 12
        %v1022 = vpop.permute.xlu0 %1021
        %1023 = vrot.lane.b32.xlu0 %v512, 12
        %v1024 = vpop.permute.xlu0 %1023
        %1025 = vrot.lane.b32.xlu0 %v513, 12
        %v1026 = vpop.permute.xlu0 %1025
        %1091 = vrot.lane.b32.xlu0 %v514, 16
        %v1092 = vpop.permute.xlu0 %1091
        %1093 = vrot.lane.b32.xlu0 %v515, 16
        %v1094 = vpop.permute.xlu0 %1093
        %1095 = vrot.lane.b32.xlu0 %v516, 16
        %v1096 = vpop.permute.xlu0 %1095
        %1097 = vrot.lane.b32.xlu0 %v517, 16
        %v1098 = vpop.permute.xlu0 %1097
        %1099 = vrot.lane.b32.xlu0 %v518, 16
        %v1100 = vpop.permute.xlu0 %1099
        %1101 = vrot.lane.b32.xlu0 %v519, 16
        %v1102 = vpop.permute.xlu0 %1101
        %1103 = vrot.lane.b32.xlu0 %v520, 16
        %v1104 = vpop.permute.xlu0 %1103
        %1105 = vrot.lane.b32.xlu0 %v521, 16
        %v1106 = vpop.permute.xlu0 %1105
        %1107 = vrot.lane.b32.xlu0 %v522, 16
        %v1108 = vpop.permute.xlu0 %1107
        %1109 = vrot.lane.b32.xlu0 %v523, 16
        %v1110 = vpop.permute.xlu0 %1109
        %1111 = vrot.lane.b32.xlu0 %v524, 16
        %v1112 = vpop.permute.xlu0 %1111
        %1113 = vrot.lane.b32.xlu0 %v525, 16
        %v1114 = vpop.permute.xlu0 %1113
        %1115 = vrot.lane.b32.xlu0 %v526, 16
        %v1116 = vpop.permute.xlu0 %1115
        %1117 = vrot.lane.b32.xlu0 %v527, 16
        %v1118 = vpop.permute.xlu0 %1117
        %1119 = vrot.lane.b32.xlu0 %v528, 16
        %v1120 = vpop.permute.xlu0 %1119
        %1121 = vrot.lane.b32.xlu0 %v529, 16
        %v1122 = vpop.permute.xlu0 %1121
        %1123 = vrot.lane.b32.xlu0 %v530, 16
        %v1124 = vpop.permute.xlu0 %1123
        %1125 = vrot.lane.b32.xlu0 %v531, 16
        %v1126 = vpop.permute.xlu0 %1125
        %1127 = vrot.lane.b32.xlu0 %v532, 16
        %v1128 = vpop.permute.xlu0 %1127
        %1129 = vrot.lane.b32.xlu0 %v533, 16
        %v1130 = vpop.permute.xlu0 %1129
        %1131 = vrot.lane.b32.xlu0 %v534, 16
        %v1132 = vpop.permute.xlu0 %1131
        %1133 = vrot.lane.b32.xlu0 %v535, 16
        %v1134 = vpop.permute.xlu0 %1133
        %1135 = vrot.lane.b32.xlu0 %v536, 16
        %v1136 = vpop.permute.xlu0 %1135
        %1137 = vrot.lane.b32.xlu0 %v537, 16
        %v1138 = vpop.permute.xlu0 %1137
        %1139 = vrot.lane.b32.xlu0 %v538, 16
        %v1140 = vpop.permute.xlu0 %1139
        %1141 = vrot.lane.b32.xlu0 %v539, 16
        %v1142 = vpop.permute.xlu0 %1141
        %1143 = vrot.lane.b32.xlu0 %v540, 16
        %v1144 = vpop.permute.xlu0 %1143
        %1145 = vrot.lane.b32.xlu0 %v541, 16
        %v1146 = vpop.permute.xlu0 %1145
        %1147 = vrot.lane.b32.xlu0 %v542, 16
        %v1148 = vpop.permute.xlu0 %1147
        %1149 = vrot.lane.b32.xlu0 %v543, 16
        %v1150 = vpop.permute.xlu0 %1149
        %1151 = vrot.lane.b32.xlu0 %v544, 16
        %v1152 = vpop.permute.xlu0 %1151
        %1153 = vrot.lane.b32.xlu0 %v545, 16
        %v1154 = vpop.permute.xlu0 %1153
        %1219 = vrot.lane.b32.xlu0 %v546, 20
        %v1220 = vpop.permute.xlu0 %1219
        %1221 = vrot.lane.b32.xlu0 %v547, 20
        %v1222 = vpop.permute.xlu0 %1221
        %1223 = vrot.lane.b32.xlu0 %v548, 20
        %v1224 = vpop.permute.xlu0 %1223
        %1225 = vrot.lane.b32.xlu0 %v549, 20
        %v1226 = vpop.permute.xlu0 %1225
        %1227 = vrot.lane.b32.xlu0 %v550, 20
        %v1228 = vpop.permute.xlu0 %1227
        %1229 = vrot.lane.b32.xlu0 %v551, 20
        %v1230 = vpop.permute.xlu0 %1229
        %1231 = vrot.lane.b32.xlu0 %v552, 20
        %v1232 = vpop.permute.xlu0 %1231
        %1233 = vrot.lane.b32.xlu0 %v553, 20
        %v1234 = vpop.permute.xlu0 %1233
        %1235 = vrot.lane.b32.xlu0 %v554, 20
        %v1236 = vpop.permute.xlu0 %1235
        %1237 = vrot.lane.b32.xlu0 %v555, 20
        %v1238 = vpop.permute.xlu0 %1237
        %1239 = vrot.lane.b32.xlu0 %v556, 20
        %v1240 = vpop.permute.xlu0 %1239
        %1241 = vrot.lane.b32.xlu0 %v557, 20
        %v1242 = vpop.permute.xlu0 %1241
        %1243 = vrot.lane.b32.xlu0 %v558, 20
        %v1244 = vpop.permute.xlu0 %1243
        %1245 = vrot.lane.b32.xlu0 %v559, 20
        %v1246 = vpop.permute.xlu0 %1245
        %1247 = vrot.lane.b32.xlu0 %v560, 20
        %v1248 = vpop.permute.xlu0 %1247
        %1249 = vrot.lane.b32.xlu0 %v561, 20
        %v1250 = vpop.permute.xlu0 %1249
        %1251 = vrot.lane.b32.xlu0 %v562, 20
        %v1252 = vpop.permute.xlu0 %1251
        %1253 = vrot.lane.b32.xlu0 %v563, 20
        %v1254 = vpop.permute.xlu0 %1253
        %1255 = vrot.lane.b32.xlu0 %v564, 20
        %v1256 = vpop.permute.xlu0 %1255
        %1257 = vrot.lane.b32.xlu0 %v565, 20
        %v1258 = vpop.permute.xlu0 %1257
        %1259 = vrot.lane.b32.xlu0 %v566, 20
        %v1260 = vpop.permute.xlu0 %1259
        %1261 = vrot.lane.b32.xlu0 %v567, 20
        %v1262 = vpop.permute.xlu0 %1261
        %1263 = vrot.lane.b32.xlu0 %v568, 20
        %v1264 = vpop.permute.xlu0 %1263
        %1265 = vrot.lane.b32.xlu0 %v569, 20
        %v1266 = vpop.permute.xlu0 %1265
        %1267 = vrot.lane.b32.xlu0 %v570, 20
        %v1268 = vpop.permute.xlu0 %1267
        %1269 = vrot.lane.b32.xlu0 %v571, 20
        %v1270 = vpop.permute.xlu0 %1269
        %1271 = vrot.lane.b32.xlu0 %v572, 20
        %v1272 = vpop.permute.xlu0 %1271
        %1273 = vrot.lane.b32.xlu0 %v573, 20
        %v1274 = vpop.permute.xlu0 %1273
        %1275 = vrot.lane.b32.xlu0 %v574, 20
        %v1276 = vpop.permute.xlu0 %1275
        %1277 = vrot.lane.b32.xlu0 %v575, 20
        %v1278 = vpop.permute.xlu0 %1277
        %1279 = vrot.lane.b32.xlu0 %v576, 20
        %v1280 = vpop.permute.xlu0 %1279
        %1281 = vrot.lane.b32.xlu0 %v577, 20
        %v1282 = vpop.permute.xlu0 %1281
        %1347 = vrot.lane.b32.xlu0 %v579, 24
        %v1348 = vpop.permute.xlu0 %1347
        %1349 = vrot.lane.b32.xlu0 %v580, 24
        %v1350 = vpop.permute.xlu0 %1349
        %1351 = vrot.lane.b32.xlu0 %v581, 24
        %v1352 = vpop.permute.xlu0 %1351
        %1353 = vrot.lane.b32.xlu0 %v582, 24
        %v1354 = vpop.permute.xlu0 %1353
        %1355 = vrot.lane.b32.xlu0 %v583, 24
        %v1356 = vpop.permute.xlu0 %1355
        %1357 = vrot.lane.b32.xlu0 %v584, 24
        %v1358 = vpop.permute.xlu0 %1357
        %1359 = vrot.lane.b32.xlu0 %v585, 24
        %v1360 = vpop.permute.xlu0 %1359
        %1361 = vrot.lane.b32.xlu0 %v586, 24
        %v1362 = vpop.permute.xlu0 %1361
        %1363 = vrot.lane.b32.xlu0 %v587, 24
        %v1364 = vpop.permute.xlu0 %1363
        %1365 = vrot.lane.b32.xlu0 %v588, 24
        %v1366 = vpop.permute.xlu0 %1365
        %1367 = vrot.lane.b32.xlu0 %v589, 24
        %v1368 = vpop.permute.xlu0 %1367
        %1369 = vrot.lane.b32.xlu0 %v590, 24
        %v1370 = vpop.permute.xlu0 %1369
        %1371 = vrot.lane.b32.xlu0 %v591, 24
        %v1372 = vpop.permute.xlu0 %1371
        %1373 = vrot.lane.b32.xlu0 %v592, 24
        %v1374 = vpop.permute.xlu0 %1373
        %1375 = vrot.lane.b32.xlu0 %v593, 24
        %v1376 = vpop.permute.xlu0 %1375
        %1377 = vrot.lane.b32.xlu0 %v594, 24
        %v1378 = vpop.permute.xlu0 %1377
        %1379 = vrot.lane.b32.xlu0 %v595, 24
        %v1380 = vpop.permute.xlu0 %1379
        %1381 = vrot.lane.b32.xlu0 %v596, 24
        %v1382 = vpop.permute.xlu0 %1381
        %1383 = vrot.lane.b32.xlu0 %v597, 24
        %v1384 = vpop.permute.xlu0 %1383
        %1385 = vrot.lane.b32.xlu0 %v598, 24
        %v1386 = vpop.permute.xlu0 %1385
        %1387 = vrot.lane.b32.xlu0 %v599, 24
        %v1388 = vpop.permute.xlu0 %1387
        %1389 = vrot.lane.b32.xlu0 %v600, 24
        %v1390 = vpop.permute.xlu0 %1389
        %1391 = vrot.lane.b32.xlu0 %v601, 24
        %v1392 = vpop.permute.xlu0 %1391
        %1393 = vrot.lane.b32.xlu0 %v602, 24
        %v1394 = vpop.permute.xlu0 %1393
        %1395 = vrot.lane.b32.xlu0 %v603, 24
        %v1396 = vpop.permute.xlu0 %1395
        %1397 = vrot.lane.b32.xlu0 %v604, 24
        %v1398 = vpop.permute.xlu0 %1397
        %1399 = vrot.lane.b32.xlu0 %v605, 24
        %v1400 = vpop.permute.xlu0 %1399
        %1401 = vrot.lane.b32.xlu0 %v606, 24
        %v1402 = vpop.permute.xlu0 %1401
        %1403 = vrot.lane.b32.xlu0 %v607, 24
        %v1404 = vpop.permute.xlu0 %1403
        %1405 = vrot.lane.b32.xlu0 %v608, 24
        %v1406 = vpop.permute.xlu0 %1405
        %1407 = vrot.lane.b32.xlu0 %v609, 24
        %v1408 = vpop.permute.xlu0 %1407
        %1409 = vrot.lane.b32.xlu0 %v610, 24
        %v1410 = vpop.permute.xlu0 %1409
        %1475 = vrot.lane.b32.xlu0 %v611, 28
        %v1476 = vpop.permute.xlu0 %1475
        %1477 = vrot.lane.b32.xlu0 %v612, 28
        %v1478 = vpop.permute.xlu0 %1477
        %1479 = vrot.lane.b32.xlu0 %v613, 28
        %v1480 = vpop.permute.xlu0 %1479
        %1481 = vrot.lane.b32.xlu0 %v614, 28
        %v1482 = vpop.permute.xlu0 %1481
        %1483 = vrot.lane.b32.xlu0 %v615, 28
        %v1484 = vpop.permute.xlu0 %1483
        %1485 = vrot.lane.b32.xlu0 %v616, 28
        %v1486 = vpop.permute.xlu0 %1485
        %1487 = vrot.lane.b32.xlu0 %v617, 28
        %v1488 = vpop.permute.xlu0 %1487
        %1489 = vrot.lane.b32.xlu0 %v618, 28
        %v1490 = vpop.permute.xlu0 %1489
        %1491 = vrot.lane.b32.xlu0 %v619, 28
        %v1492 = vpop.permute.xlu0 %1491
        %1493 = vrot.lane.b32.xlu0 %v620, 28
        %v1494 = vpop.permute.xlu0 %1493
        %1495 = vrot.lane.b32.xlu0 %v621, 28
        %v1496 = vpop.permute.xlu0 %1495
        %1497 = vrot.lane.b32.xlu0 %v622, 28
        %v1498 = vpop.permute.xlu0 %1497
        %1499 = vrot.lane.b32.xlu0 %v623, 28
        %v1500 = vpop.permute.xlu0 %1499
        %1501 = vrot.lane.b32.xlu0 %v624, 28
        %v1502 = vpop.permute.xlu0 %1501
        %1503 = vrot.lane.b32.xlu0 %v625, 28
        %v1504 = vpop.permute.xlu0 %1503
        %1505 = vrot.lane.b32.xlu0 %v626, 28
        %v1506 = vpop.permute.xlu0 %1505
        %1507 = vrot.lane.b32.xlu0 %v627, 28
        %v1508 = vpop.permute.xlu0 %1507
        %1509 = vrot.lane.b32.xlu0 %v628, 28
        %v1510 = vpop.permute.xlu0 %1509
        %1511 = vrot.lane.b32.xlu0 %v629, 28
        %v1512 = vpop.permute.xlu0 %1511
        %1513 = vrot.lane.b32.xlu0 %v630, 28
        %v1514 = vpop.permute.xlu0 %1513
        %1515 = vrot.lane.b32.xlu0 %v631, 28
        %v1516 = vpop.permute.xlu0 %1515
        %1517 = vrot.lane.b32.xlu0 %v632, 28
        %v1518 = vpop.permute.xlu0 %1517
        %1519 = vrot.lane.b32.xlu0 %v633, 28
        %v1520 = vpop.permute.xlu0 %1519
        %1521 = vrot.lane.b32.xlu0 %v634, 28
        %v1522 = vpop.permute.xlu0 %1521
        %1523 = vrot.lane.b32.xlu0 %v635, 28
        %v1524 = vpop.permute.xlu0 %1523
        %1525 = vrot.lane.b32.xlu0 %v636, 28
        %v1526 = vpop.permute.xlu0 %1525
        %1527 = vrot.lane.b32.xlu0 %v637, 28
        %v1528 = vpop.permute.xlu0 %1527
        %1529 = vrot.lane.b32.xlu0 %v638, 28
        %v1530 = vpop.permute.xlu0 %1529
        %1531 = vrot.lane.b32.xlu0 %v639, 28
        %v1532 = vpop.permute.xlu0 %1531
        %1533 = vrot.lane.b32.xlu0 %v640, 28
        %v1534 = vpop.permute.xlu0 %1533
        %1535 = vrot.lane.b32.xlu0 %v641, 28
        %v1536 = vpop.permute.xlu0 %1535
        %1537 = vrot.lane.b32.xlu0 %v642, 28
        %v1538 = vpop.permute.xlu0 %1537
        %1603 = vrot.lane.b32.xlu0 %v643, 32
        %v1604 = vpop.permute.xlu0 %1603
        %1605 = vrot.lane.b32.xlu0 %v644, 32
        %v1606 = vpop.permute.xlu0 %1605
        %1607 = vrot.lane.b32.xlu0 %v645, 32
        %v1608 = vpop.permute.xlu0 %1607
        %1609 = vrot.lane.b32.xlu0 %v646, 32
        %v1610 = vpop.permute.xlu0 %1609
        %1611 = vrot.lane.b32.xlu0 %v647, 32
        %v1612 = vpop.permute.xlu0 %1611
        %1613 = vrot.lane.b32.xlu0 %v648, 32
        %v1614 = vpop.permute.xlu0 %1613
        %1615 = vrot.lane.b32.xlu0 %v649, 32
        %v1616 = vpop.permute.xlu0 %1615
        %1617 = vrot.lane.b32.xlu0 %v650, 32
        %v1618 = vpop.permute.xlu0 %1617
        %1619 = vrot.lane.b32.xlu0 %v651, 32
        %v1620 = vpop.permute.xlu0 %1619
        %1621 = vrot.lane.b32.xlu0 %v652, 32
        %v1622 = vpop.permute.xlu0 %1621
        %1623 = vrot.lane.b32.xlu0 %v653, 32
        %v1624 = vpop.permute.xlu0 %1623
        %1625 = vrot.lane.b32.xlu0 %v654, 32
        %v1626 = vpop.permute.xlu0 %1625
        %1627 = vrot.lane.b32.xlu0 %v655, 32
        %v1628 = vpop.permute.xlu0 %1627
        %1629 = vrot.lane.b32.xlu0 %v656, 32
        %v1630 = vpop.permute.xlu0 %1629
        %1631 = vrot.lane.b32.xlu0 %v657, 32
        %v1632 = vpop.permute.xlu0 %1631
        %1633 = vrot.lane.b32.xlu0 %v658, 32
        %v1634 = vpop.permute.xlu0 %1633
        %1635 = vrot.lane.b32.xlu0 %v659, 32
        %v1636 = vpop.permute.xlu0 %1635
        %1637 = vrot.lane.b32.xlu0 %v660, 32
        %v1638 = vpop.permute.xlu0 %1637
        %1639 = vrot.lane.b32.xlu0 %v661, 32
        %v1640 = vpop.permute.xlu0 %1639
        %1641 = vrot.lane.b32.xlu0 %v662, 32
        %v1642 = vpop.permute.xlu0 %1641
        %1643 = vrot.lane.b32.xlu0 %v663, 32
        %v1644 = vpop.permute.xlu0 %1643
        %1645 = vrot.lane.b32.xlu0 %v664, 32
        %v1646 = vpop.permute.xlu0 %1645
        %1647 = vrot.lane.b32.xlu0 %v665, 32
        %v1648 = vpop.permute.xlu0 %1647
        %1649 = vrot.lane.b32.xlu0 %v666, 32
        %v1650 = vpop.permute.xlu0 %1649
        %1651 = vrot.lane.b32.xlu0 %v667, 32
        %v1652 = vpop.permute.xlu0 %1651
        %1653 = vrot.lane.b32.xlu0 %v668, 32
        %v1654 = vpop.permute.xlu0 %1653
        %1655 = vrot.lane.b32.xlu0 %v669, 32
        %v1656 = vpop.permute.xlu0 %1655
        %1657 = vrot.lane.b32.xlu0 %v670, 32
        %v1658 = vpop.permute.xlu0 %1657
        %1659 = vrot.lane.b32.xlu0 %v671, 32
        %v1660 = vpop.permute.xlu0 %1659
        %1661 = vrot.lane.b32.xlu0 %v672, 32
        %v1662 = vpop.permute.xlu0 %1661
        %1663 = vrot.lane.b32.xlu0 %v673, 32
        %v1664 = vpop.permute.xlu0 %1663
        %1665 = vrot.lane.b32.xlu0 %v674, 32
        %v1666 = vpop.permute.xlu0 %1665
        %vm1699 = vcmask 31744
        %v1700 = vsel %vm1699, %v385, %v708
        %v1701 = vsel %vm1699, %v386, %v710
        %v1702 = vsel %vm1699, %v387, %v712
        %v1703 = vsel %vm1699, %v388, %v714
        %v1704 = vsel %vm1699, %v389, %v716
        %v1705 = vsel %vm1699, %v390, %v718
        %v1706 = vsel %vm1699, %v391, %v720
        %v1707 = vsel %vm1699, %v392, %v722
        %v1708 = vsel %vm1699, %v393, %v724
        %v1709 = vsel %vm1699, %v394, %v726
        %v1710 = vsel %vm1699, %v395, %v728
        %v1711 = vsel %vm1699, %v396, %v730
        %v1712 = vsel %vm1699, %v397, %v732
        %v1713 = vsel %vm1699, %v398, %v734
        %v1714 = vsel %vm1699, %v399, %v736
        %v1715 = vsel %vm1699, %v400, %v738
        %v1716 = vsel %vm1699, %v401, %v740
        %v1717 = vsel %vm1699, %v402, %v742
        %v1718 = vsel %vm1699, %v403, %v744
        %v1719 = vsel %vm1699, %v404, %v746
        %v1720 = vsel %vm1699, %v405, %v748
        %v1721 = vsel %vm1699, %v406, %v750
        %v1722 = vsel %vm1699, %v407, %v752
        %v1723 = vsel %vm1699, %v408, %v754
        %v1724 = vsel %vm1699, %v409, %v756
        %v1725 = vsel %vm1699, %v410, %v758
        %v1726 = vsel %vm1699, %v411, %v760
        %v1727 = vsel %vm1699, %v412, %v762
        %v1728 = vsel %vm1699, %v413, %v764
        %v1729 = vsel %vm1699, %v414, %v766
        %v1730 = vsel %vm1699, %v415, %v768
        %v1731 = vsel %vm1699, %v416, %v770
        %vm1732 = vcmask 64512
        %v1733 = vsel %vm1732, %v1700, %v836
        %v1734 = vsel %vm1732, %v1701, %v838
        %v1735 = vsel %vm1732, %v1702, %v840
        %v1736 = vsel %vm1732, %v1703, %v842
        %v1737 = vsel %vm1732, %v1704, %v844
        %v1738 = vsel %vm1732, %v1705, %v846
        %v1739 = vsel %vm1732, %v1706, %v848
        %v1740 = vsel %vm1732, %v1707, %v850
        %v1741 = vsel %vm1732, %v1708, %v852
        %v1742 = vsel %vm1732, %v1709, %v854
        %v1743 = vsel %vm1732, %v1710, %v856
        %v1744 = vsel %vm1732, %v1711, %v858
        %v1745 = vsel %vm1732, %v1712, %v860
        %v1746 = vsel %vm1732, %v1713, %v862
        %v1747 = vsel %vm1732, %v1714, %v864
        %v1748 = vsel %vm1732, %v1715, %v866
        %v1749 = vsel %vm1732, %v1716, %v868
        %v1750 = vsel %vm1732, %v1717, %v870
        %v1751 = vsel %vm1732, %v1718, %v872
        %v1752 = vsel %vm1732, %v1719, %v874
        %v1753 = vsel %vm1732, %v1720, %v876
        %v1754 = vsel %vm1732, %v1721, %v878
        %v1755 = vsel %vm1732, %v1722, %v880
        %v1756 = vsel %vm1732, %v1723, %v882
        %v1757 = vsel %vm1732, %v1724, %v884
        %v1758 = vsel %vm1732, %v1725, %v886
        %v1759 = vsel %vm1732, %v1726, %v888
        %v1760 = vsel %vm1732, %v1727, %v890
        %v1761 = vsel %vm1732, %v1728, %v892
        %v1762 = vsel %vm1732, %v1729, %v894
        %v1763 = vsel %vm1732, %v1730, %v896
        %v1764 = vsel %vm1732, %v1731, %v898
        %vm1765 = vcmask 97280
        %v1766 = vsel %vm1765, %v1733, %v964
        %v1767 = vsel %vm1765, %v1734, %v966
        %v1768 = vsel %vm1765, %v1735, %v968
        %v1769 = vsel %vm1765, %v1736, %v970
        %v1770 = vsel %vm1765, %v1737, %v972
        %v1771 = vsel %vm1765, %v1738, %v974
        %v1772 = vsel %vm1765, %v1739, %v976
        %v1773 = vsel %vm1765, %v1740, %v978
        %v1774 = vsel %vm1765, %v1741, %v980
        %v1775 = vsel %vm1765, %v1742, %v982
        %v1776 = vsel %vm1765, %v1743, %v984
        %v1777 = vsel %vm1765, %v1744, %v986
        %v1778 = vsel %vm1765, %v1745, %v988
        %v1779 = vsel %vm1765, %v1746, %v990
        %v1780 = vsel %vm1765, %v1747, %v992
        %v1781 = vsel %vm1765, %v1748, %v994
        %v1782 = vsel %vm1765, %v1749, %v996
        %v1783 = vsel %vm1765, %v1750, %v998
        %v1784 = vsel %vm1765, %v1751, %v1000
        %v1785 = vsel %vm1765, %v1752, %v1002
        %v1786 = vsel %vm1765, %v1753, %v1004
        %v1787 = vsel %vm1765, %v1754, %v1006
        %v1788 = vsel %vm1765, %v1755, %v1008
        %v1789 = vsel %vm1765, %v1756, %v1010
        %v1790 = vsel %vm1765, %v1757, %v1012
        %v1791 = vsel %vm1765, %v1758, %v1014
        %v1792 = vsel %vm1765, %v1759, %v1016
        %v1793 = vsel %vm1765, %v1760, %v1018
        %v1794 = vsel %vm1765, %v1761, %v1020
        %v1795 = vsel %vm1765, %v1762, %v1022
        %v1796 = vsel %vm1765, %v1763, %v1024
        %v1797 = vsel %vm1765, %v1764, %v1026
        %vm1798 = vcmask 130048
        %v1799 = vsel %vm1798, %v1766, %v1092
        %v1800 = vsel %vm1798, %v1767, %v1094
        %v1801 = vsel %vm1798, %v1768, %v1096
        %v1802 = vsel %vm1798, %v1769, %v1098
        %v1803 = vsel %vm1798, %v1770, %v1100
        %v1804 = vsel %vm1798, %v1771, %v1102
        %v1805 = vsel %vm1798, %v1772, %v1104
        %v1806 = vsel %vm1798, %v1773, %v1106
        %v1807 = vsel %vm1798, %v1774, %v1108
        %v1808 = vsel %vm1798, %v1775, %v1110
        %v1809 = vsel %vm1798, %v1776, %v1112
        %v1810 = vsel %vm1798, %v1777, %v1114
        %v1811 = vsel %vm1798, %v1778, %v1116
        %v1812 = vsel %vm1798, %v1779, %v1118
        %v1813 = vsel %vm1798, %v1780, %v1120
        %v1814 = vsel %vm1798, %v1781, %v1122
        %v1815 = vsel %vm1798, %v1782, %v1124
        %v1816 = vsel %vm1798, %v1783, %v1126
        %v1817 = vsel %vm1798, %v1784, %v1128
        %v1818 = vsel %vm1798, %v1785, %v1130
        %v1819 = vsel %vm1798, %v1786, %v1132
        %v1820 = vsel %vm1798, %v1787, %v1134
        %v1821 = vsel %vm1798, %v1788, %v1136
        %v1822 = vsel %vm1798, %v1789, %v1138
        %v1823 = vsel %vm1798, %v1790, %v1140
        %v1824 = vsel %vm1798, %v1791, %v1142
        %v1825 = vsel %vm1798, %v1792, %v1144
        %v1826 = vsel %vm1798, %v1793, %v1146
        %v1827 = vsel %vm1798, %v1794, %v1148
        %v1828 = vsel %vm1798, %v1795, %v1150
        %v1829 = vsel %vm1798, %v1796, %v1152
        %v1830 = vsel %vm1798, %v1797, %v1154
        %vm1831 = vcmask 162816
        %v1832 = vsel %vm1831, %v1799, %v1220
        %v1833 = vsel %vm1831, %v1800, %v1222
        %v1834 = vsel %vm1831, %v1801, %v1224
        %v1835 = vsel %vm1831, %v1802, %v1226
        %v1836 = vsel %vm1831, %v1803, %v1228
        %v1837 = vsel %vm1831, %v1804, %v1230
        %v1838 = vsel %vm1831, %v1805, %v1232
        %v1839 = vsel %vm1831, %v1806, %v1234
        %v1840 = vsel %vm1831, %v1807, %v1236
        %v1841 = vsel %vm1831, %v1808, %v1238
        %v1842 = vsel %vm1831, %v1809, %v1240
        %v1843 = vsel %vm1831, %v1810, %v1242
        %v1844 = vsel %vm1831, %v1811, %v1244
        %v1845 = vsel %vm1831, %v1812, %v1246
        %v1846 = vsel %vm1831, %v1813, %v1248
        %v1847 = vsel %vm1831, %v1814, %v1250
        %v1848 = vsel %vm1831, %v1815, %v1252
        %v1849 = vsel %vm1831, %v1816, %v1254
        %v1850 = vsel %vm1831, %v1817, %v1256
        %v1851 = vsel %vm1831, %v1818, %v1258
        %v1852 = vsel %vm1831, %v1819, %v1260
        %v1853 = vsel %vm1831, %v1820, %v1262
        %v1854 = vsel %vm1831, %v1821, %v1264
        %v1855 = vsel %vm1831, %v1822, %v1266
        %v1856 = vsel %vm1831, %v1823, %v1268
        %v1857 = vsel %vm1831, %v1824, %v1270
        %v1858 = vsel %vm1831, %v1825, %v1272
        %v1859 = vsel %vm1831, %v1826, %v1274
        %v1860 = vsel %vm1831, %v1827, %v1276
        %v1861 = vsel %vm1831, %v1828, %v1278
        %v1862 = vsel %vm1831, %v1829, %v1280
        %v1863 = vsel %vm1831, %v1830, %v1282
        %vm1864 = vcmask 195584
        %v1865 = vsel %vm1864, %v1832, %v1348
        %v1866 = vsel %vm1864, %v1833, %v1350
        %v1867 = vsel %vm1864, %v1834, %v1352
        %v1868 = vsel %vm1864, %v1835, %v1354
        %v1869 = vsel %vm1864, %v1836, %v1356
        %v1870 = vsel %vm1864, %v1837, %v1358
        %v1871 = vsel %vm1864, %v1838, %v1360
        %v1872 = vsel %vm1864, %v1839, %v1362
        %v1873 = vsel %vm1864, %v1840, %v1364
        %v1874 = vsel %vm1864, %v1841, %v1366
        %v1875 = vsel %vm1864, %v1842, %v1368
        %v1876 = vsel %vm1864, %v1843, %v1370
        %v1877 = vsel %vm1864, %v1844, %v1372
        %v1878 = vsel %vm1864, %v1845, %v1374
        %v1879 = vsel %vm1864, %v1846, %v1376
        %v1880 = vsel %vm1864, %v1847, %v1378
        %v1881 = vsel %vm1864, %v1848, %v1380
        %v1882 = vsel %vm1864, %v1849, %v1382
        %v1883 = vsel %vm1864, %v1850, %v1384
        %v1884 = vsel %vm1864, %v1851, %v1386
        %v1885 = vsel %vm1864, %v1852, %v1388
        %v1886 = vsel %vm1864, %v1853, %v1390
        %v1887 = vsel %vm1864, %v1854, %v1392
        %v1888 = vsel %vm1864, %v1855, %v1394
        %v1889 = vsel %vm1864, %v1856, %v1396
        %v1890 = vsel %vm1864, %v1857, %v1398
        %v1891 = vsel %vm1864, %v1858, %v1400
        %v1892 = vsel %vm1864, %v1859, %v1402
        %v1893 = vsel %vm1864, %v1860, %v1404
        %v1894 = vsel %vm1864, %v1861, %v1406
        %v1895 = vsel %vm1864, %v1862, %v1408
        %v1896 = vsel %vm1864, %v1863, %v1410
        %vm1897 = vcmask 228352
        %v1898 = vsel %vm1897, %v1865, %v1476
        %v1899 = vsel %vm1897, %v1866, %v1478
        %v1900 = vsel %vm1897, %v1867, %v1480
        %v1901 = vsel %vm1897, %v1868, %v1482
        %v1902 = vsel %vm1897, %v1869, %v1484
        %v1903 = vsel %vm1897, %v1870, %v1486
        %v1904 = vsel %vm1897, %v1871, %v1488
        %v1905 = vsel %vm1897, %v1872, %v1490
        %v1906 = vsel %vm1897, %v1873, %v1492
        %v1907 = vsel %vm1897, %v1874, %v1494
        %v1908 = vsel %vm1897, %v1875, %v1496
        %v1909 = vsel %vm1897, %v1876, %v1498
        %v1910 = vsel %vm1897, %v1877, %v1500
        %v1911 = vsel %vm1897, %v1878, %v1502
        %v1912 = vsel %vm1897, %v1879, %v1504
        %v1913 = vsel %vm1897, %v1880, %v1506
        %v1914 = vsel %vm1897, %v1881, %v1508
        %v1915 = vsel %vm1897, %v1882, %v1510
        %v1916 = vsel %vm1897, %v1883, %v1512
        %v1917 = vsel %vm1897, %v1884, %v1514
        %v1918 = vsel %vm1897, %v1885, %v1516
        %v1919 = vsel %vm1897, %v1886, %v1518
        %v1920 = vsel %vm1897, %v1887, %v1520
        %v1921 = vsel %vm1897, %v1888, %v1522
        %v1922 = vsel %vm1897, %v1889, %v1524
        %v1923 = vsel %vm1897, %v1890, %v1526
        %v1924 = vsel %vm1897, %v1891, %v1528
        %v1925 = vsel %vm1897, %v1892, %v1530
        %v1926 = vsel %vm1897, %v1893, %v1532
        %v1927 = vsel %vm1897, %v1894, %v1534
        %v1928 = vsel %vm1897, %v1895, %v1536
        %v1929 = vsel %vm1897, %v1896, %v1538
        %vm1930 = vcmask 261120
        %v1931 = vsel %vm1930, %v1898, %v1604
        %v1932 = vsel %vm1930, %v1899, %v1606
        %v1933 = vsel %vm1930, %v1900, %v1608
        %v1934 = vsel %vm1930, %v1901, %v1610
        %v1935 = vsel %vm1930, %v1902, %v1612
        %v1936 = vsel %vm1930, %v1903, %v1614
        %v1937 = vsel %vm1930, %v1904, %v1616
        %v1938 = vsel %vm1930, %v1905, %v1618
        %v1939 = vsel %vm1930, %v1906, %v1620
        %v1940 = vsel %vm1930, %v1907, %v1622
        %v1941 = vsel %vm1930, %v1908, %v1624
        %v1942 = vsel %vm1930, %v1909, %v1626
        %v1943 = vsel %vm1930, %v1910, %v1628
        %v1944 = vsel %vm1930, %v1911, %v1630
        %v1945 = vsel %vm1930, %v1912, %v1632
        %v1946 = vsel %vm1930, %v1913, %v1634
        %v1947 = vsel %vm1930, %v1914, %v1636
        %v1948 = vsel %vm1930, %v1915, %v1638
        %v1949 = vsel %vm1930, %v1916, %v1640
        %v1950 = vsel %vm1930, %v1917, %v1642
        %v1951 = vsel %vm1930, %v1918, %v1644
        %v1952 = vsel %vm1930, %v1919, %v1646
        %v1953 = vsel %vm1930, %v1920, %v1648
        %v1954 = vsel %vm1930, %v1921, %v1650
        %v1955 = vsel %vm1930, %v1922, %v1652
        %v1956 = vsel %vm1930, %v1923, %v1654
        %v1957 = vsel %vm1930, %v1924, %v1656
        %v1958 = vsel %vm1930, %v1925, %v1658
        %v1959 = vsel %vm1930, %v1926, %v1660
        %v1960 = vsel %vm1930, %v1927, %v1662
        %v1961 = vsel %vm1930, %v1928, %v1664
        %v1962 = vsel %vm1930, %v1929, %v1666
        %v1963 = vld [vmem:[%s1] sm:$0xff]
        %v1964 = vld [vmem:[%s1 + $0x8] sm:$0xff]
        %v1965 = vld [vmem:[%s1 + $0x10] sm:$0xff]
        %v1966 = vld [vmem:[%s1 + $0x18] sm:$0xff]
        %v1967 = vld [vmem:[%s1 + $0x20] sm:$0xf]
        %v1968 = vld [vmem:[%s2] sm:$0x1]
        %v1970 = vlaneseq
        %v1971 = vshrl.u32 %v1970, 7
        %v1972 = vsub.s32 0, %v1971
        %v1973 = vrot.slane %v1968, %v1972
        %vm1975 = vcmask 293888
        %v1977 = vsel %vm1975, %v1931, 0
        %v1980 = vsel %vm1975, %v1932, 0
        %v1983 = vsel %vm1975, %v1933, 0
        %v1986 = vsel %vm1975, %v1934, 0
        %v1989 = vsel %vm1975, %v1935, 0
        %v1992 = vsel %vm1975, %v1936, 0
        %v1995 = vsel %vm1975, %v1937, 0
        %v1998 = vsel %vm1975, %v1938, 0
        %v2001 = vsel %vm1975, %v1939, 0
        %v2004 = vsel %vm1975, %v1940, 0
        %v2007 = vsel %vm1975, %v1941, 0
        %v2010 = vsel %vm1975, %v1942, 0
        %v2013 = vsel %vm1975, %v1943, 0
        %v2016 = vsel %vm1975, %v1944, 0
        %v2019 = vsel %vm1975, %v1945, 0
        %v2022 = vsel %vm1975, %v1946, 0
        %v2025 = vsel %vm1975, %v1947, 0
        %v2028 = vsel %vm1975, %v1948, 0
        %v2031 = vsel %vm1975, %v1949, 0
        %v2034 = vsel %vm1975, %v1950, 0
        %v2037 = vsel %vm1975, %v1951, 0
        %v2040 = vsel %vm1975, %v1952, 0
        %v2043 = vsel %vm1975, %v1953, 0
        %v2046 = vsel %vm1975, %v1954, 0
        %v2049 = vsel %vm1975, %v1955, 0
        %v2052 = vsel %vm1975, %v1956, 0
        %v2055 = vsel %vm1975, %v1957, 0
        %v2058 = vsel %vm1975, %v1958, 0
        %v2061 = vsel %vm1975, %v1959, 0
        %v2064 = vsel %vm1975, %v1960, 0
        %v2067 = vsel %vm1975, %v1961, 0
        %v2070 = vsel %vm1975, %v1962, 0
        %vm2072 = vcmask 1043456
        %v2074 = vsel %vm2072, %v1967, 0
        %2076 = vmatprep.subr.mxu0 0.0
        %2077 = vmatpush1.msra.mxu0 %v1963
        %2078 = vmatprep.subr.mxu0 0.0
        %2079 = vmatpush1.msra.mxu0 %v1964
        %2080 = vmatprep.subr.mxu0 0.0
        %2081 = vmatpush1.msra.mxu0 %v1965
        %2082 = vmatprep.subr.mxu0 0.0
        %2083 = vmatpush1.msra.mxu0 %v1966
        %2084 = vmatprep.subr.mxu0 0.0
        %2085 = vmatpush1.msra.mxu0 %v2074
        %2086 = vmatprep.subr.mxu0 0.0
        %2087 = vmatpush1.msra.mxu0 0.0
        %2088 = vmatprep.subr.mxu0 0.0
        %2089 = vmatpush1.msra.mxu0 0.0
        %2090 = vmatprep.subr.mxu0 0.0
        %2091 = vmatpush1.msra.mxu0 0.0
        %2092 = vmatprep.subr.mxu0 0.0
        %2093 = vmatpush1.msra.mxu0 0.0
        %2094 = vmatprep.subr.mxu0 0.0
        %2095 = vmatpush1.msra.mxu0 0.0
        %2096 = vmatprep.subr.mxu0 0.0
        %2097 = vmatpush1.msra.mxu0 0.0
        %2098 = vmatprep.subr.mxu0 0.0
        %2099 = vmatpush1.msra.mxu0 0.0
        %2100 = vmatprep.subr.mxu0 0.0
        %2101 = vmatpush1.msra.mxu0 0.0
        %2102 = vmatprep.subr.mxu0 0.0
        %2103 = vmatpush1.msra.mxu0 0.0
        %2104 = vmatprep.subr.mxu0 0.0
        %2105 = vmatpush1.msra.mxu0 0.0
        %2106 = vmatprep.subr.mxu0 0.0
        %2107 = vmatpush1.msra.mxu0 0.0
        %2108 = vmatprep.subr.mxu0 0.0
        %2109 = vmatpush1.msra.mxu0 0.0
        %2110 = vmatprep.subr.mxu0 0.0
        %2111 = vmatpush1.msra.mxu0 0.0
        %2112 = vmatprep.subr.mxu0 0.0
        %2113 = vmatpush1.msra.mxu0 0.0
        %2114 = vmatprep.subr.mxu0 0.0
        %2115 = vmatpush1.msra.mxu0 0.0
        %2116 = vmatprep.subr.mxu0 0.0
        %2117 = vmatpush1.msra.mxu0 0.0
        %2118 = vmatprep.subr.mxu0 0.0
        %2119 = vmatpush1.msra.mxu0 0.0
        %2120 = vmatprep.subr.mxu0 0.0
        %2121 = vmatpush1.msra.mxu0 0.0
        %2122 = vmatprep.subr.mxu0 0.0
        %2123 = vmatpush1.msra.mxu0 0.0
        %2124 = vmatprep.subr.mxu0 0.0
        %2125 = vmatpush1.msra.mxu0 0.0
        %2126 = vmatprep.subr.mxu0 0.0
        %2127 = vmatpush1.msra.mxu0 0.0
        %2128 = vmatprep.subr.mxu0 0.0
        %2129 = vmatpush1.msra.mxu0 0.0
        %2130 = vmatprep.subr.mxu0 0.0
        %2131 = vmatpush1.msra.mxu0 0.0
        %2132 = vmatprep.subr.mxu0 0.0
        %2133 = vmatpush1.msra.mxu0 0.0
        %2134 = vmatprep.subr.mxu0 0.0
        %2135 = vmatpush1.msra.mxu0 0.0
        %2136 = vmatprep.subr.mxu0 0.0
        %2137 = vmatpush1.msra.mxu0 0.0
        %2138 = vmatprep.subr.mxu0 0.0
        %2139 = vmatpush1.msra.mxu0 0.0
        %2140 = vmatprep.mubr.f32.mxu0 0.0
        %2141 = vmatmul.mubr.f32.gmra.mrb[0].mxu0 %v1977
        %v2142 = vpop.f32.mrb[0].mxu0
        %v2143 = vadd.f32 %v1973, %v2142
        %v2144 = vpop.f32.mrb[0].mxu0
        %2145 = vmatprep.mubr.f32.mxu0 0.0
        %2146 = vmatmul.mubr.f32.gmra.mrb[0].mxu0 %v1980
        %v2147 = vpop.f32.mrb[0].mxu0
        %v2148 = vadd.f32 %v1973, %v2147
        %v2149 = vpop.f32.mrb[0].mxu0
        %2150 = vmatprep.mubr.f32.mxu0 0.0
        %2151 = vmatmul.mubr.f32.gmra.mrb[0].mxu0 %v1983
        %v2152 = vpop.f32.mrb[0].mxu0
        %v2153 = vadd.f32 %v1973, %v2152
        %v2154 = vpop.f32.mrb[0].mxu0
        %2155 = vmatprep.mubr.f32.mxu0 0.0
        %2156 = vmatmul.mubr.f32.gmra.mrb[0].mxu0 %v1986
        %v2157 = vpop.f32.mrb[0].mxu0
        %v2158 = vadd.f32 %v1973, %v2157
        %v2159 = vpop.f32.mrb[0].mxu0
        %2160 = vmatprep.mubr.f32.mxu0 0.0
        %2161 = vmatmul.mubr.f32.gmra.mrb[0].mxu0 %v1989
        %v2162 = vpop.f32.mrb[0].mxu0
        %v2163 = vadd.f32 %v1973, %v2162
        %v2164 = vpop.f32.mrb[0].mxu0
        %2165 = vmatprep.mubr.f32.mxu0 0.0
        %2166 = vmatmul.mubr.f32.gmra.mrb[0].mxu0 %v1992
        %v2167 = vpop.f32.mrb[0].mxu0
        %v2168 = vadd.f32 %v1973, %v2167
        %v2169 = vpop.f32.mrb[0].mxu0
        %2170 = vmatprep.mubr.f32.mxu0 0.0
        %2171 = vmatmul.mubr.f32.gmra.mrb[0].mxu0 %v1995
        %v2172 = vpop.f32.mrb[0].mxu0
        %v2173 = vadd.f32 %v1973, %v2172
        %v2174 = vpop.f32.mrb[0].mxu0
        %2175 = vmatprep.mubr.f32.mxu0 0.0
        %2176 = vmatmul.mubr.f32.gmra.mrb[0].mxu0 %v1998
        %v2177 = vpop.f32.mrb[0].mxu0
        %v2178 = vadd.f32 %v1973, %v2177
        %v2179 = vpop.f32.mrb[0].mxu0
        %2180 = vmatprep.mubr.f32.mxu0 0.0
        %2181 = vmatmul.mubr.f32.gmra.mrb[0].mxu0 %v2001
        %v2182 = vpop.f32.mrb[0].mxu0
        %v2183 = vadd.f32 %v1973, %v2182
        %v2184 = vpop.f32.mrb[0].mxu0
        %2185 = vmatprep.mubr.f32.mxu0 0.0
        %2186 = vmatmul.mubr.f32.gmra.mrb[0].mxu0 %v2004
        %v2187 = vpop.f32.mrb[0].mxu0
        %v2188 = vadd.f32 %v1973, %v2187
        %v2189 = vpop.f32.mrb[0].mxu0
        %2190 = vmatprep.mubr.f32.mxu0 0.0
        %2191 = vmatmul.mubr.f32.gmra.mrb[0].mxu0 %v2007
        %v2192 = vpop.f32.mrb[0].mxu0
        %v2193 = vadd.f32 %v1973, %v2192
        %v2194 = vpop.f32.mrb[0].mxu0
        %2195 = vmatprep.mubr.f32.mxu0 0.0
        %2196 = vmatmul.mubr.f32.gmra.mrb[0].mxu0 %v2010
        %v2197 = vpop.f32.mrb[0].mxu0
        %v2198 = vadd.f32 %v1973, %v2197
        %v2199 = vpop.f32.mrb[0].mxu0
        %2200 = vmatprep.mubr.f32.mxu0 0.0
        %2201 = vmatmul.mubr.f32.gmra.mrb[0].mxu0 %v2013
        %v2202 = vpop.f32.mrb[0].mxu0
        %v2203 = vadd.f32 %v1973, %v2202
        %v2204 = vpop.f32.mrb[0].mxu0
        %2205 = vmatprep.mubr.f32.mxu0 0.0
        %2206 = vmatmul.mubr.f32.gmra.mrb[0].mxu0 %v2016
        %v2207 = vpop.f32.mrb[0].mxu0
        %v2208 = vadd.f32 %v1973, %v2207
        %v2209 = vpop.f32.mrb[0].mxu0
        %2210 = vmatprep.mubr.f32.mxu0 0.0
        %2211 = vmatmul.mubr.f32.gmra.mrb[0].mxu0 %v2019
        %v2212 = vpop.f32.mrb[0].mxu0
        %v2213 = vadd.f32 %v1973, %v2212
        %v2214 = vpop.f32.mrb[0].mxu0
        %2215 = vmatprep.mubr.f32.mxu0 0.0
        %2216 = vmatmul.mubr.f32.gmra.mrb[0].mxu0 %v2022
        %v2217 = vpop.f32.mrb[0].mxu0
        %v2218 = vadd.f32 %v1973, %v2217
        %v2219 = vpop.f32.mrb[0].mxu0
        %2220 = vmatprep.mubr.f32.mxu0 0.0
        %2221 = vmatmul.mubr.f32.gmra.mrb[0].mxu0 %v2025
        %v2222 = vpop.f32.mrb[0].mxu0
        %v2223 = vadd.f32 %v1973, %v2222
        %v2224 = vpop.f32.mrb[0].mxu0
        %2225 = vmatprep.mubr.f32.mxu0 0.0
        %2226 = vmatmul.mubr.f32.gmra.mrb[0].mxu0 %v2028
        %v2227 = vpop.f32.mrb[0].mxu0
        %v2228 = vadd.f32 %v1973, %v2227
        %v2229 = vpop.f32.mrb[0].mxu0
        %2230 = vmatprep.mubr.f32.mxu0 0.0
        %2231 = vmatmul.mubr.f32.gmra.mrb[0].mxu0 %v2031
        %v2232 = vpop.f32.mrb[0].mxu0
        %v2233 = vadd.f32 %v1973, %v2232
        %v2234 = vpop.f32.mrb[0].mxu0
        %2235 = vmatprep.mubr.f32.mxu0 0.0
        %2236 = vmatmul.mubr.f32.gmra.mrb[0].mxu0 %v2034
        %v2237 = vpop.f32.mrb[0].mxu0
        %v2238 = vadd.f32 %v1973, %v2237
        %v2239 = vpop.f32.mrb[0].mxu0
        %2240 = vmatprep.mubr.f32.mxu0 0.0
        %2241 = vmatmul.mubr.f32.gmra.mrb[0].mxu0 %v2037
        %v2242 = vpop.f32.mrb[0].mxu0
        %v2243 = vadd.f32 %v1973, %v2242
        %v2244 = vpop.f32.mrb[0].mxu0
        %2245 = vmatprep.mubr.f32.mxu0 0.0
        %2246 = vmatmul.mubr.f32.gmra.mrb[0].mxu0 %v2040
        %v2247 = vpop.f32.mrb[0].mxu0
        %v2248 = vadd.f32 %v1973, %v2247
        %v2249 = vpop.f32.mrb[0].mxu0
        %2250 = vmatprep.mubr.f32.mxu0 0.0
        %2251 = vmatmul.mubr.f32.gmra.mrb[0].mxu0 %v2043
        %v2252 = vpop.f32.mrb[0].mxu0
        %v2253 = vadd.f32 %v1973, %v2252
        %v2254 = vpop.f32.mrb[0].mxu0
        %2255 = vmatprep.mubr.f32.mxu0 0.0
        %2256 = vmatmul.mubr.f32.gmra.mrb[0].mxu0 %v2046
        %v2257 = vpop.f32.mrb[0].mxu0
        %v2258 = vadd.f32 %v1973, %v2257
        %v2259 = vpop.f32.mrb[0].mxu0
        %2260 = vmatprep.mubr.f32.mxu0 0.0
        %2261 = vmatmul.mubr.f32.gmra.mrb[0].mxu0 %v2049
        %v2262 = vpop.f32.mrb[0].mxu0
        %v2263 = vadd.f32 %v1973, %v2262
        %v2264 = vpop.f32.mrb[0].mxu0
        %2265 = vmatprep.mubr.f32.mxu0 0.0
        %2266 = vmatmul.mubr.f32.gmra.mrb[0].mxu0 %v2052
        %v2267 = vpop.f32.mrb[0].mxu0
        %v2268 = vadd.f32 %v1973, %v2267
        %v2269 = vpop.f32.mrb[0].mxu0
        %2270 = vmatprep.mubr.f32.mxu0 0.0
        %2271 = vmatmul.mubr.f32.gmra.mrb[0].mxu0 %v2055
        %v2272 = vpop.f32.mrb[0].mxu0
        %v2273 = vadd.f32 %v1973, %v2272
        %v2274 = vpop.f32.mrb[0].mxu0
        %2275 = vmatprep.mubr.f32.mxu0 0.0
        %2276 = vmatmul.mubr.f32.gmra.mrb[0].mxu0 %v2058
        %v2277 = vpop.f32.mrb[0].mxu0
        %v2278 = vadd.f32 %v1973, %v2277
        %v2279 = vpop.f32.mrb[0].mxu0
        %2280 = vmatprep.mubr.f32.mxu0 0.0
        %2281 = vmatmul.mubr.f32.gmra.mrb[0].mxu0 %v2061
        %v2282 = vpop.f32.mrb[0].mxu0
        %v2283 = vadd.f32 %v1973, %v2282
        %v2284 = vpop.f32.mrb[0].mxu0
        %2285 = vmatprep.mubr.f32.mxu0 0.0
        %2286 = vmatmul.mubr.f32.gmra.mrb[0].mxu0 %v2064
        %v2287 = vpop.f32.mrb[0].mxu0
        %v2288 = vadd.f32 %v1973, %v2287
        %v2289 = vpop.f32.mrb[0].mxu0
        %2290 = vmatprep.mubr.f32.mxu0 0.0
        %2291 = vmatmul.mubr.f32.gmra.mrb[0].mxu0 %v2067
        %v2292 = vpop.f32.mrb[0].mxu0
        %v2293 = vadd.f32 %v1973, %v2292
        %v2294 = vpop.f32.mrb[0].mxu0
        %2295 = vmatprep.mubr.f32.mxu0 0.0
        %2296 = vmatmul.mubr.f32.gmra.mrb[0].mxu0 %v2070
        %v2297 = vpop.f32.mrb[0].mxu0
        %v2298 = vadd.f32 %v1973, %v2297
        %v2299 = vpop.f32.mrb[0].mxu0
        %2300 = vdwg.mxu0
        %vm2301 = vcmp.gt.f32.partialorder %v2143, 0.0
        %vm2302 = vcmp.gt.f32.partialorder %v2148, 0.0
        %vm2303 = vcmp.gt.f32.partialorder %v2153, 0.0
        %vm2304 = vcmp.gt.f32.partialorder %v2158, 0.0
        %vm2305 = vcmp.gt.f32.partialorder %v2163, 0.0
        %vm2306 = vcmp.gt.f32.partialorder %v2168, 0.0
        %vm2307 = vcmp.gt.f32.partialorder %v2173, 0.0
        %vm2308 = vcmp.gt.f32.partialorder %v2178, 0.0
        %vm2309 = vcmp.gt.f32.partialorder %v2183, 0.0
        %vm2310 = vcmp.gt.f32.partialorder %v2188, 0.0
        %vm2311 = vcmp.gt.f32.partialorder %v2193, 0.0
        %vm2312 = vcmp.gt.f32.partialorder %v2198, 0.0
        %vm2313 = vcmp.gt.f32.partialorder %v2203, 0.0
        %vm2314 = vcmp.gt.f32.partialorder %v2208, 0.0
        %vm2315 = vcmp.gt.f32.partialorder %v2213, 0.0
        %vm2316 = vcmp.gt.f32.partialorder %v2218, 0.0
        %vm2317 = vcmp.gt.f32.partialorder %v2223, 0.0
        %vm2318 = vcmp.gt.f32.partialorder %v2228, 0.0
        %vm2319 = vcmp.gt.f32.partialorder %v2233, 0.0
        %vm2320 = vcmp.gt.f32.partialorder %v2238, 0.0
        %vm2321 = vcmp.gt.f32.partialorder %v2243, 0.0
        %vm2322 = vcmp.gt.f32.partialorder %v2248, 0.0
        %vm2323 = vcmp.gt.f32.partialorder %v2253, 0.0
        %vm2324 = vcmp.gt.f32.partialorder %v2258, 0.0
        %vm2325 = vcmp.gt.f32.partialorder %v2263, 0.0
        %vm2326 = vcmp.gt.f32.partialorder %v2268, 0.0
        %vm2327 = vcmp.gt.f32.partialorder %v2273, 0.0
        %vm2328 = vcmp.gt.f32.partialorder %v2278, 0.0
        %vm2329 = vcmp.gt.f32.partialorder %v2283, 0.0
        %vm2330 = vcmp.gt.f32.partialorder %v2288, 0.0
        %vm2331 = vcmp.gt.f32.partialorder %v2293, 0.0
        %vm2332 = vcmp.gt.f32.partialorder %v2298, 0.0
        %v2333 = vmul.f32 %v2143, 0.1
        %v2334 = vmul.f32 %v2148, 0.1
        %v2335 = vmul.f32 %v2153, 0.1
        %v2336 = vmul.f32 %v2158, 0.1
        %v2337 = vmul.f32 %v2163, 0.1
        %v2338 = vmul.f32 %v2168, 0.1
        %v2339 = vmul.f32 %v2173, 0.1
        %v2340 = vmul.f32 %v2178, 0.1
        %v2341 = vmul.f32 %v2183, 0.1
        %v2342 = vmul.f32 %v2188, 0.1
        %v2343 = vmul.f32 %v2193, 0.1
        %v2344 = vmul.f32 %v2198, 0.1
        %v2345 = vmul.f32 %v2203, 0.1
        %v2346 = vmul.f32 %v2208, 0.1
        %v2347 = vmul.f32 %v2213, 0.1
        %v2348 = vmul.f32 %v2218, 0.1
        %v2349 = vmul.f32 %v2223, 0.1
        %v2350 = vmul.f32 %v2228, 0.1
        %v2351 = vmul.f32 %v2233, 0.1
        %v2352 = vmul.f32 %v2238, 0.1
        %v2353 = vmul.f32 %v2243, 0.1
        %v2354 = vmul.f32 %v2248, 0.1
        %v2355 = vmul.f32 %v2253, 0.1
        %v2356 = vmul.f32 %v2258, 0.1
        %v2357 = vmul.f32 %v2263, 0.1
        %v2358 = vmul.f32 %v2268, 0.1
        %v2359 = vmul.f32 %v2273, 0.1
        %v2360 = vmul.f32 %v2278, 0.1
        %v2361 = vmul.f32 %v2283, 0.1
        %v2362 = vmul.f32 %v2288, 0.1
        %v2363 = vmul.f32 %v2293, 0.1
        %v2364 = vmul.f32 %v2298, 0.1
        %v2365 = vsel %vm2301, %v2143, %v2333
        %v2366 = vsel %vm2302, %v2148, %v2334
        %v2367 = vsel %vm2303, %v2153, %v2335
        %v2368 = vsel %vm2304, %v2158, %v2336
        %v2369 = vsel %vm2305, %v2163, %v2337
        %v2370 = vsel %vm2306, %v2168, %v2338
        %v2371 = vsel %vm2307, %v2173, %v2339
        %v2372 = vsel %vm2308, %v2178, %v2340
        %v2373 = vsel %vm2309, %v2183, %v2341
        %v2374 = vsel %vm2310, %v2188, %v2342
        %v2375 = vsel %vm2311, %v2193, %v2343
        %v2376 = vsel %vm2312, %v2198, %v2344
        %v2377 = vsel %vm2313, %v2203, %v2345
        %v2378 = vsel %vm2314, %v2208, %v2346
        %v2379 = vsel %vm2315, %v2213, %v2347
        %v2380 = vsel %vm2316, %v2218, %v2348
        %v2381 = vsel %vm2317, %v2223, %v2349
        %v2382 = vsel %vm2318, %v2228, %v2350
        %v2383 = vsel %vm2319, %v2233, %v2351
        %v2384 = vsel %vm2320, %v2238, %v2352
        %v2385 = vsel %vm2321, %v2243, %v2353
        %v2386 = vsel %vm2322, %v2248, %v2354
        %v2387 = vsel %vm2323, %v2253, %v2355
        %v2388 = vsel %vm2324, %v2258, %v2356
        %v2389 = vsel %vm2325, %v2263, %v2357
        %v2390 = vsel %vm2326, %v2268, %v2358
        %v2391 = vsel %vm2327, %v2273, %v2359
        %v2392 = vsel %vm2328, %v2278, %v2360
        %v2393 = vsel %vm2329, %v2283, %v2361
        %v2394 = vsel %vm2330, %v2288, %v2362
        %v2395 = vsel %vm2331, %v2293, %v2363
        %v2396 = vsel %vm2332, %v2298, %v2364
        %2397 = vst.msk [vmem:[#allocation2] sm:$0xff] %vm1732, %v2365
        %2398 = vst.msk [vmem:[#allocation2 + $0x8] sm:$0xff] %vm1732, %v2366
        %2399 = vst.msk [vmem:[#allocation2 + $0x10] sm:$0xff] %vm1732, %v2367
        %2400 = vst.msk [vmem:[#allocation2 + $0x18] sm:$0xff] %vm1732, %v2368
        %2401 = vst.msk [vmem:[#allocation2 + $0x20] sm:$0xff] %vm1732, %v2369
        %2402 = vst.msk [vmem:[#allocation2 + $0x28] sm:$0xff] %vm1732, %v2370
        %2403 = vst.msk [vmem:[#allocation2 + $0x30] sm:$0xff] %vm1732, %v2371
        %2404 = vst.msk [vmem:[#allocation2 + $0x38] sm:$0xff] %vm1732, %v2372
        %2405 = vst.msk [vmem:[#allocation2 + $0x40] sm:$0xff] %vm1732, %v2373
        %2406 = vst.msk [vmem:[#allocation2 + $0x48] sm:$0xff] %vm1732, %v2374
        %2407 = vst.msk [vmem:[#allocation2 + $0x50] sm:$0xff] %vm1732, %v2375
        %2408 = vst.msk [vmem:[#allocation2 + $0x58] sm:$0xff] %vm1732, %v2376
        %2409 = vst.msk [vmem:[#allocation2 + $0x60] sm:$0xff] %vm1732, %v2377
        %2410 = vst.msk [vmem:[#allocation2 + $0x68] sm:$0xff] %vm1732, %v2378
        %2411 = vst.msk [vmem:[#allocation2 + $0x70] sm:$0xff] %vm1732, %v2379
        %2412 = vst.msk [vmem:[#allocation2 + $0x78] sm:$0xff] %vm1732, %v2380
        %2413 = vst.msk [vmem:[#allocation2 + $0x80] sm:$0xff] %vm1732, %v2381
        %2414 = vst.msk [vmem:[#allocation2 + $0x88] sm:$0xff] %vm1732, %v2382
        %2415 = vst.msk [vmem:[#allocation2 + $0x90] sm:$0xff] %vm1732, %v2383
        %2416 = vst.msk [vmem:[#allocation2 + $0x98] sm:$0xff] %vm1732, %v2384
        %2417 = vst.msk [vmem:[#allocation2 + $0xa0] sm:$0xff] %vm1732, %v2385
        %2418 = vst.msk [vmem:[#allocation2 + $0xa8] sm:$0xff] %vm1732, %v2386
        %2419 = vst.msk [vmem:[#allocation2 + $0xb0] sm:$0xff] %vm1732, %v2387
        %2420 = vst.msk [vmem:[#allocation2 + $0xb8] sm:$0xff] %vm1732, %v2388
        %2421 = vst.msk [vmem:[#allocation2 + $0xc0] sm:$0xff] %vm1732, %v2389
        %2422 = vst.msk [vmem:[#allocation2 + $0xc8] sm:$0xff] %vm1732, %v2390
        %2423 = vst.msk [vmem:[#allocation2 + $0xd0] sm:$0xff] %vm1732, %v2391
        %2424 = vst.msk [vmem:[#allocation2 + $0xd8] sm:$0xff] %vm1732, %v2392
        %2425 = vst.msk [vmem:[#allocation2 + $0xe0] sm:$0xff] %vm1732, %v2393
        %2426 = vst.msk [vmem:[#allocation2 + $0xe8] sm:$0xff] %vm1732, %v2394
        %2427 = vst.msk [vmem:[#allocation2 + $0xf0] sm:$0xff] %vm1732, %v2395
        %2428 = vst.msk [vmem:[#allocation2 + $0xf8] sm:$0xff] %vm1732, %v2396
        %v2429 = vld [vmem:[#allocation2] ss:$2 sm:$0xff]
        %s2430 = scalar_lea.vmem [#allocation2], 16
        %v2431 = vld [vmem:[%s2430] ss:$2 sm:$0xff]
        %s2432 = scalar_lea.vmem [#allocation2], 32
        %v2433 = vld [vmem:[%s2432] ss:$2 sm:$0xff]
        %s2434 = scalar_lea.vmem [#allocation2], 48
        %v2435 = vld [vmem:[%s2434] ss:$2 sm:$0xff]
        %s2436 = scalar_lea.vmem [#allocation2], 64
        %v2437 = vld [vmem:[%s2436] ss:$2 sm:$0xff]
        %s2438 = scalar_lea.vmem [#allocation2], 80
        %v2439 = vld [vmem:[%s2438] ss:$2 sm:$0xff]
        %s2440 = scalar_lea.vmem [#allocation2], 96
        %v2441 = vld [vmem:[%s2440] ss:$2 sm:$0xff]
        %s2442 = scalar_lea.vmem [#allocation2], 112
        %v2443 = vld [vmem:[%s2442] ss:$2 sm:$0xff]
        %s2444 = scalar_lea.vmem [#allocation2], 128
        %v2445 = vld [vmem:[%s2444] ss:$2 sm:$0xff]
        %s2446 = scalar_lea.vmem [#allocation2], 144
        %v2447 = vld [vmem:[%s2446] ss:$2 sm:$0xff]
        %s2448 = scalar_lea.vmem [#allocation2], 160
        %v2449 = vld [vmem:[%s2448] ss:$2 sm:$0xff]
        %s2450 = scalar_lea.vmem [#allocation2], 176
        %v2451 = vld [vmem:[%s2450] ss:$2 sm:$0xff]
        %s2452 = scalar_lea.vmem [#allocation2], 192
        %v2453 = vld [vmem:[%s2452] ss:$2 sm:$0xff]
        %s2454 = scalar_lea.vmem [#allocation2], 208
        %v2455 = vld [vmem:[%s2454] ss:$2 sm:$0xff]
        %s2456 = scalar_lea.vmem [#allocation2], 224
        %v2457 = vld [vmem:[%s2456] ss:$2 sm:$0xff]
        %s2458 = scalar_lea.vmem [#allocation2], 240
        %v2459 = vld [vmem:[%s2458] ss:$2 sm:$0xff]
        %s2460 = scalar_lea.vmem [#allocation2], 1
        %v2461 = vld [vmem:[%s2460] ss:$2 sm:$0xff]
        %s2462 = scalar_lea.vmem [#allocation2], 17
        %v2463 = vld [vmem:[%s2462] ss:$2 sm:$0xff]
        %s2464 = scalar_lea.vmem [#allocation2], 33
        %v2465 = vld [vmem:[%s2464] ss:$2 sm:$0xff]
        %s2466 = scalar_lea.vmem [#allocation2], 49
        %v2467 = vld [vmem:[%s2466] ss:$2 sm:$0xff]
        %s2468 = scalar_lea.vmem [#allocation2], 65
        %v2469 = vld [vmem:[%s2468] ss:$2 sm:$0xff]
        %s2470 = scalar_lea.vmem [#allocation2], 81
        %v2471 = vld [vmem:[%s2470] ss:$2 sm:$0xff]
        %s2472 = scalar_lea.vmem [#allocation2], 97
        %v2473 = vld [vmem:[%s2472] ss:$2 sm:$0xff]
        %s2474 = scalar_lea.vmem [#allocation2], 113
        %v2475 = vld [vmem:[%s2474] ss:$2 sm:$0xff]
        %s2476 = scalar_lea.vmem [#allocation2], 129
        %v2477 = vld [vmem:[%s2476] ss:$2 sm:$0xff]
        %s2478 = scalar_lea.vmem [#allocation2], 145
        %v2479 = vld [vmem:[%s2478] ss:$2 sm:$0xff]
        %s2480 = scalar_lea.vmem [#allocation2], 161
        %v2481 = vld [vmem:[%s2480] ss:$2 sm:$0xff]
        %s2482 = scalar_lea.vmem [#allocation2], 177
        %v2483 = vld [vmem:[%s2482] ss:$2 sm:$0xff]
        %s2484 = scalar_lea.vmem [#allocation2], 193
        %v2485 = vld [vmem:[%s2484] ss:$2 sm:$0xff]
        %s2486 = scalar_lea.vmem [#allocation2], 209
        %v2487 = vld [vmem:[%s2486] ss:$2 sm:$0xff]
        %s2488 = scalar_lea.vmem [#allocation2], 225
        %v2489 = vld [vmem:[%s2488] ss:$2 sm:$0xff]
        %s2490 = scalar_lea.vmem [#allocation2], 241
        %v2491 = vld [vmem:[%s2490] ss:$2 sm:$0xff]
        %v2492 = vmax.f32 %v2429, %v2461
        %v2493 = vmax.f32 %v2431, %v2463
        %v2494 = vmax.f32 %v2433, %v2465
        %v2495 = vmax.f32 %v2435, %v2467
        %v2496 = vmax.f32 %v2437, %v2469
        %v2497 = vmax.f32 %v2439, %v2471
        %v2498 = vmax.f32 %v2441, %v2473
        %v2499 = vmax.f32 %v2443, %v2475
        %v2500 = vmax.f32 %v2445, %v2477
        %v2501 = vmax.f32 %v2447, %v2479
        %v2502 = vmax.f32 %v2449, %v2481
        %v2503 = vmax.f32 %v2451, %v2483
        %v2504 = vmax.f32 %v2453, %v2485
        %v2505 = vmax.f32 %v2455, %v2487
        %v2506 = vmax.f32 %v2457, %v2489
        %v2507 = vmax.f32 %v2459, %v2491
        %v2508 = vmax.f32 %v2492, %v2493
        %v2509 = vmax.f32 %v2494, %v2495
        %v2510 = vmax.f32 %v2496, %v2497
        %v2511 = vmax.f32 %v2498, %v2499
        %v2512 = vmax.f32 %v2500, %v2501
        %v2513 = vmax.f32 %v2502, %v2503
        %v2514 = vmax.f32 %v2504, %v2505
        %v2515 = vmax.f32 %v2506, %v2507
        %2516 = vst.msk [vmem:[#allocation3] sm:$0xff] %vm1732, 0.0
        %vm2517 = vcmask 58368
        %2518 = vst.msk [vmem:[#allocation3 + $0x8] sm:$0x3] %vm2517, 0.0
        %2519 = vst.msk [vmem:[#allocation3 + $0x10] sm:$0xff] %vm1732, 0.0
        %2520 = vst.msk [vmem:[#allocation3 + $0x18] sm:$0x3] %vm2517, 0.0
        %2521 = vst.msk [vmem:[#allocation3 + $0x20] sm:$0xff] %vm1732, 0.0
        %2522 = vst.msk [vmem:[#allocation3 + $0x28] sm:$0x3] %vm2517, 0.0
        %2523 = vst.msk [vmem:[#allocation3 + $0x30] sm:$0xff] %vm1732, 0.0
        %2524 = vst.msk [vmem:[#allocation3 + $0x38] sm:$0x3] %vm2517, 0.0
        %2525 = vst.msk [vmem:[#allocation3 + $0x40] sm:$0xff] %vm1732, 0.0
        %2526 = vst.msk [vmem:[#allocation3 + $0x48] sm:$0x3] %vm2517, 0.0
        %2527 = vst.msk [vmem:[#allocation3 + $0x50] sm:$0xff] %vm1732, 0.0
        %2528 = vst.msk [vmem:[#allocation3 + $0x58] sm:$0x3] %vm2517, 0.0
        %2529 = vst.msk [vmem:[#allocation3 + $0x60] sm:$0xff] %vm1732, 0.0
        %2530 = vst.msk [vmem:[#allocation3 + $0x68] sm:$0x3] %vm2517, 0.0
        %2531 = vst.msk [vmem:[#allocation3 + $0x70] sm:$0xff] %vm1732, 0.0
        %2532 = vst.msk [vmem:[#allocation3 + $0x78] sm:$0x3] %vm2517, 0.0
        %2533 = vst.msk [vmem:[#allocation3 + $0x80] sm:$0xff] %vm1732, 0.0
        %2534 = vst.msk [vmem:[#allocation3 + $0x88] sm:$0x3] %vm2517, 0.0
        %2535 = vst.msk [vmem:[#allocation3 + $0x90] sm:$0xff] %vm1732, 0.0
        %2536 = vst.msk [vmem:[#allocation3 + $0x98] sm:$0x3] %vm2517, 0.0
        %s2537 = scalar_lea.vmem [#allocation3], 16
        %2538 = vst.msk [vmem:[%s2537 + $0x1] sm:$0xff] %vm1732, %v2508
        %2539 = vst.msk [vmem:[%s2537 + $0x11] sm:$0xff] %vm1732, %v2509
        %2540 = vst.msk [vmem:[%s2537 + $0x21] sm:$0xff] %vm1732, %v2510
        %2541 = vst.msk [vmem:[%s2537 + $0x31] sm:$0xff] %vm1732, %v2511
        %2542 = vst.msk [vmem:[%s2537 + $0x41] sm:$0xff] %vm1732, %v2512
        %2543 = vst.msk [vmem:[%s2537 + $0x51] sm:$0xff] %vm1732, %v2513
        %2544 = vst.msk [vmem:[%s2537 + $0x61] sm:$0xff] %vm1732, %v2514
        %2545 = vst.msk [vmem:[%s2537 + $0x71] sm:$0xff] %vm1732, %v2515
        %v2546 = vld [vmem:[#allocation3] sm:$0xff]
        %v2547 = vld [vmem:[#allocation3 + $0x10] sm:$0xff]
        %v2548 = vld [vmem:[#allocation3 + $0x20] sm:$0xff]
        %v2549 = vld [vmem:[#allocation3 + $0x30] sm:$0xff]
        %v2550 = vld [vmem:[#allocation3 + $0x40] sm:$0xff]
        %v2551 = vld [vmem:[#allocation3 + $0x50] sm:$0xff]
        %v2552 = vld [vmem:[#allocation3 + $0x60] sm:$0xff]
        %v2553 = vld [vmem:[#allocation3 + $0x70] sm:$0xff]
        %v2554 = vld [vmem:[#allocation3 + $0x1] sm:$0xff]
        %v2555 = vld [vmem:[#allocation3 + $0x11] sm:$0xff]
        %v2556 = vld [vmem:[#allocation3 + $0x21] sm:$0xff]
        %v2557 = vld [vmem:[#allocation3 + $0x31] sm:$0xff]
        %v2558 = vld [vmem:[#allocation3 + $0x41] sm:$0xff]
        %v2559 = vld [vmem:[#allocation3 + $0x51] sm:$0xff]
        %v2560 = vld [vmem:[#allocation3 + $0x61] sm:$0xff]
        %v2561 = vld [vmem:[#allocation3 + $0x71] sm:$0xff]
        %v2562 = vld [vmem:[#allocation3 + $0x2] sm:$0xff]
        %v2563 = vld [vmem:[#allocation3 + $0x12] sm:$0xff]
        %v2564 = vld [vmem:[#allocation3 + $0x22] sm:$0xff]
        %v2565 = vld [vmem:[#allocation3 + $0x32] sm:$0xff]
        %v2566 = vld [vmem:[#allocation3 + $0x42] sm:$0xff]
        %v2567 = vld [vmem:[#allocation3 + $0x52] sm:$0xff]
        %v2568 = vld [vmem:[#allocation3 + $0x62] sm:$0xff]
        %v2569 = vld [vmem:[#allocation3 + $0x72] sm:$0xff]
        %v2570 = vld [vmem:[%s2537] sm:$0xff]
        %v2571 = vld [vmem:[%s2537 + $0x10] sm:$0xff]
        %v2572 = vld [vmem:[%s2537 + $0x20] sm:$0xff]
        %v2573 = vld [vmem:[%s2537 + $0x30] sm:$0xff]
        %v2574 = vld [vmem:[%s2537 + $0x40] sm:$0xff]
        %v2575 = vld [vmem:[%s2537 + $0x50] sm:$0xff]
        %v2576 = vld [vmem:[%s2537 + $0x60] sm:$0xff]
        %v2577 = vld [vmem:[%s2537 + $0x70] sm:$0xff]
        %v2578 = vld [vmem:[%s2537 + $0x1] sm:$0xff]
        %v2579 = vld [vmem:[%s2537 + $0x11] sm:$0xff]
        %v2580 = vld [vmem:[%s2537 + $0x21] sm:$0xff]
        %v2581 = vld [vmem:[%s2537 + $0x31] sm:$0xff]
        %v2582 = vld [vmem:[%s2537 + $0x41] sm:$0xff]
        %v2583 = vld [vmem:[%s2537 + $0x51] sm:$0xff]
        %v2584 = vld [vmem:[%s2537 + $0x61] sm:$0xff]
        %v2585 = vld [vmem:[%s2537 + $0x71] sm:$0xff]
        %v2586 = vld [vmem:[%s2537 + $0x2] sm:$0xff]
        %v2587 = vld [vmem:[%s2537 + $0x12] sm:$0xff]
        %v2588 = vld [vmem:[%s2537 + $0x22] sm:$0xff]
        %v2589 = vld [vmem:[%s2537 + $0x32] sm:$0xff]
        %v2590 = vld [vmem:[%s2537 + $0x42] sm:$0xff]
        %v2591 = vld [vmem:[%s2537 + $0x52] sm:$0xff]
        %v2592 = vld [vmem:[%s2537 + $0x62] sm:$0xff]
        %v2593 = vld [vmem:[%s2537 + $0x72] sm:$0xff]
        %s2594 = scalar_lea.vmem [#allocation3], 32
        %v2595 = vld [vmem:[%s2594] sm:$0xff]
        %v2596 = vld [vmem:[%s2594 + $0x10] sm:$0xff]
        %v2597 = vld [vmem:[%s2594 + $0x20] sm:$0xff]
        %v2598 = vld [vmem:[%s2594 + $0x30] sm:$0xff]
        %v2599 = vld [vmem:[%s2594 + $0x40] sm:$0xff]
        %v2600 = vld [vmem:[%s2594 + $0x50] sm:$0xff]
        %v2601 = vld [vmem:[%s2594 + $0x60] sm:$0xff]
        %v2602 = vld [vmem:[%s2594 + $0x70] sm:$0xff]
        %v2603 = vld [vmem:[%s2594 + $0x1] sm:$0xff]
        %v2604 = vld [vmem:[%s2594 + $0x11] sm:$0xff]
        %v2605 = vld [vmem:[%s2594 + $0x21] sm:$0xff]
        %v2606 = vld [vmem:[%s2594 + $0x31] sm:$0xff]
        %v2607 = vld [vmem:[%s2594 + $0x41] sm:$0xff]
        %v2608 = vld [vmem:[%s2594 + $0x51] sm:$0xff]
        %v2609 = vld [vmem:[%s2594 + $0x61] sm:$0xff]
        %v2610 = vld [vmem:[%s2594 + $0x71] sm:$0xff]
        %v2611 = vld [vmem:[%s2594 + $0x2] sm:$0xff]
        %v2612 = vld [vmem:[%s2594 + $0x12] sm:$0xff]
        %v2613 = vld [vmem:[%s2594 + $0x22] sm:$0xff]
        %v2614 = vld [vmem:[%s2594 + $0x32] sm:$0xff]
        %v2615 = vld [vmem:[%s2594 + $0x42] sm:$0xff]
        %v2616 = vld [vmem:[%s2594 + $0x52] sm:$0xff]
        %v2617 = vld [vmem:[%s2594 + $0x62] sm:$0xff]
        %v2618 = vld [vmem:[%s2594 + $0x72] sm:$0xff]
        %2627 = vrot.lane.b32.xlu0 %v2554, 8
        %v2628 = vpop.permute.xlu0 %2627
        %2629 = vrot.lane.b32.xlu0 %v2555, 8
        %v2630 = vpop.permute.xlu0 %2629
        %2631 = vrot.lane.b32.xlu0 %v2556, 8
        %v2632 = vpop.permute.xlu0 %2631
        %2633 = vrot.lane.b32.xlu0 %v2557, 8
        %v2634 = vpop.permute.xlu0 %2633
        %2635 = vrot.lane.b32.xlu0 %v2558, 8
        %v2636 = vpop.permute.xlu0 %2635
        %2637 = vrot.lane.b32.xlu0 %v2559, 8
        %v2638 = vpop.permute.xlu0 %2637
        %2639 = vrot.lane.b32.xlu0 %v2560, 8
        %v2640 = vpop.permute.xlu0 %2639
        %2641 = vrot.lane.b32.xlu0 %v2561, 8
        %v2642 = vpop.permute.xlu0 %2641
        %2659 = vrot.lane.b32.xlu0 %v2562, 16
        %v2660 = vpop.permute.xlu0 %2659
        %2661 = vrot.lane.b32.xlu0 %v2563, 16
        %v2662 = vpop.permute.xlu0 %2661
        %2663 = vrot.lane.b32.xlu0 %v2564, 16
        %v2664 = vpop.permute.xlu0 %2663
        %2665 = vrot.lane.b32.xlu0 %v2565, 16
        %v2666 = vpop.permute.xlu0 %2665
        %2667 = vrot.lane.b32.xlu0 %v2566, 16
        %v2668 = vpop.permute.xlu0 %2667
        %2669 = vrot.lane.b32.xlu0 %v2567, 16
        %v2670 = vpop.permute.xlu0 %2669
        %2671 = vrot.lane.b32.xlu0 %v2568, 16
        %v2672 = vpop.permute.xlu0 %2671
        %2673 = vrot.lane.b32.xlu0 %v2569, 16
        %v2674 = vpop.permute.xlu0 %2673
        %2691 = vrot.lane.b32.xlu0 %v2570, 24
        %v2692 = vpop.permute.xlu0 %2691
        %2693 = vrot.lane.b32.xlu0 %v2571, 24
        %v2694 = vpop.permute.xlu0 %2693
        %2695 = vrot.lane.b32.xlu0 %v2572, 24
        %v2696 = vpop.permute.xlu0 %2695
        %2697 = vrot.lane.b32.xlu0 %v2573, 24
        %v2698 = vpop.permute.xlu0 %2697
        %2699 = vrot.lane.b32.xlu0 %v2574, 24
        %v2700 = vpop.permute.xlu0 %2699
        %2701 = vrot.lane.b32.xlu0 %v2575, 24
        %v2702 = vpop.permute.xlu0 %2701
        %2703 = vrot.lane.b32.xlu0 %v2576, 24
        %v2704 = vpop.permute.xlu0 %2703
        %2705 = vrot.lane.b32.xlu0 %v2577, 24
        %v2706 = vpop.permute.xlu0 %2705
        %2723 = vrot.lane.b32.xlu0 %v2578, 32
        %v2724 = vpop.permute.xlu0 %2723
        %2725 = vrot.lane.b32.xlu0 %v2579, 32
        %v2726 = vpop.permute.xlu0 %2725
        %2727 = vrot.lane.b32.xlu0 %v2580, 32
        %v2728 = vpop.permute.xlu0 %2727
        %2729 = vrot.lane.b32.xlu0 %v2581, 32
        %v2730 = vpop.permute.xlu0 %2729
        %2731 = vrot.lane.b32.xlu0 %v2582, 32
        %v2732 = vpop.permute.xlu0 %2731
        %2733 = vrot.lane.b32.xlu0 %v2583, 32
        %v2734 = vpop.permute.xlu0 %2733
        %2735 = vrot.lane.b32.xlu0 %v2584, 32
        %v2736 = vpop.permute.xlu0 %2735
        %2737 = vrot.lane.b32.xlu0 %v2585, 32
        %v2738 = vpop.permute.xlu0 %2737
        %2755 = vrot.lane.b32.xlu0 %v2586, 40
        %v2756 = vpop.permute.xlu0 %2755
        %2757 = vrot.lane.b32.xlu0 %v2587, 40
        %v2758 = vpop.permute.xlu0 %2757
        %2759 = vrot.lane.b32.xlu0 %v2588, 40
        %v2760 = vpop.permute.xlu0 %2759
        %2761 = vrot.lane.b32.xlu0 %v2589, 40
        %v2762 = vpop.permute.xlu0 %2761
        %2763 = vrot.lane.b32.xlu0 %v2590, 40
        %v2764 = vpop.permute.xlu0 %2763
        %2765 = vrot.lane.b32.xlu0 %v2591, 40
        %v2766 = vpop.permute.xlu0 %2765
        %2767 = vrot.lane.b32.xlu0 %v2592, 40
        %v2768 = vpop.permute.xlu0 %2767
        %2769 = vrot.lane.b32.xlu0 %v2593, 40
        %v2770 = vpop.permute.xlu0 %2769
        %2787 = vrot.lane.b32.xlu0 %v2595, 48
        %v2788 = vpop.permute.xlu0 %2787
        %2789 = vrot.lane.b32.xlu0 %v2596, 48
        %v2790 = vpop.permute.xlu0 %2789
        %2791 = vrot.lane.b32.xlu0 %v2597, 48
        %v2792 = vpop.permute.xlu0 %2791
        %2793 = vrot.lane.b32.xlu0 %v2598, 48
        %v2794 = vpop.permute.xlu0 %2793
        %2795 = vrot.lane.b32.xlu0 %v2599, 48
        %v2796 = vpop.permute.xlu0 %2795
        %2797 = vrot.lane.b32.xlu0 %v2600, 48
        %v2798 = vpop.permute.xlu0 %2797
        %2799 = vrot.lane.b32.xlu0 %v2601, 48
        %v2800 = vpop.permute.xlu0 %2799
        %2801 = vrot.lane.b32.xlu0 %v2602, 48
        %v2802 = vpop.permute.xlu0 %2801
        %2819 = vrot.lane.b32.xlu0 %v2603, 56
        %v2820 = vpop.permute.xlu0 %2819
        %2821 = vrot.lane.b32.xlu0 %v2604, 56
        %v2822 = vpop.permute.xlu0 %2821
        %2823 = vrot.lane.b32.xlu0 %v2605, 56
        %v2824 = vpop.permute.xlu0 %2823
        %2825 = vrot.lane.b32.xlu0 %v2606, 56
        %v2826 = vpop.permute.xlu0 %2825
        %2827 = vrot.lane.b32.xlu0 %v2607, 56
        %v2828 = vpop.permute.xlu0 %2827
        %2829 = vrot.lane.b32.xlu0 %v2608, 56
        %v2830 = vpop.permute.xlu0 %2829
        %2831 = vrot.lane.b32.xlu0 %v2609, 56
        %v2832 = vpop.permute.xlu0 %2831
        %2833 = vrot.lane.b32.xlu0 %v2610, 56
        %v2834 = vpop.permute.xlu0 %2833
        %2851 = vrot.lane.b32.xlu0 %v2611, 64
        %v2852 = vpop.permute.xlu0 %2851
        %2853 = vrot.lane.b32.xlu0 %v2612, 64
        %v2854 = vpop.permute.xlu0 %2853
        %2855 = vrot.lane.b32.xlu0 %v2613, 64
        %v2856 = vpop.permute.xlu0 %2855
        %2857 = vrot.lane.b32.xlu0 %v2614, 64
        %v2858 = vpop.permute.xlu0 %2857
        %2859 = vrot.lane.b32.xlu0 %v2615, 64
        %v2860 = vpop.permute.xlu0 %2859
        %2861 = vrot.lane.b32.xlu0 %v2616, 64
        %v2862 = vpop.permute.xlu0 %2861
        %2863 = vrot.lane.b32.xlu0 %v2617, 64
        %v2864 = vpop.permute.xlu0 %2863
        %2865 = vrot.lane.b32.xlu0 %v2618, 64
        %v2866 = vpop.permute.xlu0 %2865
        %v2875 = vsel %vm1732, %v2546, %v2628
        %v2876 = vsel %vm1732, %v2547, %v2630
        %v2877 = vsel %vm1732, %v2548, %v2632
        %v2878 = vsel %vm1732, %v2549, %v2634
        %v2879 = vsel %vm1732, %v2550, %v2636
        %v2880 = vsel %vm1732, %v2551, %v2638
        %v2881 = vsel %vm1732, %v2552, %v2640
        %v2882 = vsel %vm1732, %v2553, %v2642
        %v2883 = vsel %vm1798, %v2875, %v2660
        %v2884 = vsel %vm1798, %v2876, %v2662
        %v2885 = vsel %vm1798, %v2877, %v2664
        %v2886 = vsel %vm1798, %v2878, %v2666
        %v2887 = vsel %vm1798, %v2879, %v2668
        %v2888 = vsel %vm1798, %v2880, %v2670
        %v2889 = vsel %vm1798, %v2881, %v2672
        %v2890 = vsel %vm1798, %v2882, %v2674
        %v2891 = vsel %vm1864, %v2883, %v2692
        %v2892 = vsel %vm1864, %v2884, %v2694
        %v2893 = vsel %vm1864, %v2885, %v2696
        %v2894 = vsel %vm1864, %v2886, %v2698
        %v2895 = vsel %vm1864, %v2887, %v2700
        %v2896 = vsel %vm1864, %v2888, %v2702
        %v2897 = vsel %vm1864, %v2889, %v2704
        %v2898 = vsel %vm1864, %v2890, %v2706
        %v2899 = vsel %vm1930, %v2891, %v2724
        %v2900 = vsel %vm1930, %v2892, %v2726
        %v2901 = vsel %vm1930, %v2893, %v2728
        %v2902 = vsel %vm1930, %v2894, %v2730
        %v2903 = vsel %vm1930, %v2895, %v2732
        %v2904 = vsel %vm1930, %v2896, %v2734
        %v2905 = vsel %vm1930, %v2897, %v2736
        %v2906 = vsel %vm1930, %v2898, %v2738
        %vm2907 = vcmask 326656
        %v2908 = vsel %vm2907, %v2899, %v2756
        %v2909 = vsel %vm2907, %v2900, %v2758
        %v2910 = vsel %vm2907, %v2901, %v2760
        %v2911 = vsel %vm2907, %v2902, %v2762
        %v2912 = vsel %vm2907, %v2903, %v2764
        %v2913 = vsel %vm2907, %v2904, %v2766
        %v2914 = vsel %vm2907, %v2905, %v2768
        %v2915 = vsel %vm2907, %v2906, %v2770
        %vm2916 = vcmask 392192
        %v2917 = vsel %vm2916, %v2908, %v2788
        %v2918 = vsel %vm2916, %v2909, %v2790
        %v2919 = vsel %vm2916, %v2910, %v2792
        %v2920 = vsel %vm2916, %v2911, %v2794
        %v2921 = vsel %vm2916, %v2912, %v2796
        %v2922 = vsel %vm2916, %v2913, %v2798
        %v2923 = vsel %vm2916, %v2914, %v2800
        %v2924 = vsel %vm2916, %v2915, %v2802
        %vm2925 = vcmask 457728
        %v2926 = vsel %vm2925, %v2917, %v2820
        %v2927 = vsel %vm2925, %v2918, %v2822
        %v2928 = vsel %vm2925, %v2919, %v2824
        %v2929 = vsel %vm2925, %v2920, %v2826
        %v2930 = vsel %vm2925, %v2921, %v2828
        %v2931 = vsel %vm2925, %v2922, %v2830
        %v2932 = vsel %vm2925, %v2923, %v2832
        %v2933 = vsel %vm2925, %v2924, %v2834
        %vm2934 = vcmask 523264
        %v2935 = vsel %vm2934, %v2926, %v2852
        %v2936 = vsel %vm2934, %v2927, %v2854
        %v2937 = vsel %vm2934, %v2928, %v2856
        %v2938 = vsel %vm2934, %v2929, %v2858
        %v2939 = vsel %vm2934, %v2930, %v2860
        %v2940 = vsel %vm2934, %v2931, %v2862
        %v2941 = vsel %vm2934, %v2932, %v2864
        %v2942 = vsel %vm2934, %v2933, %v2866
        %v2943 = vld [vmem:[%s3] sm:$0xff]
        %v2944 = vld [vmem:[%s3 + $0x8] sm:$0xff]
        %v2945 = vld [vmem:[%s3 + $0x10] sm:$0xff]
        %v2946 = vld [vmem:[%s3 + $0x18] sm:$0xff]
        %v2947 = vld [vmem:[%s3 + $0x20] sm:$0xff]
        %v2948 = vld [vmem:[%s3 + $0x28] sm:$0xff]
        %v2949 = vld [vmem:[%s3 + $0x30] sm:$0xff]
        %v2950 = vld [vmem:[%s3 + $0x38] sm:$0xff]
        %v2951 = vld [vmem:[%s3 + $0x40] sm:$0xff]
        %v2952 = vld [vmem:[%s4] sm:$0x1]
        %v2954 = vlaneseq
        %v2955 = vshrl.u32 %v2954, 7
        %v2956 = vsub.s32 0, %v2955
        %v2957 = vrot.slane %v2952, %v2956
        %vm2959 = vcmask 588800
        %v2961 = vsel %vm2959, %v2935, 0
        %v2964 = vsel %vm2959, %v2936, 0
        %v2967 = vsel %vm2959, %v2937, 0
        %v2970 = vsel %vm2959, %v2938, 0
        %v2973 = vsel %vm2959, %v2939, 0
        %v2976 = vsel %vm2959, %v2940, 0
        %v2979 = vsel %vm2959, %v2941, 0
        %v2982 = vsel %vm2959, %v2942, 0
        %2984 = vmatprep.subr.mxu0 0.0
        %2985 = vmatpush1.msra.mxu0 %v2943
        %2986 = vmatprep.subr.mxu0 0.0
        %2987 = vmatpush1.msra.mxu0 %v2944
        %2988 = vmatprep.subr.mxu0 0.0
        %2989 = vmatpush1.msra.mxu0 %v2945
        %2990 = vmatprep.subr.mxu0 0.0
        %2991 = vmatpush1.msra.mxu0 %v2946
        %2992 = vmatprep.subr.mxu0 0.0
        %2993 = vmatpush1.msra.mxu0 %v2947
        %2994 = vmatprep.subr.mxu0 0.0
        %2995 = vmatpush1.msra.mxu0 %v2948
        %2996 = vmatprep.subr.mxu0 0.0
        %2997 = vmatpush1.msra.mxu0 %v2949
        %2998 = vmatprep.subr.mxu0 0.0
        %2999 = vmatpush1.msra.mxu0 %v2950
        %3000 = vmatprep.subr.mxu0 0.0
        %3001 = vmatpush1.msra.mxu0 %v2951
        %3002 = vmatprep.subr.mxu0 0.0
        %3003 = vmatpush1.msra.mxu0 0.0
        %3004 = vmatprep.subr.mxu0 0.0
        %3005 = vmatpush1.msra.mxu0 0.0
        %3006 = vmatprep.subr.mxu0 0.0
        %3007 = vmatpush1.msra.mxu0 0.0
        %3008 = vmatprep.subr.mxu0 0.0
        %3009 = vmatpush1.msra.mxu0 0.0
        %3010 = vmatprep.subr.mxu0 0.0
        %3011 = vmatpush1.msra.mxu0 0.0
        %3012 = vmatprep.subr.mxu0 0.0
        %3013 = vmatpush1.msra.mxu0 0.0
        %3014 = vmatprep.subr.mxu0 0.0
        %3015 = vmatpush1.msra.mxu0 0.0
        %3016 = vmatprep.subr.mxu0 0.0
        %3017 = vmatpush1.msra.mxu0 0.0
        %3018 = vmatprep.subr.mxu0 0.0
        %3019 = vmatpush1.msra.mxu0 0.0
        %3020 = vmatprep.subr.mxu0 0.0
        %3021 = vmatpush1.msra.mxu0 0.0
        %3022 = vmatprep.subr.mxu0 0.0
        %3023 = vmatpush1.msra.mxu0 0.0
        %3024 = vmatprep.subr.mxu0 0.0
        %3025 = vmatpush1.msra.mxu0 0.0
        %3026 = vmatprep.subr.mxu0 0.0
        %3027 = vmatpush1.msra.mxu0 0.0
        %3028 = vmatprep.subr.mxu0 0.0
        %3029 = vmatpush1.msra.mxu0 0.0
        %3030 = vmatprep.subr.mxu0 0.0
        %3031 = vmatpush1.msra.mxu0 0.0
        %3032 = vmatprep.subr.mxu0 0.0
        %3033 = vmatpush1.msra.mxu0 0.0
        %3034 = vmatprep.subr.mxu0 0.0
        %3035 = vmatpush1.msra.mxu0 0.0
        %3036 = vmatprep.subr.mxu0 0.0
        %3037 = vmatpush1.msra.mxu0 0.0
        %3038 = vmatprep.subr.mxu0 0.0
        %3039 = vmatpush1.msra.mxu0 0.0
        %3040 = vmatprep.subr.mxu0 0.0
        %3041 = vmatpush1.msra.mxu0 0.0
        %3042 = vmatprep.subr.mxu0 0.0
        %3043 = vmatpush1.msra.mxu0 0.0
        %3044 = vmatprep.subr.mxu0 0.0
        %3045 = vmatpush1.msra.mxu0 0.0
        %3046 = vmatprep.subr.mxu0 0.0
        %3047 = vmatpush1.msra.mxu0 0.0
        %3048 = vmatprep.mubr.f32.mxu0 0.0
        %3049 = vmatmul.mubr.f32.gmra.mrb[0].mxu0 %v2961
        %v3050 = vpop.f32.mrb[0].mxu0
        %v3051 = vadd.f32 %v2957, %v3050
        %v3052 = vpop.f32.mrb[0].mxu0
        %3053 = vmatprep.mubr.f32.mxu0 0.0
        %3054 = vmatmul.mubr.f32.gmra.mrb[0].mxu0 %v2964
        %v3055 = vpop.f32.mrb[0].mxu0
        %v3056 = vadd.f32 %v2957, %v3055
        %v3057 = vpop.f32.mrb[0].mxu0
        %3058 = vmatprep.mubr.f32.mxu0 0.0
        %3059 = vmatmul.mubr.f32.gmra.mrb[0].mxu0 %v2967
        %v3060 = vpop.f32.mrb[0].mxu0
        %v3061 = vadd.f32 %v2957, %v3060
        %v3062 = vpop.f32.mrb[0].mxu0
        %3063 = vmatprep.mubr.f32.mxu0 0.0
        %3064 = vmatmul.mubr.f32.gmra.mrb[0].mxu0 %v2970
        %v3065 = vpop.f32.mrb[0].mxu0
        %v3066 = vadd.f32 %v2957, %v3065
        %v3067 = vpop.f32.mrb[0].mxu0
        %3068 = vmatprep.mubr.f32.mxu0 0.0
        %3069 = vmatmul.mubr.f32.gmra.mrb[0].mxu0 %v2973
        %v3070 = vpop.f32.mrb[0].mxu0
        %v3071 = vadd.f32 %v2957, %v3070
        %v3072 = vpop.f32.mrb[0].mxu0
        %3073 = vmatprep.mubr.f32.mxu0 0.0
        %3074 = vmatmul.mubr.f32.gmra.mrb[0].mxu0 %v2976
        %v3075 = vpop.f32.mrb[0].mxu0
        %v3076 = vadd.f32 %v2957, %v3075
        %v3077 = vpop.f32.mrb[0].mxu0
        %3078 = vmatprep.mubr.f32.mxu0 0.0
        %3079 = vmatmul.mubr.f32.gmra.mrb[0].mxu0 %v2979
        %v3080 = vpop.f32.mrb[0].mxu0
        %v3081 = vadd.f32 %v2957, %v3080
        %v3082 = vpop.f32.mrb[0].mxu0
        %3083 = vmatprep.mubr.f32.mxu0 0.0
        %3084 = vmatmul.mubr.f32.gmra.mrb[0].mxu0 %v2982
        %v3085 = vpop.f32.mrb[0].mxu0
        %v3086 = vadd.f32 %v2957, %v3085
        %v3087 = vpop.f32.mrb[0].mxu0
        %3088 = vdwg.mxu0
        %vm3089 = vcmp.gt.f32.partialorder %v3051, 0.0
        %vm3090 = vcmp.gt.f32.partialorder %v3056, 0.0
        %vm3091 = vcmp.gt.f32.partialorder %v3061, 0.0
        %vm3092 = vcmp.gt.f32.partialorder %v3066, 0.0
        %vm3093 = vcmp.gt.f32.partialorder %v3071, 0.0
        %vm3094 = vcmp.gt.f32.partialorder %v3076, 0.0
        %vm3095 = vcmp.gt.f32.partialorder %v3081, 0.0
        %vm3096 = vcmp.gt.f32.partialorder %v3086, 0.0
        %v3097 = vmul.f32 %v3051, 0.1
        %v3098 = vmul.f32 %v3056, 0.1
        %v3099 = vmul.f32 %v3061, 0.1
        %v3100 = vmul.f32 %v3066, 0.1
        %v3101 = vmul.f32 %v3071, 0.1
        %v3102 = vmul.f32 %v3076, 0.1
        %v3103 = vmul.f32 %v3081, 0.1
        %v3104 = vmul.f32 %v3086, 0.1
        %v3105 = vsel %vm3089, %v3051, %v3097
        %v3106 = vsel %vm3090, %v3056, %v3098
        %v3107 = vsel %vm3091, %v3061, %v3099
        %v3108 = vsel %vm3092, %v3066, %v3100
        %v3109 = vsel %vm3093, %v3071, %v3101
        %v3110 = vsel %vm3094, %v3076, %v3102
        %v3111 = vsel %vm3095, %v3081, %v3103
        %v3112 = vsel %vm3096, %v3086, %v3104
        %3113 = vst.msk [vmem:[#allocation4] sm:$0xff] %vm1798, %v3105
        %3114 = vst.msk [vmem:[#allocation4 + $0x8] sm:$0xff] %vm1798, %v3106
        %3115 = vst.msk [vmem:[#allocation4 + $0x10] sm:$0xff] %vm1798, %v3107
        %3116 = vst.msk [vmem:[#allocation4 + $0x18] sm:$0xff] %vm1798, %v3108
        %3117 = vst.msk [vmem:[#allocation4 + $0x20] sm:$0xff] %vm1798, %v3109
        %3118 = vst.msk [vmem:[#allocation4 + $0x28] sm:$0xff] %vm1798, %v3110
        %3119 = vst.msk [vmem:[#allocation4 + $0x30] sm:$0xff] %vm1798, %v3111
        %3120 = vst.msk [vmem:[#allocation4 + $0x38] sm:$0xff] %vm1798, %v3112
        %v3121 = vld [vmem:[#allocation4] ss:$2 sm:$0xf]
        %s3122 = scalar_lea.vmem [#allocation4], 8
        %v3123 = vld [vmem:[%s3122] ss:$2 sm:$0xf]
        %s3124 = scalar_lea.vmem [#allocation4], 16
        %v3125 = vld [vmem:[%s3124] ss:$2 sm:$0xf]
        %s3126 = scalar_lea.vmem [#allocation4], 24
        %v3127 = vld [vmem:[%s3126] ss:$2 sm:$0xf]
        %s3128 = scalar_lea.vmem [#allocation4], 32
        %v3129 = vld [vmem:[%s3128] ss:$2 sm:$0xf]
        %s3130 = scalar_lea.vmem [#allocation4], 40
        %v3131 = vld [vmem:[%s3130] ss:$2 sm:$0xf]
        %s3132 = scalar_lea.vmem [#allocation4], 48
        %v3133 = vld [vmem:[%s3132] ss:$2 sm:$0xf]
        %s3134 = scalar_lea.vmem [#allocation4], 56
        %v3135 = vld [vmem:[%s3134] ss:$2 sm:$0xf]
        %s3136 = scalar_lea.vmem [#allocation4], 1
        %v3137 = vld [vmem:[%s3136] ss:$2 sm:$0xf]
        %s3138 = scalar_lea.vmem [#allocation4], 9
        %v3139 = vld [vmem:[%s3138] ss:$2 sm:$0xf]
        %s3140 = scalar_lea.vmem [#allocation4], 17
        %v3141 = vld [vmem:[%s3140] ss:$2 sm:$0xf]
        %s3142 = scalar_lea.vmem [#allocation4], 25
        %v3143 = vld [vmem:[%s3142] ss:$2 sm:$0xf]
        %s3144 = scalar_lea.vmem [#allocation4], 33
        %v3145 = vld [vmem:[%s3144] ss:$2 sm:$0xf]
        %s3146 = scalar_lea.vmem [#allocation4], 41
        %v3147 = vld [vmem:[%s3146] ss:$2 sm:$0xf]
        %s3148 = scalar_lea.vmem [#allocation4], 49
        %v3149 = vld [vmem:[%s3148] ss:$2 sm:$0xf]
        %s3150 = scalar_lea.vmem [#allocation4], 57
        %v3151 = vld [vmem:[%s3150] ss:$2 sm:$0xf]
        %v3152 = vmax.f32 %v3121, %v3137
        %v3153 = vmax.f32 %v3123, %v3139
        %v3154 = vmax.f32 %v3125, %v3141
        %v3155 = vmax.f32 %v3127, %v3143
        %v3156 = vmax.f32 %v3129, %v3145
        %v3157 = vmax.f32 %v3131, %v3147
        %v3158 = vmax.f32 %v3133, %v3149
        %v3159 = vmax.f32 %v3135, %v3151
        %v3160 = vmax.f32 %v3152, %v3153
        %v3161 = vmax.f32 %v3154, %v3155
        %v3162 = vmax.f32 %v3156, %v3157
        %v3163 = vmax.f32 %v3158, %v3159
        %v3164 = vld [vmem:[%s2537 + $0x1] sm:$0xff]
        %v3165 = vld [vmem:[%s2537 + $0x11] sm:$0xff]
        %v3166 = vld [vmem:[%s2537 + $0x21] sm:$0xff]
        %v3167 = vld [vmem:[%s2537 + $0x31] sm:$0xff]
        %v3168 = vld [vmem:[%s2537 + $0x41] sm:$0xff]
        %v3169 = vld [vmem:[%s2537 + $0x51] sm:$0xff]
        %v3170 = vld [vmem:[%s2537 + $0x61] sm:$0xff]
        %v3171 = vld [vmem:[%s2537 + $0x71] sm:$0xff]
        %v3172 = vld [vmem:[%s5] sm:$0xff]
        %v3173 = vld [vmem:[%s6] sm:$0x1]
        %v3175 = vlaneseq
        %v3176 = vshrl.u32 %v3175, 7
        %v3177 = vsub.s32 0, %v3176
        %v3178 = vrot.slane %v3173, %v3177
        %v3181 = vsel %vm1732, %v3164, 0
        %v3184 = vsel %vm1732, %v3165, 0
        %v3187 = vsel %vm1732, %v3166, 0
        %v3190 = vsel %vm1732, %v3167, 0
        %v3193 = vsel %vm1732, %v3168, 0
        %v3196 = vsel %vm1732, %v3169, 0
        %v3199 = vsel %vm1732, %v3170, 0
        %v3202 = vsel %vm1732, %v3171, 0
        %3204 = vmatprep.subr.mxu0 0.0
        %3205 = vmatpush1.msra.mxu0 %v3172
        %3206 = vmatprep.subr.mxu0 0.0
        %3207 = vmatpush1.msra.mxu0 0.0
        %3208 = vmatprep.subr.mxu0 0.0
        %3209 = vmatpush1.msra.mxu0 0.0
        %3210 = vmatprep.subr.mxu0 0.0
        %3211 = vmatpush1.msra.mxu0 0.0
        %3212 = vmatprep.subr.mxu0 0.0
        %3213 = vmatpush1.msra.mxu0 0.0
        %3214 = vmatprep.subr.mxu0 0.0
        %3215 = vmatpush1.msra.mxu0 0.0
        %3216 = vmatprep.subr.mxu0 0.0
        %3217 = vmatpush1.msra.mxu0 0.0
        %3218 = vmatprep.subr.mxu0 0.0
        %3219 = vmatpush1.msra.mxu0 0.0
        %3220 = vmatprep.subr.mxu0 0.0
        %3221 = vmatpush1.msra.mxu0 0.0
        %3222 = vmatprep.subr.mxu0 0.0
        %3223 = vmatpush1.msra.mxu0 0.0
        %3224 = vmatprep.subr.mxu0 0.0
        %3225 = vmatpush1.msra.mxu0 0.0
        %3226 = vmatprep.subr.mxu0 0.0
        %3227 = vmatpush1.msra.mxu0 0.0
        %3228 = vmatprep.subr.mxu0 0.0
        %3229 = vmatpush1.msra.mxu0 0.0
        %3230 = vmatprep.subr.mxu0 0.0
        %3231 = vmatpush1.msra.mxu0 0.0
        %3232 = vmatprep.subr.mxu0 0.0
        %3233 = vmatpush1.msra.mxu0 0.0
        %3234 = vmatprep.subr.mxu0 0.0
        %3235 = vmatpush1.msra.mxu0 0.0
        %3236 = vmatprep.subr.mxu0 0.0
        %3237 = vmatpush1.msra.mxu0 0.0
        %3238 = vmatprep.subr.mxu0 0.0
        %3239 = vmatpush1.msra.mxu0 0.0
        %3240 = vmatprep.subr.mxu0 0.0
        %3241 = vmatpush1.msra.mxu0 0.0
        %3242 = vmatprep.subr.mxu0 0.0
        %3243 = vmatpush1.msra.mxu0 0.0
        %3244 = vmatprep.subr.mxu0 0.0
        %3245 = vmatpush1.msra.mxu0 0.0
        %3246 = vmatprep.subr.mxu0 0.0
        %3247 = vmatpush1.msra.mxu0 0.0
        %3248 = vmatprep.subr.mxu0 0.0
        %3249 = vmatpush1.msra.mxu0 0.0
        %3250 = vmatprep.subr.mxu0 0.0
        %3251 = vmatpush1.msra.mxu0 0.0
        %3252 = vmatprep.subr.mxu0 0.0
        %3253 = vmatpush1.msra.mxu0 0.0
        %3254 = vmatprep.subr.mxu0 0.0
        %3255 = vmatpush1.msra.mxu0 0.0
        %3256 = vmatprep.subr.mxu0 0.0
        %3257 = vmatpush1.msra.mxu0 0.0
        %3258 = vmatprep.subr.mxu0 0.0
        %3259 = vmatpush1.msra.mxu0 0.0
        %3260 = vmatprep.subr.mxu0 0.0
        %3261 = vmatpush1.msra.mxu0 0.0
        %3262 = vmatprep.subr.mxu0 0.0
        %3263 = vmatpush1.msra.mxu0 0.0
        %3264 = vmatprep.subr.mxu0 0.0
        %3265 = vmatpush1.msra.mxu0 0.0
        %3266 = vmatprep.subr.mxu0 0.0
        %3267 = vmatpush1.msra.mxu0 0.0
        %3268 = vmatprep.mubr.f32.mxu0 0.0
        %3269 = vmatmul.mubr.f32.gmra.mrb[0].mxu0 %v3181
        %v3270 = vpop.f32.mrb[0].mxu0
        %v3271 = vadd.f32 %v3178, %v3270
        %v3272 = vpop.f32.mrb[0].mxu0
        %3273 = vmatprep.mubr.f32.mxu0 0.0
        %3274 = vmatmul.mubr.f32.gmra.mrb[0].mxu0 %v3184
        %v3275 = vpop.f32.mrb[0].mxu0
        %v3276 = vadd.f32 %v3178, %v3275
        %v3277 = vpop.f32.mrb[0].mxu0
        %3278 = vmatprep.mubr.f32.mxu0 0.0
        %3279 = vmatmul.mubr.f32.gmra.mrb[0].mxu0 %v3187
        %v3280 = vpop.f32.mrb[0].mxu0
        %v3281 = vadd.f32 %v3178, %v3280
        %v3282 = vpop.f32.mrb[0].mxu0
        %3283 = vmatprep.mubr.f32.mxu0 0.0
        %3284 = vmatmul.mubr.f32.gmra.mrb[0].mxu0 %v3190
        %v3285 = vpop.f32.mrb[0].mxu0
        %v3286 = vadd.f32 %v3178, %v3285
        %v3287 = vpop.f32.mrb[0].mxu0
        %3288 = vmatprep.mubr.f32.mxu0 0.0
        %3289 = vmatmul.mubr.f32.gmra.mrb[0].mxu0 %v3193
        %v3290 = vpop.f32.mrb[0].mxu0
        %v3291 = vadd.f32 %v3178, %v3290
        %v3292 = vpop.f32.mrb[0].mxu0
        %3293 = vmatprep.mubr.f32.mxu0 0.0
        %3294 = vmatmul.mubr.f32.gmra.mrb[0].mxu0 %v3196
        %v3295 = vpop.f32.mrb[0].mxu0
        %v3296 = vadd.f32 %v3178, %v3295
        %v3297 = vpop.f32.mrb[0].mxu0
        %3298 = vmatprep.mubr.f32.mxu0 0.0
        %3299 = vmatmul.mubr.f32.gmra.mrb[0].mxu0 %v3199
        %v3300 = vpop.f32.mrb[0].mxu0
        %v3301 = vadd.f32 %v3178, %v3300
        %v3302 = vpop.f32.mrb[0].mxu0
        %3303 = vmatprep.mubr.f32.mxu0 0.0
        %3304 = vmatmul.mubr.f32.gmra.mrb[0].mxu0 %v3202
        %v3305 = vpop.f32.mrb[0].mxu0
        %v3306 = vadd.f32 %v3178, %v3305
        %v3307 = vpop.f32.mrb[0].mxu0
        %3308 = vdwg.mxu0
        %vm3309 = vcmp.gt.f32.partialorder %v3271, 0.0
        %vm3310 = vcmp.gt.f32.partialorder %v3276, 0.0
        %vm3311 = vcmp.gt.f32.partialorder %v3281, 0.0
        %vm3312 = vcmp.gt.f32.partialorder %v3286, 0.0
        %vm3313 = vcmp.gt.f32.partialorder %v3291, 0.0
        %vm3314 = vcmp.gt.f32.partialorder %v3296, 0.0
        %vm3315 = vcmp.gt.f32.partialorder %v3301, 0.0
        %vm3316 = vcmp.gt.f32.partialorder %v3306, 0.0
        %v3317 = vmul.f32 %v3271, 0.1
        %v3318 = vmul.f32 %v3276, 0.1
        %v3319 = vmul.f32 %v3281, 0.1
        %v3320 = vmul.f32 %v3286, 0.1
        %v3321 = vmul.f32 %v3291, 0.1
        %v3322 = vmul.f32 %v3296, 0.1
        %v3323 = vmul.f32 %v3301, 0.1
        %v3324 = vmul.f32 %v3306, 0.1
        %v3325 = vsel %vm3309, %v3271, %v3317
        %v3326 = vsel %vm3310, %v3276, %v3318
        %v3327 = vsel %vm3311, %v3281, %v3319
        %v3328 = vsel %vm3312, %v3286, %v3320
        %v3329 = vsel %vm3313, %v3291, %v3321
        %v3330 = vsel %vm3314, %v3296, %v3322
        %v3331 = vsel %vm3315, %v3301, %v3323
        %v3332 = vsel %vm3316, %v3306, %v3324
        %3333 = vst.msk [vmem:[#allocation5] sm:$0xff] %vm1699, %v3325
        %3334 = vst.msk [vmem:[#allocation5 + $0x8] sm:$0xff] %vm1699, %v3326
        %3335 = vst.msk [vmem:[#allocation5 + $0x10] sm:$0xff] %vm1699, %v3327
        %3336 = vst.msk [vmem:[#allocation5 + $0x18] sm:$0xff] %vm1699, %v3328
        %3337 = vst.msk [vmem:[#allocation5 + $0x20] sm:$0xff] %vm1699, %v3329
        %3338 = vst.msk [vmem:[#allocation5 + $0x28] sm:$0xff] %vm1699, %v3330
        %3339 = vst.msk [vmem:[#allocation5 + $0x30] sm:$0xff] %vm1699, %v3331
        %3340 = vst.msk [vmem:[#allocation5 + $0x38] sm:$0xff] %vm1699, %v3332
        %v3341 = vld [vmem:[#allocation5] ss:$2 sm:$0xf]
        %s3342 = scalar_lea.vmem [#allocation5], 8
        %v3343 = vld [vmem:[%s3342] ss:$2 sm:$0xf]
        %s3344 = scalar_lea.vmem [#allocation5], 16
        %v3345 = vld [vmem:[%s3344] ss:$2 sm:$0xf]
        %s3346 = scalar_lea.vmem [#allocation5], 24
        %v3347 = vld [vmem:[%s3346] ss:$2 sm:$0xf]
        %s3348 = scalar_lea.vmem [#allocation5], 32
        %v3349 = vld [vmem:[%s3348] ss:$2 sm:$0xf]
        %s3350 = scalar_lea.vmem [#allocation5], 40
        %v3351 = vld [vmem:[%s3350] ss:$2 sm:$0xf]
        %s3352 = scalar_lea.vmem [#allocation5], 48
        %v3353 = vld [vmem:[%s3352] ss:$2 sm:$0xf]
        %s3354 = scalar_lea.vmem [#allocation5], 56
        %v3355 = vld [vmem:[%s3354] ss:$2 sm:$0xf]
        %s3356 = scalar_lea.vmem [#allocation5], 1
        %v3357 = vld [vmem:[%s3356] ss:$2 sm:$0xf]
        %s3358 = scalar_lea.vmem [#allocation5], 9
        %v3359 = vld [vmem:[%s3358] ss:$2 sm:$0xf]
        %s3360 = scalar_lea.vmem [#allocation5], 17
        %v3361 = vld [vmem:[%s3360] ss:$2 sm:$0xf]
        %s3362 = scalar_lea.vmem [#allocation5], 25
        %v3363 = vld [vmem:[%s3362] ss:$2 sm:$0xf]
        %s3364 = scalar_lea.vmem [#allocation5], 33
        %v3365 = vld [vmem:[%s3364] ss:$2 sm:$0xf]
        %s3366 = scalar_lea.vmem [#allocation5], 41
        %v3367 = vld [vmem:[%s3366] ss:$2 sm:$0xf]
        %s3368 = scalar_lea.vmem [#allocation5], 49
        %v3369 = vld [vmem:[%s3368] ss:$2 sm:$0xf]
        %s3370 = scalar_lea.vmem [#allocation5], 57
        %v3371 = vld [vmem:[%s3370] ss:$2 sm:$0xf]
        %3376 = vrot.lane.b32.xlu0 %v3357, 4
        %v3377 = vpop.permute.xlu0 %3376
        %3378 = vrot.lane.b32.xlu0 %v3361, 4
        %v3379 = vpop.permute.xlu0 %3378
        %3380 = vrot.lane.b32.xlu0 %v3365, 4
        %v3381 = vpop.permute.xlu0 %3380
        %3382 = vrot.lane.b32.xlu0 %v3369, 4
        %v3383 = vpop.permute.xlu0 %3382
        %3392 = vrot.lane.b32.xlu0 %v3343, 8
        %v3393 = vpop.permute.xlu0 %3392
        %3394 = vrot.lane.b32.xlu0 %v3347, 8
        %v3395 = vpop.permute.xlu0 %3394
        %3396 = vrot.lane.b32.xlu0 %v3351, 8
        %v3397 = vpop.permute.xlu0 %3396
        %3398 = vrot.lane.b32.xlu0 %v3355, 8
        %v3399 = vpop.permute.xlu0 %3398
        %3408 = vrot.lane.b32.xlu0 %v3359, 12
        %v3409 = vpop.permute.xlu0 %3408
        %3410 = vrot.lane.b32.xlu0 %v3363, 12
        %v3411 = vpop.permute.xlu0 %3410
        %3412 = vrot.lane.b32.xlu0 %v3367, 12
        %v3413 = vpop.permute.xlu0 %3412
        %3414 = vrot.lane.b32.xlu0 %v3371, 12
        %v3415 = vpop.permute.xlu0 %3414
        %v3420 = vsel %vm1699, %v3341, %v3377
        %v3421 = vsel %vm1699, %v3345, %v3379
        %v3422 = vsel %vm1699, %v3349, %v3381
        %v3423 = vsel %vm1699, %v3353, %v3383
        %v3424 = vsel %vm1732, %v3420, %v3393
        %v3425 = vsel %vm1732, %v3421, %v3395
        %v3426 = vsel %vm1732, %v3422, %v3397
        %v3427 = vsel %vm1732, %v3423, %v3399
        %v3428 = vsel %vm1765, %v3424, %v3409
        %v3429 = vsel %vm1765, %v3425, %v3411
        %v3430 = vsel %vm1765, %v3426, %v3413
        %v3431 = vsel %vm1765, %v3427, %v3415
        %vm3432 = vcmask 259072
        %3433 = vst.msk [vmem:[#allocation6] sm:$0x3f] %vm3432, 0.0
        %3434 = vst.msk [vmem:[#allocation6 + $0x8] sm:$0x3f] %vm3432, 0.0
        %3435 = vst.msk [vmem:[#allocation6 + $0x10] sm:$0x3f] %vm3432, 0.0
        %3436 = vst.msk [vmem:[#allocation6 + $0x18] sm:$0x3f] %vm3432, 0.0
        %3437 = vst.msk [vmem:[#allocation6 + $0x20] sm:$0x3f] %vm3432, 0.0
        %3438 = vst.msk [vmem:[#allocation6 + $0x28] sm:$0x3f] %vm3432, 0.0
        %3443 = vrot.lane.b32.xlu0 %v3160, 16
        %v3444 = vpop.permute.xlu0 %3443
        %3445 = vrot.lane.b32.xlu0 %v3161, 16
        %v3446 = vpop.permute.xlu0 %3445
        %3447 = vrot.lane.b32.xlu0 %v3162, 16
        %v3448 = vpop.permute.xlu0 %3447
        %3449 = vrot.lane.b32.xlu0 %v3163, 16
        %v3450 = vpop.permute.xlu0 %3449
        %v3455 = vsel %vm1798, %v3428, %v3444
        %v3456 = vsel %vm1798, %v3429, %v3446
        %v3457 = vsel %vm1798, %v3430, %v3448
        %v3458 = vsel %vm1798, %v3431, %v3450
        %s3459 = scalar_lea.vmem [#allocation6], 8
        %vm3460 = vcmask 257024
        %3461 = vst.msk [vmem:[%s3459 + $0x1] sm:$0xf] %vm3460, %v3455
        %3462 = vst.msk [vmem:[%s3459 + $0x9] sm:$0xf] %vm3460, %v3456
        %3463 = vst.msk [vmem:[%s3459 + $0x11] sm:$0xf] %vm3460, %v3457
        %3464 = vst.msk [vmem:[%s3459 + $0x19] sm:$0xf] %vm3460, %v3458
        %v3465 = vld [vmem:[%s7] sm:$0xff]
        %v3466 = vld [vmem:[%s7 + $0x8] sm:$0xff]
        %v3467 = vld [vmem:[%s7 + $0x10] sm:$0xff]
        %v3468 = vld [vmem:[%s7 + $0x18] sm:$0xff]
        %v3469 = vld [vmem:[%s7 + $0x20] sm:$0xff]
        %v3470 = vld [vmem:[%s7 + $0x28] sm:$0xff]
        %v3471 = vld [vmem:[%s7 + $0x30] sm:$0xff]
        %v3472 = vld [vmem:[%s7 + $0x38] sm:$0xff]
        %v3473 = vld [vmem:[%s7 + $0x40] sm:$0xff]
        %v3474 = vld [vmem:[%s7 + $0x48] sm:$0xff]
        %v3475 = vld [vmem:[%s7 + $0x50] sm:$0xff]
        %v3476 = vld [vmem:[%s7 + $0x58] sm:$0xff]
        %v3477 = vld [vmem:[%s7 + $0x60] sm:$0xff]
        %v3478 = vld [vmem:[%s7 + $0x68] sm:$0xff]
        %v3479 = vld [vmem:[%s7 + $0x70] sm:$0xff]
        %v3480 = vld [vmem:[%s7 + $0x78] sm:$0xff]
        %v3481 = vld [vmem:[%s7 + $0x80] sm:$0xff]
        %v3482 = vld [vmem:[%s7 + $0x88] sm:$0xff]
        %v3483 = vld [vmem:[%s7 + $0x90] sm:$0xff]
        %v3484 = vld [vmem:[%s7 + $0x98] sm:$0xff]
        %v3485 = vld [vmem:[%s7 + $0xa0] sm:$0xff]
        %v3486 = vld [vmem:[%s7 + $0xa8] sm:$0xff]
        %v3487 = vld [vmem:[%s7 + $0xb0] sm:$0xff]
        %v3488 = vld [vmem:[%s7 + $0xb8] sm:$0xff]
        %v3489 = vld [vmem:[%s7 + $0xc0] sm:$0xff]
        %v3490 = vld [vmem:[%s7 + $0xc8] sm:$0xff]
        %v3491 = vld [vmem:[%s7 + $0xd0] sm:$0xff]
        %v3492 = vld [vmem:[%s7 + $0xd8] sm:$0xff]
        %v3493 = vld [vmem:[%s7 + $0xe0] sm:$0xff]
        %v3494 = vld [vmem:[%s7 + $0xe8] sm:$0xff]
        %v3495 = vld [vmem:[%s7 + $0xf0] sm:$0xff]
        %v3496 = vld [vmem:[%s7 + $0xf8] sm:$0xff]
        %v3497 = vld [vmem:[%s7 + $0x100] sm:$0xff]
        %v3498 = vld [vmem:[%s7 + $0x108] sm:$0xff]
        %v3499 = vld [vmem:[%s7 + $0x110] sm:$0xff]
        %v3500 = vld [vmem:[%s7 + $0x118] sm:$0xff]
        %v3501 = vld [vmem:[%s8] sm:$0x1]
        %v3502 = vld [vmem:[%s9] sm:$0xff]
        %v3503 = vld [vmem:[%s9 + $0x8] sm:$0xff]
        %v3504 = vld [vmem:[%s9 + $0x10] sm:$0xff]
        %v3505 = vld [vmem:[%s9 + $0x18] sm:$0xff]
        %v3506 = vld [vmem:[%s10] sm:$0x1]
        %v3507 = vld [vmem:[#allocation6] sm:$0xf]
        %v3508 = vld [vmem:[#allocation6 + $0x1] sm:$0xf]
        %v3509 = vld [vmem:[#allocation6 + $0x2] sm:$0xf]
        %v3510 = vld [vmem:[%s3459] sm:$0xf]
        %v3511 = vld [vmem:[%s3459 + $0x1] sm:$0xf]
        %v3512 = vld [vmem:[%s3459 + $0x2] sm:$0xf]
        %s3513 = scalar_lea.vmem [#allocation6], 16
        %v3514 = vld [vmem:[%s3513] sm:$0xf]
        %v3515 = vld [vmem:[%s3513 + $0x1] sm:$0xf]
        %v3516 = vld [vmem:[%s3513 + $0x2] sm:$0xf]
        %3518 = vrot.lane.b32.xlu0 %v3508, 32
        %v3519 = vpop.permute.xlu0 %3518
        %3522 = vrot.lane.b32.xlu0 %v3509, 64
        %v3523 = vpop.permute.xlu0 %3522
        %3526 = vrot.lane.b32.xlu0 %v3510, 96
        %v3527 = vpop.permute.xlu0 %3526
        %3530 = vrot.lane.b32.xlu0 %v3512, 32
        %v3531 = vpop.permute.xlu0 %3530
        %3534 = vrot.lane.b32.xlu0 %v3514, 64
        %v3535 = vpop.permute.xlu0 %3534
        %3538 = vrot.lane.b32.xlu0 %v3515, 96
        %v3539 = vpop.permute.xlu0 %3538
        %v3541 = vsel %vm1930, %v3507, %v3519
        %v3542 = vsel %vm2934, %v3541, %v3523
        %vm3543 = vcmask 785408
        %v3544 = vsel %vm3543, %v3542, %v3527
        %v3545 = vsel %vm1930, %v3511, %v3531
        %v3546 = vsel %vm2934, %v3545, %v3535
        %v3547 = vsel %vm3543, %v3546, %v3539
        %v3549 = vlaneseq
        %v3550 = vshrl.u32 %v3549, 7
        %v3551 = vsub.s32 0, %v3550
        %v3552 = vrot.slane %v3501, %v3551
        %v3555 = vsel %vm1930, %v3516, 0
        %3557 = vmatprep.subr.mxu0 0.0
        %3558 = vmatpush1.msra.mxu0 %v3465
        %3559 = vmatprep.subr.mxu0 0.0
        %3560 = vmatpush1.msra.mxu0 %v3466
        %3561 = vmatprep.subr.mxu0 0.0
        %3562 = vmatpush1.msra.mxu0 %v3467
        %3563 = vmatprep.subr.mxu0 0.0
        %3564 = vmatpush1.msra.mxu0 %v3468
        %3565 = vmatprep.subr.mxu0 0.0
        %3566 = vmatpush1.msra.mxu0 %v3469
        %3567 = vmatprep.subr.mxu0 0.0
        %3568 = vmatpush1.msra.mxu0 %v3470
        %3569 = vmatprep.subr.mxu0 0.0
        %3570 = vmatpush1.msra.mxu0 %v3471
        %3571 = vmatprep.subr.mxu0 0.0
        %3572 = vmatpush1.msra.mxu0 %v3472
        %3573 = vmatprep.subr.mxu0 0.0
        %3574 = vmatpush1.msra.mxu0 %v3473
        %3575 = vmatprep.subr.mxu0 0.0
        %3576 = vmatpush1.msra.mxu0 %v3474
        %3577 = vmatprep.subr.mxu0 0.0
        %3578 = vmatpush1.msra.mxu0 %v3475
        %3579 = vmatprep.subr.mxu0 0.0
        %3580 = vmatpush1.msra.mxu0 %v3476
        %3581 = vmatprep.subr.mxu0 0.0
        %3582 = vmatpush1.msra.mxu0 %v3477
        %3583 = vmatprep.subr.mxu0 0.0
        %3584 = vmatpush1.msra.mxu0 %v3478
        %3585 = vmatprep.subr.mxu0 0.0
        %3586 = vmatpush1.msra.mxu0 %v3479
        %3587 = vmatprep.subr.mxu0 0.0
        %3588 = vmatpush1.msra.mxu0 %v3480
        %3589 = vmatprep.subr.mxu0 0.0
        %3590 = vmatpush1.msra.mxu0 %v3481
        %3591 = vmatprep.subr.mxu0 0.0
        %3592 = vmatpush1.msra.mxu0 %v3482
        %3593 = vmatprep.subr.mxu0 0.0
        %3594 = vmatpush1.msra.mxu0 %v3483
        %3595 = vmatprep.subr.mxu0 0.0
        %3596 = vmatpush1.msra.mxu0 %v3484
        %3597 = vmatprep.subr.mxu0 0.0
        %3598 = vmatpush1.msra.mxu0 %v3485
        %3599 = vmatprep.subr.mxu0 0.0
        %3600 = vmatpush1.msra.mxu0 %v3486
        %3601 = vmatprep.subr.mxu0 0.0
        %3602 = vmatpush1.msra.mxu0 %v3487
        %3603 = vmatprep.subr.mxu0 0.0
        %3604 = vmatpush1.msra.mxu0 %v3488
        %3605 = vmatprep.subr.mxu0 0.0
        %3606 = vmatpush1.msra.mxu0 %v3489
        %3607 = vmatprep.subr.mxu0 0.0
        %3608 = vmatpush1.msra.mxu0 %v3490
        %3609 = vmatprep.subr.mxu0 0.0
        %3610 = vmatpush1.msra.mxu0 %v3491
        %3611 = vmatprep.subr.mxu0 0.0
        %3612 = vmatpush1.msra.mxu0 %v3492
        %3613 = vmatprep.subr.mxu0 0.0
        %3614 = vmatpush1.msra.mxu0 %v3493
        %3615 = vmatprep.subr.mxu0 0.0
        %3616 = vmatpush1.msra.mxu0 %v3494
        %3617 = vmatprep.subr.mxu0 0.0
        %3618 = vmatpush1.msra.mxu0 %v3495
        %3619 = vmatprep.subr.mxu0 0.0
        %3620 = vmatpush1.msra.mxu0 %v3496
        %3621 = vmatprep.mubr.f32.mxu0 %v3547
        %3622 = vmatmul.mubr.f32.gmra.mrb[0].mxu0 %v3544
        %v3623 = vpop.f32.mrb[0].mxu0
        %v3624 = vadd.f32 %v3552, %v3623
        %v3625 = vpop.f32.mrb[0].mxu0
        %3626 = vdwg.mxu0
        %3627 = vmatprep.subr.mxu0 0.0
        %3628 = vmatpush1.msra.mxu0 %v3497
        %3629 = vmatprep.subr.mxu0 0.0
        %3630 = vmatpush1.msra.mxu0 %v3498
        %3631 = vmatprep.subr.mxu0 0.0
        %3632 = vmatpush1.msra.mxu0 %v3499
        %3633 = vmatprep.subr.mxu0 0.0
        %3634 = vmatpush1.msra.mxu0 %v3500
        %3635 = vmatprep.subr.mxu0 0.0
        %3636 = vmatpush1.msra.mxu0 0.0
        %3637 = vmatprep.subr.mxu0 0.0
        %3638 = vmatpush1.msra.mxu0 0.0
        %3639 = vmatprep.subr.mxu0 0.0
        %3640 = vmatpush1.msra.mxu0 0.0
        %3641 = vmatprep.subr.mxu0 0.0
        %3642 = vmatpush1.msra.mxu0 0.0
        %3643 = vmatprep.subr.mxu0 0.0
        %3644 = vmatpush1.msra.mxu0 0.0
        %3645 = vmatprep.subr.mxu0 0.0
        %3646 = vmatpush1.msra.mxu0 0.0
        %3647 = vmatprep.subr.mxu0 0.0
        %3648 = vmatpush1.msra.mxu0 0.0
        %3649 = vmatprep.subr.mxu0 0.0
        %3650 = vmatpush1.msra.mxu0 0.0
        %3651 = vmatprep.subr.mxu0 0.0
        %3652 = vmatpush1.msra.mxu0 0.0
        %3653 = vmatprep.subr.mxu0 0.0
        %3654 = vmatpush1.msra.mxu0 0.0
        %3655 = vmatprep.subr.mxu0 0.0
        %3656 = vmatpush1.msra.mxu0 0.0
        %3657 = vmatprep.subr.mxu0 0.0
        %3658 = vmatpush1.msra.mxu0 0.0
        %3659 = vmatprep.subr.mxu0 0.0
        %3660 = vmatpush1.msra.mxu0 0.0
        %3661 = vmatprep.subr.mxu0 0.0
        %3662 = vmatpush1.msra.mxu0 0.0
        %3663 = vmatprep.subr.mxu0 0.0
        %3664 = vmatpush1.msra.mxu0 0.0
        %3665 = vmatprep.subr.mxu0 0.0
        %3666 = vmatpush1.msra.mxu0 0.0
        %3667 = vmatprep.subr.mxu0 0.0
        %3668 = vmatpush1.msra.mxu0 0.0
        %3669 = vmatprep.subr.mxu0 0.0
        %3670 = vmatpush1.msra.mxu0 0.0
        %3671 = vmatprep.subr.mxu0 0.0
        %3672 = vmatpush1.msra.mxu0 0.0
        %3673 = vmatprep.subr.mxu0 0.0
        %3674 = vmatpush1.msra.mxu0 0.0
        %3675 = vmatprep.subr.mxu0 0.0
        %3676 = vmatpush1.msra.mxu0 0.0
        %3677 = vmatprep.subr.mxu0 0.0
        %3678 = vmatpush1.msra.mxu0 0.0
        %3679 = vmatprep.subr.mxu0 0.0
        %3680 = vmatpush1.msra.mxu0 0.0
        %3681 = vmatprep.subr.mxu0 0.0
        %3682 = vmatpush1.msra.mxu0 0.0
        %3683 = vmatprep.subr.mxu0 0.0
        %3684 = vmatpush1.msra.mxu0 0.0
        %3685 = vmatprep.subr.mxu0 0.0
        %3686 = vmatpush1.msra.mxu0 0.0
        %3687 = vmatprep.subr.mxu0 0.0
        %3688 = vmatpush1.msra.mxu0 0.0
        %3689 = vmatprep.subr.mxu0 0.0
        %3690 = vmatpush1.msra.mxu0 0.0
        %3691 = vmatprep.mubr.f32.mxu0 0.0
        %3692 = vmatmul.mubr.f32.gmra.mrb[0].mxu0 %v3555
        %v3693 = vpop.f32.mrb[0].mxu0
        %v3694 = vadd.f32 %v3624, %v3693
        %v3695 = vpop.f32.mrb[0].mxu0
        %3696 = vdwg.mxu0
        %vm3697 = vcmp.gt.f32.partialorder %v3694, 0.0
        %v3698 = vmul.f32 %v3694, 0.1
        %v3699 = vsel %vm3697, %v3694, %v3698
        %v3701 = vlaneseq
        %v3702 = vshrl.u32 %v3701, 7
        %v3703 = vsub.s32 0, %v3702
        %v3704 = vrot.slane %v3506, %v3703
        %v3707 = vsel %vm1930, %v3699, 0
        %3709 = vmatprep.subr.mxu0 0.0
        %3710 = vmatpush1.msra.mxu0 %v3502
        %3711 = vmatprep.subr.mxu0 0.0
        %3712 = vmatpush1.msra.mxu0 %v3503
        %3713 = vmatprep.subr.mxu0 0.0
        %3714 = vmatpush1.msra.mxu0 %v3504
        %3715 = vmatprep.subr.mxu0 0.0
        %3716 = vmatpush1.msra.mxu0 %v3505
        %3717 = vmatprep.subr.mxu0 0.0
        %3718 = vmatpush1.msra.mxu0 0.0
        %3719 = vmatprep.subr.mxu0 0.0
        %3720 = vmatpush1.msra.mxu0 0.0
        %3721 = vmatprep.subr.mxu0 0.0
        %3722 = vmatpush1.msra.mxu0 0.0
        %3723 = vmatprep.subr.mxu0 0.0
        %3724 = vmatpush1.msra.mxu0 0.0
        %3725 = vmatprep.subr.mxu0 0.0
        %3726 = vmatpush1.msra.mxu0 0.0
        %3727 = vmatprep.subr.mxu0 0.0
        %3728 = vmatpush1.msra.mxu0 0.0
        %3729 = vmatprep.subr.mxu0 0.0
        %3730 = vmatpush1.msra.mxu0 0.0
        %3731 = vmatprep.subr.mxu0 0.0
        %3732 = vmatpush1.msra.mxu0 0.0
        %3733 = vmatprep.subr.mxu0 0.0
        %3734 = vmatpush1.msra.mxu0 0.0
        %3735 = vmatprep.subr.mxu0 0.0
        %3736 = vmatpush1.msra.mxu0 0.0
        %3737 = vmatprep.subr.mxu0 0.0
        %3738 = vmatpush1.msra.mxu0 0.0
        %3739 = vmatprep.subr.mxu0 0.0
        %3740 = vmatpush1.msra.mxu0 0.0
        %3741 = vmatprep.subr.mxu0 0.0
        %3742 = vmatpush1.msra.mxu0 0.0
        %3743 = vmatprep.subr.mxu0 0.0
        %3744 = vmatpush1.msra.mxu0 0.0
        %3745 = vmatprep.subr.mxu0 0.0
        %3746 = vmatpush1.msra.mxu0 0.0
        %3747 = vmatprep.subr.mxu0 0.0
        %3748 = vmatpush1.msra.mxu0 0.0
        %3749 = vmatprep.subr.mxu0 0.0
        %3750 = vmatpush1.msra.mxu0 0.0
        %3751 = vmatprep.subr.mxu0 0.0
        %3752 = vmatpush1.msra.mxu0 0.0
        %3753 = vmatprep.subr.mxu0 0.0
        %3754 = vmatpush1.msra.mxu0 0.0
        %3755 = vmatprep.subr.mxu0 0.0
        %3756 = vmatpush1.msra.mxu0 0.0
        %3757 = vmatprep.subr.mxu0 0.0
        %3758 = vmatpush1.msra.mxu0 0.0
        %3759 = vmatprep.subr.mxu0 0.0
        %3760 = vmatpush1.msra.mxu0 0.0
        %3761 = vmatprep.subr.mxu0 0.0
        %3762 = vmatpush1.msra.mxu0 0.0
        %3763 = vmatprep.subr.mxu0 0.0
        %3764 = vmatpush1.msra.mxu0 0.0
        %3765 = vmatprep.subr.mxu0 0.0
        %3766 = vmatpush1.msra.mxu0 0.0
        %3767 = vmatprep.subr.mxu0 0.0
        %3768 = vmatpush1.msra.mxu0 0.0
        %3769 = vmatprep.subr.mxu0 0.0
        %3770 = vmatpush1.msra.mxu0 0.0
        %3771 = vmatprep.subr.mxu0 0.0
        %3772 = vmatpush1.msra.mxu0 0.0
        %3773 = vmatprep.mubr.f32.mxu0 0.0
        %3774 = vmatmul.mubr.f32.gmra.mrb[0].mxu0 %v3707
        %v3775 = vpop.f32.mrb[0].mxu0
        %v3776 = vadd.f32 %v3704, %v3775
        %v3777 = vpop.f32.mrb[0].mxu0
        %3778 = vdwg.mxu0
        %vm3779 = vcmask 199680
        %3780 = vst.msk [vmem:[%s379] sm:$0xf] %vm3779, %v3776
        %v3781 = vld [vmem:[%s3459] sm:$0xf]
        %v3782 = vld [vmem:[%s3459 + $0x1] sm:$0xf]
        %v3783 = vld [vmem:[%s3459 + $0x2] sm:$0xf]
        %v3784 = vld [vmem:[%s3513] sm:$0xf]
        %v3785 = vld [vmem:[%s3513 + $0x1] sm:$0xf]
        %v3786 = vld [vmem:[%s3513 + $0x2] sm:$0xf]
        %s3787 = scalar_lea.vmem [#allocation6], 24
        %v3788 = vld [vmem:[%s3787] sm:$0xf]
        %v3789 = vld [vmem:[%s3787 + $0x1] sm:$0xf]
        %v3790 = vld [vmem:[%s3787 + $0x2] sm:$0xf]
        %3792 = vrot.lane.b32.xlu0 %v3782, 32
        %v3793 = vpop.permute.xlu0 %3792
        %3796 = vrot.lane.b32.xlu0 %v3783, 64
        %v3797 = vpop.permute.xlu0 %3796
        %3800 = vrot.lane.b32.xlu0 %v3784, 96
        %v3801 = vpop.permute.xlu0 %3800
        %3804 = vrot.lane.b32.xlu0 %v3786, 32
        %v3805 = vpop.permute.xlu0 %3804
        %3808 = vrot.lane.b32.xlu0 %v3788, 64
        %v3809 = vpop.permute.xlu0 %3808
        %3812 = vrot.lane.b32.xlu0 %v3789, 96
        %v3813 = vpop.permute.xlu0 %3812
        %v3815 = vsel %vm1930, %v3781, %v3793
        %v3816 = vsel %vm2934, %v3815, %v3797
        %v3817 = vsel %vm3543, %v3816, %v3801
        %v3818 = vsel %vm1930, %v3785, %v3805
        %v3819 = vsel %vm2934, %v3818, %v3809
        %v3820 = vsel %vm3543, %v3819, %v3813
        %v3822 = vsel %vm1930, %v3790, 0
        %3824 = vmatprep.subr.mxu0 0.0
        %3825 = vmatpush1.msra.mxu0 %v3465
        %3826 = vmatprep.subr.mxu0 0.0
        %3827 = vmatpush1.msra.mxu0 %v3466
        %3828 = vmatprep.subr.mxu0 0.0
        %3829 = vmatpush1.msra.mxu0 %v3467
        %3830 = vmatprep.subr.mxu0 0.0
        %3831 = vmatpush1.msra.mxu0 %v3468
        %3832 = vmatprep.subr.mxu0 0.0
        %3833 = vmatpush1.msra.mxu0 %v3469
        %3834 = vmatprep.subr.mxu0 0.0
        %3835 = vmatpush1.msra.mxu0 %v3470
        %3836 = vmatprep.subr.mxu0 0.0
        %3837 = vmatpush1.msra.mxu0 %v3471
        %3838 = vmatprep.subr.mxu0 0.0
        %3839 = vmatpush1.msra.mxu0 %v3472
        %3840 = vmatprep.subr.mxu0 0.0
        %3841 = vmatpush1.msra.mxu0 %v3473
        %3842 = vmatprep.subr.mxu0 0.0
        %3843 = vmatpush1.msra.mxu0 %v3474
        %3844 = vmatprep.subr.mxu0 0.0
        %3845 = vmatpush1.msra.mxu0 %v3475
        %3846 = vmatprep.subr.mxu0 0.0
        %3847 = vmatpush1.msra.mxu0 %v3476
        %3848 = vmatprep.subr.mxu0 0.0
        %3849 = vmatpush1.msra.mxu0 %v3477
        %3850 = vmatprep.subr.mxu0 0.0
        %3851 = vmatpush1.msra.mxu0 %v3478
        %3852 = vmatprep.subr.mxu0 0.0
        %3853 = vmatpush1.msra.mxu0 %v3479
        %3854 = vmatprep.subr.mxu0 0.0
        %3855 = vmatpush1.msra.mxu0 %v3480
        %3856 = vmatprep.subr.mxu0 0.0
        %3857 = vmatpush1.msra.mxu0 %v3481
        %3858 = vmatprep.subr.mxu0 0.0
        %3859 = vmatpush1.msra.mxu0 %v3482
        %3860 = vmatprep.subr.mxu0 0.0
        %3861 = vmatpush1.msra.mxu0 %v3483
        %3862 = vmatprep.subr.mxu0 0.0
        %3863 = vmatpush1.msra.mxu0 %v3484
        %3864 = vmatprep.subr.mxu0 0.0
        %3865 = vmatpush1.msra.mxu0 %v3485
        %3866 = vmatprep.subr.mxu0 0.0
        %3867 = vmatpush1.msra.mxu0 %v3486
        %3868 = vmatprep.subr.mxu0 0.0
        %3869 = vmatpush1.msra.mxu0 %v3487
        %3870 = vmatprep.subr.mxu0 0.0
        %3871 = vmatpush1.msra.mxu0 %v3488
        %3872 = vmatprep.subr.mxu0 0.0
        %3873 = vmatpush1.msra.mxu0 %v3489
        %3874 = vmatprep.subr.mxu0 0.0
        %3875 = vmatpush1.msra.mxu0 %v3490
        %3876 = vmatprep.subr.mxu0 0.0
        %3877 = vmatpush1.msra.mxu0 %v3491
        %3878 = vmatprep.subr.mxu0 0.0
        %3879 = vmatpush1.msra.mxu0 %v3492
        %3880 = vmatprep.subr.mxu0 0.0
        %3881 = vmatpush1.msra.mxu0 %v3493
        %3882 = vmatprep.subr.mxu0 0.0
        %3883 = vmatpush1.msra.mxu0 %v3494
        %3884 = vmatprep.subr.mxu0 0.0
        %3885 = vmatpush1.msra.mxu0 %v3495
        %3886 = vmatprep.subr.mxu0 0.0
        %3887 = vmatpush1.msra.mxu0 %v3496
        %3888 = vmatprep.mubr.f32.mxu0 %v3820
        %3889 = vmatmul.mubr.f32.gmra.mrb[0].mxu0 %v3817
        %v3890 = vpop.f32.mrb[0].mxu0
        %v3891 = vadd.f32 %v3552, %v3890
        %v3892 = vpop.f32.mrb[0].mxu0
        %3893 = vdwg.mxu0
        %3894 = vmatprep.subr.mxu0 0.0
        %3895 = vmatpush1.msra.mxu0 %v3497
        %3896 = vmatprep.subr.mxu0 0.0
        %3897 = vmatpush1.msra.mxu0 %v3498
        %3898 = vmatprep.subr.mxu0 0.0
        %3899 = vmatpush1.msra.mxu0 %v3499
        %3900 = vmatprep.subr.mxu0 0.0
        %3901 = vmatpush1.msra.mxu0 %v3500
        %3902 = vmatprep.subr.mxu0 0.0
        %3903 = vmatpush1.msra.mxu0 0.0
        %3904 = vmatprep.subr.mxu0 0.0
        %3905 = vmatpush1.msra.mxu0 0.0
        %3906 = vmatprep.subr.mxu0 0.0
        %3907 = vmatpush1.msra.mxu0 0.0
        %3908 = vmatprep.subr.mxu0 0.0
        %3909 = vmatpush1.msra.mxu0 0.0
        %3910 = vmatprep.subr.mxu0 0.0
        %3911 = vmatpush1.msra.mxu0 0.0
        %3912 = vmatprep.subr.mxu0 0.0
        %3913 = vmatpush1.msra.mxu0 0.0
        %3914 = vmatprep.subr.mxu0 0.0
        %3915 = vmatpush1.msra.mxu0 0.0
        %3916 = vmatprep.subr.mxu0 0.0
        %3917 = vmatpush1.msra.mxu0 0.0
        %3918 = vmatprep.subr.mxu0 0.0
        %3919 = vmatpush1.msra.mxu0 0.0
        %3920 = vmatprep.subr.mxu0 0.0
        %3921 = vmatpush1.msra.mxu0 0.0
        %3922 = vmatprep.subr.mxu0 0.0
        %3923 = vmatpush1.msra.mxu0 0.0
        %3924 = vmatprep.subr.mxu0 0.0
        %3925 = vmatpush1.msra.mxu0 0.0
        %3926 = vmatprep.subr.mxu0 0.0
        %3927 = vmatpush1.msra.mxu0 0.0
        %3928 = vmatprep.subr.mxu0 0.0
        %3929 = vmatpush1.msra.mxu0 0.0
        %3930 = vmatprep.subr.mxu0 0.0
        %3931 = vmatpush1.msra.mxu0 0.0
        %3932 = vmatprep.subr.mxu0 0.0
        %3933 = vmatpush1.msra.mxu0 0.0
        %3934 = vmatprep.subr.mxu0 0.0
        %3935 = vmatpush1.msra.mxu0 0.0
        %3936 = vmatprep.subr.mxu0 0.0
        %3937 = vmatpush1.msra.mxu0 0.0
        %3938 = vmatprep.subr.mxu0 0.0
        %3939 = vmatpush1.msra.mxu0 0.0
        %3940 = vmatprep.subr.mxu0 0.0
        %3941 = vmatpush1.msra.mxu0 0.0
        %3942 = vmatprep.subr.mxu0 0.0
        %3943 = vmatpush1.msra.mxu0 0.0
        %3944 = vmatprep.subr.mxu0 0.0
        %3945 = vmatpush1.msra.mxu0 0.0
        %3946 = vmatprep.subr.mxu0 0.0
        %3947 = vmatpush1.msra.mxu0 0.0
        %3948 = vmatprep.subr.mxu0 0.0
        %3949 = vmatpush1.msra.mxu0 0.0
        %3950 = vmatprep.subr.mxu0 0.0
        %3951 = vmatpush1.msra.mxu0 0.0
        %3952 = vmatprep.subr.mxu0 0.0
        %3953 = vmatpush1.msra.mxu0 0.0
        %3954 = vmatprep.subr.mxu0 0.0
        %3955 = vmatpush1.msra.mxu0 0.0
        %3956 = vmatprep.subr.mxu0 0.0
        %3957 = vmatpush1.msra.mxu0 0.0
        %3958 = vmatprep.mubr.f32.mxu0 0.0
        %3959 = vmatmul.mubr.f32.gmra.mrb[0].mxu0 %v3822
        %v3960 = vpop.f32.mrb[0].mxu0
        %v3961 = vadd.f32 %v3891, %v3960
        %v3962 = vpop.f32.mrb[0].mxu0
        %3963 = vdwg.mxu0
        %vm3964 = vcmp.gt.f32.partialorder %v3961, 0.0
        %v3965 = vmul.f32 %v3961, 0.1
        %v3966 = vsel %vm3964, %v3961, %v3965
        %v3968 = vsel %vm1930, %v3966, 0
        %3970 = vmatprep.subr.mxu0 0.0
        %3971 = vmatpush1.msra.mxu0 %v3502
        %3972 = vmatprep.subr.mxu0 0.0
        %3973 = vmatpush1.msra.mxu0 %v3503
        %3974 = vmatprep.subr.mxu0 0.0
        %3975 = vmatpush1.msra.mxu0 %v3504
        %3976 = vmatprep.subr.mxu0 0.0
        %3977 = vmatpush1.msra.mxu0 %v3505
        %3978 = vmatprep.subr.mxu0 0.0
        %3979 = vmatpush1.msra.mxu0 0.0
        %3980 = vmatprep.subr.mxu0 0.0
        %3981 = vmatpush1.msra.mxu0 0.0
        %3982 = vmatprep.subr.mxu0 0.0
        %3983 = vmatpush1.msra.mxu0 0.0
        %3984 = vmatprep.subr.mxu0 0.0
        %3985 = vmatpush1.msra.mxu0 0.0
        %3986 = vmatprep.subr.mxu0 0.0
        %3987 = vmatpush1.msra.mxu0 0.0
        %3988 = vmatprep.subr.mxu0 0.0
        %3989 = vmatpush1.msra.mxu0 0.0
        %3990 = vmatprep.subr.mxu0 0.0
        %3991 = vmatpush1.msra.mxu0 0.0
        %3992 = vmatprep.subr.mxu0 0.0
        %3993 = vmatpush1.msra.mxu0 0.0
        %3994 = vmatprep.subr.mxu0 0.0
        %3995 = vmatpush1.msra.mxu0 0.0
        %3996 = vmatprep.subr.mxu0 0.0
        %3997 = vmatpush1.msra.mxu0 0.0
        %3998 = vmatprep.subr.mxu0 0.0
        %3999 = vmatpush1.msra.mxu0 0.0
        %4000 = vmatprep.subr.mxu0 0.0
        %4001 = vmatpush1.msra.mxu0 0.0
        %4002 = vmatprep.subr.mxu0 0.0
        %4003 = vmatpush1.msra.mxu0 0.0
        %4004 = vmatprep.subr.mxu0 0.0
        %4005 = vmatpush1.msra.mxu0 0.0
        %4006 = vmatprep.subr.mxu0 0.0
        %4007 = vmatpush1.msra.mxu0 0.0
        %4008 = vmatprep.subr.mxu0 0.0
        %4009 = vmatpush1.msra.mxu0 0.0
        %4010 = vmatprep.subr.mxu0 0.0
        %4011 = vmatpush1.msra.mxu0 0.0
        %4012 = vmatprep.subr.mxu0 0.0
        %4013 = vmatpush1.msra.mxu0 0.0
        %4014 = vmatprep.subr.mxu0 0.0
        %4015 = vmatpush1.msra.mxu0 0.0
        %4016 = vmatprep.subr.mxu0 0.0
        %4017 = vmatpush1.msra.mxu0 0.0
        %4018 = vmatprep.subr.mxu0 0.0
        %4019 = vmatpush1.msra.mxu0 0.0
        %4020 = vmatprep.subr.mxu0 0.0
        %4021 = vmatpush1.msra.mxu0 0.0
        %4022 = vmatprep.subr.mxu0 0.0
        %4023 = vmatpush1.msra.mxu0 0.0
        %4024 = vmatprep.subr.mxu0 0.0
        %4025 = vmatpush1.msra.mxu0 0.0
        %4026 = vmatprep.subr.mxu0 0.0
        %4027 = vmatpush1.msra.mxu0 0.0
        %4028 = vmatprep.subr.mxu0 0.0
        %4029 = vmatpush1.msra.mxu0 0.0
        %4030 = vmatprep.subr.mxu0 0.0
        %4031 = vmatpush1.msra.mxu0 0.0
        %4032 = vmatprep.subr.mxu0 0.0
        %4033 = vmatpush1.msra.mxu0 0.0
        %4034 = vmatprep.mubr.f32.mxu0 0.0
        %4035 = vmatmul.mubr.f32.gmra.mrb[0].mxu0 %v3968
        %v4036 = vpop.f32.mrb[0].mxu0
        %v4037 = vadd.f32 %v3704, %v4036
        %v4038 = vpop.f32.mrb[0].mxu0
        %4039 = vdwg.mxu0
        %s4040 = scalar_lea.vmem %s379, 4 [#allocation7]
        %4041 = vst.msk [vmem:[%s4040] sm:$0xf] %vm3779, %v4037
        %v4042 = vld [vmem:[%s3513] sm:$0xf]
        %v4043 = vld [vmem:[%s3513 + $0x1] sm:$0xf]
        %v4044 = vld [vmem:[%s3513 + $0x2] sm:$0xf]
        %v4045 = vld [vmem:[%s3787] sm:$0xf]
        %v4046 = vld [vmem:[%s3787 + $0x1] sm:$0xf]
        %v4047 = vld [vmem:[%s3787 + $0x2] sm:$0xf]
        %s4048 = scalar_lea.vmem [#allocation6], 32
        %v4049 = vld [vmem:[%s4048] sm:$0xf]
        %v4050 = vld [vmem:[%s4048 + $0x1] sm:$0xf]
        %v4051 = vld [vmem:[%s4048 + $0x2] sm:$0xf]
        %4053 = vrot.lane.b32.xlu0 %v4043, 32
        %v4054 = vpop.permute.xlu0 %4053
        %4057 = vrot.lane.b32.xlu0 %v4044, 64
        %v4058 = vpop.permute.xlu0 %4057
        %4061 = vrot.lane.b32.xlu0 %v4045, 96
        %v4062 = vpop.permute.xlu0 %4061
        %4065 = vrot.lane.b32.xlu0 %v4047, 32
        %v4066 = vpop.permute.xlu0 %4065
        %4069 = vrot.lane.b32.xlu0 %v4049, 64
        %v4070 = vpop.permute.xlu0 %4069
        %4073 = vrot.lane.b32.xlu0 %v4050, 96
        %v4074 = vpop.permute.xlu0 %4073
        %v4076 = vsel %vm1930, %v4042, %v4054
        %v4077 = vsel %vm2934, %v4076, %v4058
        %v4078 = vsel %vm3543, %v4077, %v4062
        %v4079 = vsel %vm1930, %v4046, %v4066
        %v4080 = vsel %vm2934, %v4079, %v4070
        %v4081 = vsel %vm3543, %v4080, %v4074
        %v4083 = vsel %vm1930, %v4051, 0
        %4085 = vmatprep.subr.mxu0 0.0
        %4086 = vmatpush1.msra.mxu0 %v3465
        %4087 = vmatprep.subr.mxu0 0.0
        %4088 = vmatpush1.msra.mxu0 %v3466
        %4089 = vmatprep.subr.mxu0 0.0
        %4090 = vmatpush1.msra.mxu0 %v3467
        %4091 = vmatprep.subr.mxu0 0.0
        %4092 = vmatpush1.msra.mxu0 %v3468
        %4093 = vmatprep.subr.mxu0 0.0
        %4094 = vmatpush1.msra.mxu0 %v3469
        %4095 = vmatprep.subr.mxu0 0.0
        %4096 = vmatpush1.msra.mxu0 %v3470
        %4097 = vmatprep.subr.mxu0 0.0
        %4098 = vmatpush1.msra.mxu0 %v3471
        %4099 = vmatprep.subr.mxu0 0.0
        %4100 = vmatpush1.msra.mxu0 %v3472
        %4101 = vmatprep.subr.mxu0 0.0
        %4102 = vmatpush1.msra.mxu0 %v3473
        %4103 = vmatprep.subr.mxu0 0.0
        %4104 = vmatpush1.msra.mxu0 %v3474
        %4105 = vmatprep.subr.mxu0 0.0
        %4106 = vmatpush1.msra.mxu0 %v3475
        %4107 = vmatprep.subr.mxu0 0.0
        %4108 = vmatpush1.msra.mxu0 %v3476
        %4109 = vmatprep.subr.mxu0 0.0
        %4110 = vmatpush1.msra.mxu0 %v3477
        %4111 = vmatprep.subr.mxu0 0.0
        %4112 = vmatpush1.msra.mxu0 %v3478
        %4113 = vmatprep.subr.mxu0 0.0
        %4114 = vmatpush1.msra.mxu0 %v3479
        %4115 = vmatprep.subr.mxu0 0.0
        %4116 = vmatpush1.msra.mxu0 %v3480
        %4117 = vmatprep.subr.mxu0 0.0
        %4118 = vmatpush1.msra.mxu0 %v3481
        %4119 = vmatprep.subr.mxu0 0.0
        %4120 = vmatpush1.msra.mxu0 %v3482
        %4121 = vmatprep.subr.mxu0 0.0
        %4122 = vmatpush1.msra.mxu0 %v3483
        %4123 = vmatprep.subr.mxu0 0.0
        %4124 = vmatpush1.msra.mxu0 %v3484
        %4125 = vmatprep.subr.mxu0 0.0
        %4126 = vmatpush1.msra.mxu0 %v3485
        %4127 = vmatprep.subr.mxu0 0.0
        %4128 = vmatpush1.msra.mxu0 %v3486
        %4129 = vmatprep.subr.mxu0 0.0
        %4130 = vmatpush1.msra.mxu0 %v3487
        %4131 = vmatprep.subr.mxu0 0.0
        %4132 = vmatpush1.msra.mxu0 %v3488
        %4133 = vmatprep.subr.mxu0 0.0
        %4134 = vmatpush1.msra.mxu0 %v3489
        %4135 = vmatprep.subr.mxu0 0.0
        %4136 = vmatpush1.msra.mxu0 %v3490
        %4137 = vmatprep.subr.mxu0 0.0
        %4138 = vmatpush1.msra.mxu0 %v3491
        %4139 = vmatprep.subr.mxu0 0.0
        %4140 = vmatpush1.msra.mxu0 %v3492
        %4141 = vmatprep.subr.mxu0 0.0
        %4142 = vmatpush1.msra.mxu0 %v3493
        %4143 = vmatprep.subr.mxu0 0.0
        %4144 = vmatpush1.msra.mxu0 %v3494
        %4145 = vmatprep.subr.mxu0 0.0
        %4146 = vmatpush1.msra.mxu0 %v3495
        %4147 = vmatprep.subr.mxu0 0.0
        %4148 = vmatpush1.msra.mxu0 %v3496
        %4149 = vmatprep.mubr.f32.mxu0 %v4081
        %4150 = vmatmul.mubr.f32.gmra.mrb[0].mxu0 %v4078
        %v4151 = vpop.f32.mrb[0].mxu0
        %v4152 = vadd.f32 %v3552, %v4151
        %v4153 = vpop.f32.mrb[0].mxu0
        %4154 = vdwg.mxu0
        %4155 = vmatprep.subr.mxu0 0.0
        %4156 = vmatpush1.msra.mxu0 %v3497
        %4157 = vmatprep.subr.mxu0 0.0
        %4158 = vmatpush1.msra.mxu0 %v3498
        %4159 = vmatprep.subr.mxu0 0.0
        %4160 = vmatpush1.msra.mxu0 %v3499
        %4161 = vmatprep.subr.mxu0 0.0
        %4162 = vmatpush1.msra.mxu0 %v3500
        %4163 = vmatprep.subr.mxu0 0.0
        %4164 = vmatpush1.msra.mxu0 0.0
        %4165 = vmatprep.subr.mxu0 0.0
        %4166 = vmatpush1.msra.mxu0 0.0
        %4167 = vmatprep.subr.mxu0 0.0
        %4168 = vmatpush1.msra.mxu0 0.0
        %4169 = vmatprep.subr.mxu0 0.0
        %4170 = vmatpush1.msra.mxu0 0.0
        %4171 = vmatprep.subr.mxu0 0.0
        %4172 = vmatpush1.msra.mxu0 0.0
        %4173 = vmatprep.subr.mxu0 0.0
        %4174 = vmatpush1.msra.mxu0 0.0
        %4175 = vmatprep.subr.mxu0 0.0
        %4176 = vmatpush1.msra.mxu0 0.0
        %4177 = vmatprep.subr.mxu0 0.0
        %4178 = vmatpush1.msra.mxu0 0.0
        %4179 = vmatprep.subr.mxu0 0.0
        %4180 = vmatpush1.msra.mxu0 0.0
        %4181 = vmatprep.subr.mxu0 0.0
        %4182 = vmatpush1.msra.mxu0 0.0
        %4183 = vmatprep.subr.mxu0 0.0
        %4184 = vmatpush1.msra.mxu0 0.0
        %4185 = vmatprep.subr.mxu0 0.0
        %4186 = vmatpush1.msra.mxu0 0.0
        %4187 = vmatprep.subr.mxu0 0.0
        %4188 = vmatpush1.msra.mxu0 0.0
        %4189 = vmatprep.subr.mxu0 0.0
        %4190 = vmatpush1.msra.mxu0 0.0
        %4191 = vmatprep.subr.mxu0 0.0
        %4192 = vmatpush1.msra.mxu0 0.0
        %4193 = vmatprep.subr.mxu0 0.0
        %4194 = vmatpush1.msra.mxu0 0.0
        %4195 = vmatprep.subr.mxu0 0.0
        %4196 = vmatpush1.msra.mxu0 0.0
        %4197 = vmatprep.subr.mxu0 0.0
        %4198 = vmatpush1.msra.mxu0 0.0
        %4199 = vmatprep.subr.mxu0 0.0
        %4200 = vmatpush1.msra.mxu0 0.0
        %4201 = vmatprep.subr.mxu0 0.0
        %4202 = vmatpush1.msra.mxu0 0.0
        %4203 = vmatprep.subr.mxu0 0.0
        %4204 = vmatpush1.msra.mxu0 0.0
        %4205 = vmatprep.subr.mxu0 0.0
        %4206 = vmatpush1.msra.mxu0 0.0
        %4207 = vmatprep.subr.mxu0 0.0
        %4208 = vmatpush1.msra.mxu0 0.0
        %4209 = vmatprep.subr.mxu0 0.0
        %4210 = vmatpush1.msra.mxu0 0.0
        %4211 = vmatprep.subr.mxu0 0.0
        %4212 = vmatpush1.msra.mxu0 0.0
        %4213 = vmatprep.subr.mxu0 0.0
        %4214 = vmatpush1.msra.mxu0 0.0
        %4215 = vmatprep.subr.mxu0 0.0
        %4216 = vmatpush1.msra.mxu0 0.0
        %4217 = vmatprep.subr.mxu0 0.0
        %4218 = vmatpush1.msra.mxu0 0.0
        %4219 = vmatprep.mubr.f32.mxu0 0.0
        %4220 = vmatmul.mubr.f32.gmra.mrb[0].mxu0 %v4083
        %v4221 = vpop.f32.mrb[0].mxu0
        %v4222 = vadd.f32 %v4152, %v4221
        %v4223 = vpop.f32.mrb[0].mxu0
        %4224 = vdwg.mxu0
        %vm4225 = vcmp.gt.f32.partialorder %v4222, 0.0
        %v4226 = vmul.f32 %v4222, 0.1
        %v4227 = vsel %vm4225, %v4222, %v4226
        %v4229 = vsel %vm1930, %v4227, 0
        %4231 = vmatprep.subr.mxu0 0.0
        %4232 = vmatpush1.msra.mxu0 %v3502
        %4233 = vmatprep.subr.mxu0 0.0
        %4234 = vmatpush1.msra.mxu0 %v3503
        %4235 = vmatprep.subr.mxu0 0.0
        %4236 = vmatpush1.msra.mxu0 %v3504
        %4237 = vmatprep.subr.mxu0 0.0
        %4238 = vmatpush1.msra.mxu0 %v3505
        %4239 = vmatprep.subr.mxu0 0.0
        %4240 = vmatpush1.msra.mxu0 0.0
        %4241 = vmatprep.subr.mxu0 0.0
        %4242 = vmatpush1.msra.mxu0 0.0
        %4243 = vmatprep.subr.mxu0 0.0
        %4244 = vmatpush1.msra.mxu0 0.0
        %4245 = vmatprep.subr.mxu0 0.0
        %4246 = vmatpush1.msra.mxu0 0.0
        %4247 = vmatprep.subr.mxu0 0.0
        %4248 = vmatpush1.msra.mxu0 0.0
        %4249 = vmatprep.subr.mxu0 0.0
        %4250 = vmatpush1.msra.mxu0 0.0
        %4251 = vmatprep.subr.mxu0 0.0
        %4252 = vmatpush1.msra.mxu0 0.0
        %4253 = vmatprep.subr.mxu0 0.0
        %4254 = vmatpush1.msra.mxu0 0.0
        %4255 = vmatprep.subr.mxu0 0.0
        %4256 = vmatpush1.msra.mxu0 0.0
        %4257 = vmatprep.subr.mxu0 0.0
        %4258 = vmatpush1.msra.mxu0 0.0
        %4259 = vmatprep.subr.mxu0 0.0
        %4260 = vmatpush1.msra.mxu0 0.0
        %4261 = vmatprep.subr.mxu0 0.0
        %4262 = vmatpush1.msra.mxu0 0.0
        %4263 = vmatprep.subr.mxu0 0.0
        %4264 = vmatpush1.msra.mxu0 0.0
        %4265 = vmatprep.subr.mxu0 0.0
        %4266 = vmatpush1.msra.mxu0 0.0
        %4267 = vmatprep.subr.mxu0 0.0
        %4268 = vmatpush1.msra.mxu0 0.0
        %4269 = vmatprep.subr.mxu0 0.0
        %4270 = vmatpush1.msra.mxu0 0.0
        %4271 = vmatprep.subr.mxu0 0.0
        %4272 = vmatpush1.msra.mxu0 0.0
        %4273 = vmatprep.subr.mxu0 0.0
        %4274 = vmatpush1.msra.mxu0 0.0
        %4275 = vmatprep.subr.mxu0 0.0
        %4276 = vmatpush1.msra.mxu0 0.0
        %4277 = vmatprep.subr.mxu0 0.0
        %4278 = vmatpush1.msra.mxu0 0.0
        %4279 = vmatprep.subr.mxu0 0.0
        %4280 = vmatpush1.msra.mxu0 0.0
        %4281 = vmatprep.subr.mxu0 0.0
        %4282 = vmatpush1.msra.mxu0 0.0
        %4283 = vmatprep.subr.mxu0 0.0
        %4284 = vmatpush1.msra.mxu0 0.0
        %4285 = vmatprep.subr.mxu0 0.0
        %4286 = vmatpush1.msra.mxu0 0.0
        %4287 = vmatprep.subr.mxu0 0.0
        %4288 = vmatpush1.msra.mxu0 0.0
        %4289 = vmatprep.subr.mxu0 0.0
        %4290 = vmatpush1.msra.mxu0 0.0
        %4291 = vmatprep.subr.mxu0 0.0
        %4292 = vmatpush1.msra.mxu0 0.0
        %4293 = vmatprep.subr.mxu0 0.0
        %4294 = vmatpush1.msra.mxu0 0.0
        %4295 = vmatprep.mubr.f32.mxu0 0.0
        %4296 = vmatmul.mubr.f32.gmra.mrb[0].mxu0 %v4229
        %v4297 = vpop.f32.mrb[0].mxu0
        %v4298 = vadd.f32 %v3704, %v4297
        %v4299 = vpop.f32.mrb[0].mxu0
        %4300 = vdwg.mxu0
        %s4301 = scalar_lea.vmem %s379, 8 [#allocation7]
        %4302 = vst.msk [vmem:[%s4301] sm:$0xf] %vm3779, %v4298
        %v4303 = vld [vmem:[%s3787] sm:$0xf]
        %v4304 = vld [vmem:[%s3787 + $0x1] sm:$0xf]
        %v4305 = vld [vmem:[%s3787 + $0x2] sm:$0xf]
        %v4306 = vld [vmem:[%s4048] sm:$0xf]
        %v4307 = vld [vmem:[%s4048 + $0x1] sm:$0xf]
        %v4308 = vld [vmem:[%s4048 + $0x2] sm:$0xf]
        %s4309 = scalar_lea.vmem [#allocation6], 40
        %v4310 = vld [vmem:[%s4309] sm:$0xf]
        %v4311 = vld [vmem:[%s4309 + $0x1] sm:$0xf]
        %v4312 = vld [vmem:[%s4309 + $0x2] sm:$0xf]
        %4314 = vrot.lane.b32.xlu0 %v4304, 32
        %v4315 = vpop.permute.xlu0 %4314
        %4318 = vrot.lane.b32.xlu0 %v4305, 64
        %v4319 = vpop.permute.xlu0 %4318
        %4322 = vrot.lane.b32.xlu0 %v4306, 96
        %v4323 = vpop.permute.xlu0 %4322
        %4326 = vrot.lane.b32.xlu0 %v4308, 32
        %v4327 = vpop.permute.xlu0 %4326
        %4330 = vrot.lane.b32.xlu0 %v4310, 64
        %v4331 = vpop.permute.xlu0 %4330
        %4334 = vrot.lane.b32.xlu0 %v4311, 96
        %v4335 = vpop.permute.xlu0 %4334
        %v4337 = vsel %vm1930, %v4303, %v4315
        %v4338 = vsel %vm2934, %v4337, %v4319
        %v4339 = vsel %vm3543, %v4338, %v4323
        %v4340 = vsel %vm1930, %v4307, %v4327
        %v4341 = vsel %vm2934, %v4340, %v4331
        %v4342 = vsel %vm3543, %v4341, %v4335
        %v4344 = vsel %vm1930, %v4312, 0
        %4346 = vmatprep.subr.mxu0 0.0
        %4347 = vmatpush1.msra.mxu0 %v3465
        %4348 = vmatprep.subr.mxu0 0.0
        %4349 = vmatpush1.msra.mxu0 %v3466
        %4350 = vmatprep.subr.mxu0 0.0
        %4351 = vmatpush1.msra.mxu0 %v3467
        %4352 = vmatprep.subr.mxu0 0.0
        %4353 = vmatpush1.msra.mxu0 %v3468
        %4354 = vmatprep.subr.mxu0 0.0
        %4355 = vmatpush1.msra.mxu0 %v3469
        %4356 = vmatprep.subr.mxu0 0.0
        %4357 = vmatpush1.msra.mxu0 %v3470
        %4358 = vmatprep.subr.mxu0 0.0
        %4359 = vmatpush1.msra.mxu0 %v3471
        %4360 = vmatprep.subr.mxu0 0.0
        %4361 = vmatpush1.msra.mxu0 %v3472
        %4362 = vmatprep.subr.mxu0 0.0
        %4363 = vmatpush1.msra.mxu0 %v3473
        %4364 = vmatprep.subr.mxu0 0.0
        %4365 = vmatpush1.msra.mxu0 %v3474
        %4366 = vmatprep.subr.mxu0 0.0
        %4367 = vmatpush1.msra.mxu0 %v3475
        %4368 = vmatprep.subr.mxu0 0.0
        %4369 = vmatpush1.msra.mxu0 %v3476
        %4370 = vmatprep.subr.mxu0 0.0
        %4371 = vmatpush1.msra.mxu0 %v3477
        %4372 = vmatprep.subr.mxu0 0.0
        %4373 = vmatpush1.msra.mxu0 %v3478
        %4374 = vmatprep.subr.mxu0 0.0
        %4375 = vmatpush1.msra.mxu0 %v3479
        %4376 = vmatprep.subr.mxu0 0.0
        %4377 = vmatpush1.msra.mxu0 %v3480
        %4378 = vmatprep.subr.mxu0 0.0
        %4379 = vmatpush1.msra.mxu0 %v3481
        %4380 = vmatprep.subr.mxu0 0.0
        %4381 = vmatpush1.msra.mxu0 %v3482
        %4382 = vmatprep.subr.mxu0 0.0
        %4383 = vmatpush1.msra.mxu0 %v3483
        %4384 = vmatprep.subr.mxu0 0.0
        %4385 = vmatpush1.msra.mxu0 %v3484
        %4386 = vmatprep.subr.mxu0 0.0
        %4387 = vmatpush1.msra.mxu0 %v3485
        %4388 = vmatprep.subr.mxu0 0.0
        %4389 = vmatpush1.msra.mxu0 %v3486
        %4390 = vmatprep.subr.mxu0 0.0
        %4391 = vmatpush1.msra.mxu0 %v3487
        %4392 = vmatprep.subr.mxu0 0.0
        %4393 = vmatpush1.msra.mxu0 %v3488
        %4394 = vmatprep.subr.mxu0 0.0
        %4395 = vmatpush1.msra.mxu0 %v3489
        %4396 = vmatprep.subr.mxu0 0.0
        %4397 = vmatpush1.msra.mxu0 %v3490
        %4398 = vmatprep.subr.mxu0 0.0
        %4399 = vmatpush1.msra.mxu0 %v3491
        %4400 = vmatprep.subr.mxu0 0.0
        %4401 = vmatpush1.msra.mxu0 %v3492
        %4402 = vmatprep.subr.mxu0 0.0
        %4403 = vmatpush1.msra.mxu0 %v3493
        %4404 = vmatprep.subr.mxu0 0.0
        %4405 = vmatpush1.msra.mxu0 %v3494
        %4406 = vmatprep.subr.mxu0 0.0
        %4407 = vmatpush1.msra.mxu0 %v3495
        %4408 = vmatprep.subr.mxu0 0.0
        %4409 = vmatpush1.msra.mxu0 %v3496
        %4410 = vmatprep.mubr.f32.mxu0 %v4342
        %4411 = vmatmul.mubr.f32.gmra.mrb[0].mxu0 %v4339
        %v4412 = vpop.f32.mrb[0].mxu0
        %v4413 = vadd.f32 %v3552, %v4412
        %v4414 = vpop.f32.mrb[0].mxu0
        %4415 = vdwg.mxu0
        %4416 = vmatprep.subr.mxu0 0.0
        %4417 = vmatpush1.msra.mxu0 %v3497
        %4418 = vmatprep.subr.mxu0 0.0
        %4419 = vmatpush1.msra.mxu0 %v3498
        %4420 = vmatprep.subr.mxu0 0.0
        %4421 = vmatpush1.msra.mxu0 %v3499
        %4422 = vmatprep.subr.mxu0 0.0
        %4423 = vmatpush1.msra.mxu0 %v3500
        %4424 = vmatprep.subr.mxu0 0.0
        %4425 = vmatpush1.msra.mxu0 0.0
        %4426 = vmatprep.subr.mxu0 0.0
        %4427 = vmatpush1.msra.mxu0 0.0
        %4428 = vmatprep.subr.mxu0 0.0
        %4429 = vmatpush1.msra.mxu0 0.0
        %4430 = vmatprep.subr.mxu0 0.0
        %4431 = vmatpush1.msra.mxu0 0.0
        %4432 = vmatprep.subr.mxu0 0.0
        %4433 = vmatpush1.msra.mxu0 0.0
        %4434 = vmatprep.subr.mxu0 0.0
        %4435 = vmatpush1.msra.mxu0 0.0
        %4436 = vmatprep.subr.mxu0 0.0
        %4437 = vmatpush1.msra.mxu0 0.0
        %4438 = vmatprep.subr.mxu0 0.0
        %4439 = vmatpush1.msra.mxu0 0.0
        %4440 = vmatprep.subr.mxu0 0.0
        %4441 = vmatpush1.msra.mxu0 0.0
        %4442 = vmatprep.subr.mxu0 0.0
        %4443 = vmatpush1.msra.mxu0 0.0
        %4444 = vmatprep.subr.mxu0 0.0
        %4445 = vmatpush1.msra.mxu0 0.0
        %4446 = vmatprep.subr.mxu0 0.0
        %4447 = vmatpush1.msra.mxu0 0.0
        %4448 = vmatprep.subr.mxu0 0.0
        %4449 = vmatpush1.msra.mxu0 0.0
        %4450 = vmatprep.subr.mxu0 0.0
        %4451 = vmatpush1.msra.mxu0 0.0
        %4452 = vmatprep.subr.mxu0 0.0
        %4453 = vmatpush1.msra.mxu0 0.0
        %4454 = vmatprep.subr.mxu0 0.0
        %4455 = vmatpush1.msra.mxu0 0.0
        %4456 = vmatprep.subr.mxu0 0.0
        %4457 = vmatpush1.msra.mxu0 0.0
        %4458 = vmatprep.subr.mxu0 0.0
        %4459 = vmatpush1.msra.mxu0 0.0
        %4460 = vmatprep.subr.mxu0 0.0
        %4461 = vmatpush1.msra.mxu0 0.0
        %4462 = vmatprep.subr.mxu0 0.0
        %4463 = vmatpush1.msra.mxu0 0.0
        %4464 = vmatprep.subr.mxu0 0.0
        %4465 = vmatpush1.msra.mxu0 0.0
        %4466 = vmatprep.subr.mxu0 0.0
        %4467 = vmatpush1.msra.mxu0 0.0
        %4468 = vmatprep.subr.mxu0 0.0
        %4469 = vmatpush1.msra.mxu0 0.0
        %4470 = vmatprep.subr.mxu0 0.0
        %4471 = vmatpush1.msra.mxu0 0.0
        %4472 = vmatprep.subr.mxu0 0.0
        %4473 = vmatpush1.msra.mxu0 0.0
        %4474 = vmatprep.subr.mxu0 0.0
        %4475 = vmatpush1.msra.mxu0 0.0
        %4476 = vmatprep.subr.mxu0 0.0
        %4477 = vmatpush1.msra.mxu0 0.0
        %4478 = vmatprep.subr.mxu0 0.0
        %4479 = vmatpush1.msra.mxu0 0.0
        %4480 = vmatprep.mubr.f32.mxu0 0.0
        %4481 = vmatmul.mubr.f32.gmra.mrb[0].mxu0 %v4344
        %v4482 = vpop.f32.mrb[0].mxu0
        %v4483 = vadd.f32 %v4413, %v4482
        %v4484 = vpop.f32.mrb[0].mxu0
        %4485 = vdwg.mxu0
        %vm4486 = vcmp.gt.f32.partialorder %v4483, 0.0
        %v4487 = vmul.f32 %v4483, 0.1
        %v4488 = vsel %vm4486, %v4483, %v4487
        %v4490 = vsel %vm1930, %v4488, 0
        %4492 = vmatprep.subr.mxu0 0.0
        %4493 = vmatpush1.msra.mxu0 %v3502
        %4494 = vmatprep.subr.mxu0 0.0
        %4495 = vmatpush1.msra.mxu0 %v3503
        %4496 = vmatprep.subr.mxu0 0.0
        %4497 = vmatpush1.msra.mxu0 %v3504
        %4498 = vmatprep.subr.mxu0 0.0
        %4499 = vmatpush1.msra.mxu0 %v3505
        %4500 = vmatprep.subr.mxu0 0.0
        %4501 = vmatpush1.msra.mxu0 0.0
        %4502 = vmatprep.subr.mxu0 0.0
        %4503 = vmatpush1.msra.mxu0 0.0
        %4504 = vmatprep.subr.mxu0 0.0
        %4505 = vmatpush1.msra.mxu0 0.0
        %4506 = vmatprep.subr.mxu0 0.0
        %4507 = vmatpush1.msra.mxu0 0.0
        %4508 = vmatprep.subr.mxu0 0.0
        %4509 = vmatpush1.msra.mxu0 0.0
        %4510 = vmatprep.subr.mxu0 0.0
        %4511 = vmatpush1.msra.mxu0 0.0
        %4512 = vmatprep.subr.mxu0 0.0
        %4513 = vmatpush1.msra.mxu0 0.0
        %4514 = vmatprep.subr.mxu0 0.0
        %4515 = vmatpush1.msra.mxu0 0.0
        %4516 = vmatprep.subr.mxu0 0.0
        %4517 = vmatpush1.msra.mxu0 0.0
        %4518 = vmatprep.subr.mxu0 0.0
        %4519 = vmatpush1.msra.mxu0 0.0
        %4520 = vmatprep.subr.mxu0 0.0
        %4521 = vmatpush1.msra.mxu0 0.0
        %4522 = vmatprep.subr.mxu0 0.0
        %4523 = vmatpush1.msra.mxu0 0.0
        %4524 = vmatprep.subr.mxu0 0.0
        %4525 = vmatpush1.msra.mxu0 0.0
        %4526 = vmatprep.subr.mxu0 0.0
        %4527 = vmatpush1.msra.mxu0 0.0
        %4528 = vmatprep.subr.mxu0 0.0
        %4529 = vmatpush1.msra.mxu0 0.0
        %4530 = vmatprep.subr.mxu0 0.0
        %4531 = vmatpush1.msra.mxu0 0.0
        %4532 = vmatprep.subr.mxu0 0.0
        %4533 = vmatpush1.msra.mxu0 0.0
        %4534 = vmatprep.subr.mxu0 0.0
        %4535 = vmatpush1.msra.mxu0 0.0
        %4536 = vmatprep.subr.mxu0 0.0
        %4537 = vmatpush1.msra.mxu0 0.0
        %4538 = vmatprep.subr.mxu0 0.0
        %4539 = vmatpush1.msra.mxu0 0.0
        %4540 = vmatprep.subr.mxu0 0.0
        %4541 = vmatpush1.msra.mxu0 0.0
        %4542 = vmatprep.subr.mxu0 0.0
        %4543 = vmatpush1.msra.mxu0 0.0
        %4544 = vmatprep.subr.mxu0 0.0
        %4545 = vmatpush1.msra.mxu0 0.0
        %4546 = vmatprep.subr.mxu0 0.0
        %4547 = vmatpush1.msra.mxu0 0.0
        %4548 = vmatprep.subr.mxu0 0.0
        %4549 = vmatpush1.msra.mxu0 0.0
        %4550 = vmatprep.subr.mxu0 0.0
        %4551 = vmatpush1.msra.mxu0 0.0
        %4552 = vmatprep.subr.mxu0 0.0
        %4553 = vmatpush1.msra.mxu0 0.0
        %4554 = vmatprep.subr.mxu0 0.0
        %4555 = vmatpush1.msra.mxu0 0.0
        %4556 = vmatprep.mubr.f32.mxu0 0.0
        %4557 = vmatmul.mubr.f32.gmra.mrb[0].mxu0 %v4490
        %v4558 = vpop.f32.mrb[0].mxu0
        %v4559 = vadd.f32 %v3704, %v4558
        %v4560 = vpop.f32.mrb[0].mxu0
        %4561 = vdwg.mxu0
        %s4562 = scalar_lea.vmem %s379, 12 [#allocation7]
        %4563 = vst.msk [vmem:[%s4562] sm:$0xf] %vm3779, %v4559
        %s4564 = sand.u32 %s269, 1
        %s4565 = scalar_lea.sflag [#allocation8], %s4564
        %s4566 = sand.u32 %s269, 1
        %s4567 = smul.addr %s4566, 16
        %s4568 = scalar_lea.vmem [#allocation7], %s4567
        // Predicated region
        $region65: #{yolo_v2_forward.1} parent=63 // pred_check
          %p4569 = pneg %p279
        $region66: #{yolo_v2_forward.1} parent=63 // pred_check_branch
          %4571 = sbr.rel (%p4569) target = $region68
        $region67: #{yolo_v2_forward.1} parent=63 // pred_region
          %s4573 = ssub.s32 256, 256
          %4574 = vsyncadd %s4565, %s4573
          %s4575 = smul.addr %s25, 4
          %s4576 = smul.addr %s4575, 64
          %s4577 = scalar_lea.hbm %s11, %s4576
          %s4578 = sshll.u32 %s4568, 4
          %s4579 = int_to_ptr.vmem [resolvable:$true] %s4578
          %4584 = dma.vmem_to_hbm [thread:$0]  %s4579, 256, %s4577, %s4565, 64, 64, 4
        $region68: #{yolo_v2_forward.1} parent=63 // pred_fallthru
          _
      $region64: #{yolo_v2_forward.1} parent=5 // pred_fallthru
        _
      %p4585 = scmp.le.s32.totalorder 2, %s20
      // Predicated region
      $region69: #{yolo_v2_forward.1} parent=5 // pred_check
        %p4586 = pneg %p4585
      $region70: #{yolo_v2_forward.1} parent=5 // pred_check_branch
        %4588 = sbr.rel (%p4586) target = $region72
      $region71: #{yolo_v2_forward.1} parent=5 // pred_region
        %s4589 = ssub.s32 %s20, 2
        // Predicated region
        $region73: #{yolo_v2_forward.1} parent=71 // pred_check
          %p4590 = pneg %p285
        $region74: #{yolo_v2_forward.1} parent=71 // pred_check_branch
          %4592 = sbr.rel (%p4590) target = $region76
        $region75: #{yolo_v2_forward.1} parent=71 // pred_region
          %s4593 = sand.u32 %s270, 1
          %s4594 = scalar_lea.sflag [#allocation8], %s4593
          %s4595 = sand.u32 %s270, 1
          %s4596 = smul.addr %s4595, 16
          %s4597 = scalar_lea.vmem [#allocation7], %s4596
          %4598 = dma.done %s4594, 256
        $region76: #{yolo_v2_forward.1} parent=71 // pred_fallthru
          _
      $region72: #{yolo_v2_forward.1} parent=5 // pred_fallthru
        _
    $region6: #{yolo_v2_forward.1} parent=1 // loop_footer
      %s24 = sadd.s32 1, %s20
    $region7: #{yolo_v2_forward.1} parent=1 // loop_footer_branch
      %19 = sbr.rel target = $region3
    $region8: #{yolo_v2_forward.1} parent=1 // loop_exit
      _
    %4599 = vsyncpa [#allocation8], 1
    %s4600 = scalar_lea.sflag [#allocation8], 1
    %4601 = vsyncpa %s4600, 1

</llo_original>
